<compile_context>
chip_gen: v7x
topology: tpu7x:2x2x1
jax: 0.10.0
libtpu: 0.0.40
codegen_flags: <defaults>
</compile_context>

<pallas_src>
import math

import jax
import jax.numpy as jnp
from jax.experimental import pallas as pl
from jax.experimental.pallas import tpu as pltpu

# ----------------------------- model config ---------------------------------
B = 2            # batch
S = 8            # sequence length (after "padding=True")
H = 32           # hidden dim
NUM_HEADS = 4
HEAD_DIM = H // NUM_HEADS
FFN = 4 * H      # intermediate size
VOCAB = 50
TYPE_VOCAB = 2
MAX_POS = 16
NUM_LAYERS = 2
LN_EPS = 1e-12
BS = B * S       # flattened token rows
BH = NUM_HEADS * B
PACK_W = max(FFN, 3 * H)   # = 128 lane width of the packed bias array
PACK_ROWS = 8              # bqkv, b1, bo, ln1_g, ln1_b, b2, ln2_g, ln2_b


# --------------------------- in-kernel helpers -------------------------------
def _layer_norm(x, gamma, beta):
    # x: (BS, H), gamma/beta: (1, H); f32 math.
    mu = jnp.mean(x, axis=-1, keepdims=True)
    var = jnp.mean((x - mu) * (x - mu), axis=-1, keepdims=True)
    return (x - mu) * jax.lax.rsqrt(var + LN_EPS) * gamma + beta


def _gelu(x):
    # TODO(synk): HF BERT's default hidden_act is exact erf GELU; the tanh
    # approximation is used because erf has no guaranteed Mosaic lowering.
    c = math.sqrt(2.0 / math.pi)
    return 0.5 * x * (1.0 + jnp.tanh(c * (x + 0.044715 * x * x * x)))


# ------------------------------ Pallas kernel --------------------------------
def bert_model_kernel(
    ids_ref,      # (BS, 1)        int32  token ids
    pe_ref,       # (BS, H)        f32    position + token-type embeddings
    mask_ref,     # (BH, S, S)     f32    additive key mask (head-major batch)
    wemb_ref,     # (VOCAB, H)     f32    word-embedding table
    embln_ref,    # (2, H)         f32    embedding LN gamma (row0) / beta (row1)
    wqkv_ref,     # (L, H, 3H)     bf16   fused QKV weights (Q columns pre-scaled)
    wo_ref,       # (L, H, H)      bf16
    w1_ref,       # (L, H, FFN)    bf16
    w2_ref,       # (L, FFN, H)    bf16
    lbias_ref,    # (L, 8, 128)    f32    packed biases + LayerNorm params
    o_ref,        # (BS, H)        f32    last_hidden_state (flattened)
):
    f32 = jnp.float32
    bf16 = jnp.bfloat16

    # --- embeddings: one-hot gather on the MXU + pos/type add + LayerNorm ---
    ids = ids_ref[...]                                            # (BS, 1) i32
    iota = jax.lax.broadcasted_iota(jnp.int32, (BS, VOCAB), 1)
    onehot = (iota == ids).astype(f32)                            # (BS, VOCAB)
    x = jnp.dot(onehot, wemb_ref[...], preferred_element_type=f32) + pe_ref[...]
    x = _layer_norm(x, embln_ref[0:1, :], embln_ref[1:2, :])      # (BS, H)

    neg_mask = mask_ref[...]                                      # (BH, S, S)

    # Static layer loop (NUM_LAYERS=2): all weights stay resident in VMEM and
    # the hidden state never leaves the chip.
    for li in range(NUM_LAYERS):
        pk = lbias_ref[li]                                        # (8, 128) f32
        bqkv = pk[0:1, 0:3 * H]
        b1 = pk[1:2, 0:FFN]
        bo = pk[2:3, 0:H]
        ln1_g = pk[3:4, 0:H]
        ln1_b = pk[4:5, 0:H]
        b2 = pk[5:6, 0:H]
        ln2_g = pk[6:7, 0:H]
        ln2_b = pk[7:8, 0:H]

        # --- self attention: fused QKV projection (one MXU matmul) ---
        qkv = (jnp.dot(x.astype(bf16), wqkv_ref[li],
                       preferred_element_type=f32) + bqkv)        # (BS, 3H) f32
        qkv16 = qkv.astype(bf16)                                  # single cast

        # Assemble head-batched (BH, S, dh) tensors (head-major batch dim).
        def heads(base):
            return jnp.concatenate(
                [qkv16[:, base + h * HEAD_DIM: base + (h + 1) * HEAD_DIM]
                 .reshape(B, S, HEAD_DIM) for h in range(NUM_HEADS)],
                axis=0)                                           # (BH, S, dh)

        q_bh = heads(0)        # Q scale already folded into the weights
        k_bh = heads(H)
        v_bh = heads(2 * H)

        # Batched attention for all heads at once (single softmax chain).
        s = jnp.einsum('bqd,bkd->bqk', q_bh, k_bh,
                       preferred_element_type=f32) + neg_mask     # (BH, S, S)
        m = jnp.max(s, axis=-1, keepdims=True)
        p = jnp.exp(s - m)
        denom = jnp.sum(p, axis=-1, keepdims=True)
        p = p * pl.reciprocal(denom, approx=True)                 # EUP slot
        ctx_bh = jnp.einsum('bqk,bkd->bqd', p.astype(bf16), v_bh,
                            preferred_element_type=f32)           # (BH, S, dh)

        # Re-pack heads into adjacent 8-lane groups -> (BS, H); ONE wo matmul.
        ctx = jnp.concatenate(
            [ctx_bh[h * B:(h + 1) * B].reshape(BS, HEAD_DIM)
             for h in range(NUM_HEADS)], axis=-1)                 # (BS, H) f32
        attn = jnp.dot(ctx.astype(bf16), wo_ref[li],
                       preferred_element_type=f32) + bo

        h1 = _layer_norm(x + attn, ln1_g, ln1_b)

        # --- feed forward ---
        ff = (jnp.dot(h1.astype(bf16), w1_ref[li],
                      preferred_element_type=f32) + b1)
        ff = _gelu(ff)
        ff = (jnp.dot(ff.astype(bf16), w2_ref[li],
                      preferred_element_type=f32) + b2)
        x = _layer_norm(h1 + ff, ln2_g, ln2_b)

    o_ref[...] = x


# ------------------------------ JAX wrappers ----------------------------------
def _vmem_spec():
    # Whole array resident in VMEM (no grid, no blocking).
    return pl.BlockSpec(memory_space=pltpu.MemorySpace.VMEM)


def init_params(key):
    def normal(k, shape, scale=0.02):
        return scale * jax.random.normal(k, shape, dtype=jnp.float32)

    keys = jax.random.split(key, 3 + NUM_LAYERS)
    params = {
        "word_emb": normal(keys[0], (VOCAB, H)),
        "pos_emb": normal(keys[1], (MAX_POS, H)),
        "type_emb": normal(keys[2], (TYPE_VOCAB, H)),
        # embedding LayerNorm gamma (row 0) / beta (row 1)
        "emb_ln": jnp.concatenate(
            [jnp.ones((1, H), jnp.float32), jnp.zeros((1, H), jnp.float32)],
            axis=0),
    }

    inv_sqrt_dh = 1.0 / math.sqrt(HEAD_DIM)
    wqkv, wo, w1, w2 = [], [], [], []
    for li in range(NUM_LAYERS):
        lk = jax.random.split(keys[3 + li], 6)
        # Fold the 1/sqrt(HEAD_DIM) attention scale into the Q projection.
        wq = normal(lk[0], (H, H)) * inv_sqrt_dh
        wk = normal(lk[1], (H, H))
        wv = normal(lk[2], (H, H))
        wqkv.append(jnp.concatenate([wq, wk, wv], axis=1))        # (H, 3H)
        wo.append(normal(lk[3], (H, H)))
        w1.append(normal(lk[4], (H, FFN)))
        w2.append(normal(lk[5], (FFN, H)))

    # Packed per-layer bias / LayerNorm array: (L, 8, 128) f32.
    #   row 0: bqkv (3H)   row 1: b1 (FFN)   row 2: bo      row 3: ln1_g
    #   row 4: ln1_b       row 5: b2         row 6: ln2_g   row 7: ln2_b
    bqkv = jnp.zeros((NUM_LAYERS, 3 * H), jnp.float32)
    # (Q part of the bias would also carry the folded scale; it is zero here.)
    bqkv = bqkv.at[:, 0:H].multiply(inv_sqrt_dh)
    lbias = jnp.zeros((NUM_LAYERS, PACK_ROWS, PACK_W), jnp.float32)
    lbias = lbias.at[:, 0, 0:3 * H].set(bqkv)
    lbias = lbias.at[:, 1, 0:FFN].set(jnp.zeros((NUM_LAYERS, FFN)))   # b1
    lbias = lbias.at[:, 2, 0:H].set(jnp.zeros((NUM_LAYERS, H)))       # bo
    lbias = lbias.at[:, 3, 0:H].set(jnp.ones((NUM_LAYERS, H)))        # ln1_g
    lbias = lbias.at[:, 4, 0:H].set(jnp.zeros((NUM_LAYERS, H)))       # ln1_b
    lbias = lbias.at[:, 5, 0:H].set(jnp.zeros((NUM_LAYERS, H)))       # b2
    lbias = lbias.at[:, 6, 0:H].set(jnp.ones((NUM_LAYERS, H)))        # ln2_g
    lbias = lbias.at[:, 7, 0:H].set(jnp.zeros((NUM_LAYERS, H)))       # ln2_b

    params.update({
        "wqkv": jnp.stack(wqkv).astype(jnp.bfloat16),   # (L, H, 3H)
        "wo":   jnp.stack(wo).astype(jnp.bfloat16),     # (L, H, H)
        "w1":   jnp.stack(w1).astype(jnp.bfloat16),     # (L, H, FFN)
        "w2":   jnp.stack(w2).astype(jnp.bfloat16),     # (L, FFN, H)
        "lbias": lbias,                                 # (L, 8, 128) f32
    })
    return params


@jax.jit
def bert_layer_forward(input_ids, attention_mask, params):
    """Equivalent of Bert_layer.forward -> outputs.last_hidden_state."""
    # Tiny host-side setup only (mask / pos+type embeddings); the embedding
    # gather and the full encoder run inside a single fused Pallas call.
    ids = input_ids.astype(jnp.int32).reshape(BS, 1)

    pe = params["pos_emb"][:S] + params["type_emb"][0][None, :]     # (S, H)
    pe_full = jnp.tile(pe, (B, 1)).astype(jnp.float32)              # (BS, H)

    mask = attention_mask.astype(jnp.float32)                       # (B, S)
    neg = (1.0 - mask) * -10000.0                                   # (B, S)
    neg3 = jnp.broadcast_to(neg[:, None, :], (B, S, S))             # (B, S, S)
    mask_bh = jnp.tile(neg3, (NUM_HEADS, 1, 1))                     # (BH, S, S)

    inputs = (
        ids, pe_full, mask_bh,
        params["word_emb"], params["emb_ln"],
        params["wqkv"], params["wo"], params["w1"], params["w2"],
        params["lbias"],
    )

    out = pl.pallas_call(
        bert_model_kernel,
        out_shape=jax.ShapeDtypeStruct((BS, H), jnp.float32),
        in_specs=[_vmem_spec() for _ in inputs],
        out_specs=_vmem_spec(),
    )(*inputs)

    return out.reshape(B, S, H)  # last_hidden_state: (B, S, H)


if __name__ == "__main__":
    key = jax.random.PRNGKey(0)
    pkey, ikey = jax.random.split(key)

    params = init_params(pkey)

    # "Tokenized" inputs: integer ids + padding mask (second sequence padded).
    input_ids = jax.random.randint(ikey, (B, S), minval=1, maxval=VOCAB,
                                   dtype=jnp.int32)
    attention_mask = jnp.array(
        [[1] * S, [1] * (S - 2) + [0] * 2], dtype=jnp.int32
    )
    input_ids = input_ids * attention_mask  # pad token id 0 where masked

    out = bert_layer_forward(input_ids, attention_mask, params)
    jax.block_until_ready(out)
    assert out.shape == (B, S, H) and out.dtype == jnp.float32
    assert bool(jnp.all(jnp.isfinite(out)))
    print("KERNEL_OK")
</pallas_src>

<mosaic_0001>
module attributes {stable_mosaic.version = 11 : i64} {
  func.func @bert_model_kernel(%arg0: memref<16x1xi32, #tpu.memory_space<vmem>>, %arg1: memref<16x32xf32, #tpu.memory_space<vmem>>, %arg2: memref<8x8x8xf32, #tpu.memory_space<vmem>>, %arg3: memref<50x32xf32, #tpu.memory_space<vmem>>, %arg4: memref<2x32xf32, #tpu.memory_space<vmem>>, %arg5: memref<2x32x96xbf16, #tpu.memory_space<vmem>>, %arg6: memref<2x32x32xbf16, #tpu.memory_space<vmem>>, %arg7: memref<2x32x128xbf16, #tpu.memory_space<vmem>>, %arg8: memref<2x128x32xbf16, #tpu.memory_space<vmem>>, %arg9: memref<2x8x128xf32, #tpu.memory_space<vmem>>, %arg10: memref<16x32xf32, #tpu.memory_space<vmem>>) attributes {dimension_semantics = [], scalar_prefetch = 0 : i64, scratch_operands = 0 : i64, tpu.core_type = #tpu.core_type<tc>} {
    %c0 = arith.constant 0 : index
    %c0_0 = arith.constant 0 : index
    %0 = vector.load %arg0[%c0, %c0_0] : memref<16x1xi32, #tpu.memory_space<vmem>>, vector<16x1xi32>
    %1 = tpu.iota {dimensions = array<i32: 1>} : vector<16x50xi32>
    %2 = vector.broadcast %0 : vector<16x1xi32> to vector<16x50xi32>
    %3 = arith.cmpi eq, %1, %2 : vector<16x50xi32>
    %4 = arith.extui %3 : vector<16x50xi1> to vector<16x50xi32>
    %5 = arith.sitofp %4 : vector<16x50xi32> to vector<16x50xf32>
    %c0_1 = arith.constant 0 : index
    %c0_2 = arith.constant 0 : index
    %6 = vector.load %arg3[%c0_1, %c0_2] : memref<50x32xf32, #tpu.memory_space<vmem>>, vector<50x32xf32>
    %cst = arith.constant dense<0.000000e+00> : vector<16x32xf32>
    %7 = tpu.matmul %5, %6, %cst {dimension_numbers = #tpu.dot_dimension_numbers<[1], [0], [0], [1], [0, 0, 1, 1], [], []>} : vector<16x50xf32>, vector<50x32xf32>, vector<16x32xf32> -> vector<16x32xf32>
    %c0_3 = arith.constant 0 : index
    %c0_4 = arith.constant 0 : index
    %8 = vector.load %arg1[%c0_3, %c0_4] : memref<16x32xf32, #tpu.memory_space<vmem>>, vector<16x32xf32>
    %9 = arith.addf %7, %8 : vector<16x32xf32>
    %c0_5 = arith.constant 0 : index
    %c0_6 = arith.constant 0 : index
    %10 = vector.load %arg4[%c0_5, %c0_6] : memref<2x32xf32, #tpu.memory_space<vmem>>, vector<1x32xf32>
    %c1 = arith.constant 1 : index
    %c0_7 = arith.constant 0 : index
    %11 = vector.load %arg4[%c1, %c0_7] : memref<2x32xf32, #tpu.memory_space<vmem>>, vector<1x32xf32>
    %cst_8 = arith.constant dense<0.000000e+00> : vector<16xf32>
    %12 = vector.multi_reduction <add>, %9, %cst_8 [1] : vector<16x32xf32> to vector<16xf32>
    %13 = vector.shape_cast %12 : vector<16xf32> to vector<16x1xf32>
    %cst_9 = arith.constant 3.200000e+01 : f32
    %14 = vector.broadcast %cst_9 : f32 to vector<16x1xf32>
    %15 = arith.divf %13, %14 : vector<16x1xf32>
    %16 = vector.broadcast %15 : vector<16x1xf32> to vector<16x32xf32>
    %17 = arith.subf %9, %16 : vector<16x32xf32>
    %18 = vector.broadcast %15 : vector<16x1xf32> to vector<16x32xf32>
    %19 = arith.subf %9, %18 : vector<16x32xf32>
    %20 = arith.mulf %17, %19 : vector<16x32xf32>
    %cst_10 = arith.constant dense<0.000000e+00> : vector<16xf32>
    %21 = vector.multi_reduction <add>, %20, %cst_10 [1] : vector<16x32xf32> to vector<16xf32>
    %22 = vector.shape_cast %21 : vector<16xf32> to vector<16x1xf32>
    %cst_11 = arith.constant 3.200000e+01 : f32
    %23 = vector.broadcast %cst_11 : f32 to vector<16x1xf32>
    %24 = arith.divf %22, %23 : vector<16x1xf32>
    %25 = vector.broadcast %15 : vector<16x1xf32> to vector<16x32xf32>
    %26 = arith.subf %9, %25 : vector<16x32xf32>
    %cst_12 = arith.constant 9.99999996E-13 : f32
    %27 = vector.broadcast %cst_12 : f32 to vector<16x1xf32>
    %28 = arith.addf %24, %27 : vector<16x1xf32>
    %29 = math.rsqrt %28 : vector<16x1xf32>
    %30 = vector.broadcast %29 : vector<16x1xf32> to vector<16x32xf32>
    %31 = arith.mulf %26, %30 : vector<16x32xf32>
    %32 = vector.broadcast %10 : vector<1x32xf32> to vector<16x32xf32>
    %33 = arith.mulf %31, %32 : vector<16x32xf32>
    %34 = vector.broadcast %11 : vector<1x32xf32> to vector<16x32xf32>
    %35 = arith.addf %33, %34 : vector<16x32xf32>
    %c0_13 = arith.constant 0 : index
    %c0_14 = arith.constant 0 : index
    %c0_15 = arith.constant 0 : index
    %36 = vector.load %arg2[%c0_13, %c0_14, %c0_15] : memref<8x8x8xf32, #tpu.memory_space<vmem>>, vector<8x8x8xf32>
    %c0_16 = arith.constant 0 : index
    %c0_17 = arith.constant 0 : index
    %c0_18 = arith.constant 0 : index
    %37 = vector.load %arg9[%c0_16, %c0_17, %c0_18] : memref<2x8x128xf32, #tpu.memory_space<vmem>>, vector<1x8x128xf32>
    %38 = vector.shape_cast %37 : vector<1x8x128xf32> to vector<8x128xf32>
    %39 = vector.extract_strided_slice %38 {offsets = [0, 0], sizes = [1, 96], strides = [1, 1]} : vector<8x128xf32> to vector<1x96xf32>
    %40 = vector.extract_strided_slice %38 {offsets = [1, 0], sizes = [1, 128], strides = [1, 1]} : vector<8x128xf32> to vector<1x128xf32>
    %41 = vector.extract_strided_slice %38 {offsets = [2, 0], sizes = [1, 32], strides = [1, 1]} : vector<8x128xf32> to vector<1x32xf32>
    %42 = vector.extract_strided_slice %38 {offsets = [3, 0], sizes = [1, 32], strides = [1, 1]} : vector<8x128xf32> to vector<1x32xf32>
    %43 = vector.extract_strided_slice %38 {offsets = [4, 0], sizes = [1, 32], strides = [1, 1]} : vector<8x128xf32> to vector<1x32xf32>
    %44 = vector.extract_strided_slice %38 {offsets = [5, 0], sizes = [1, 32], strides = [1, 1]} : vector<8x128xf32> to vector<1x32xf32>
    %45 = vector.extract_strided_slice %38 {offsets = [6, 0], sizes = [1, 32], strides = [1, 1]} : vector<8x128xf32> to vector<1x32xf32>
    %46 = vector.extract_strided_slice %38 {offsets = [7, 0], sizes = [1, 32], strides = [1, 1]} : vector<8x128xf32> to vector<1x32xf32>
    %47 = arith.truncf %35 : vector<16x32xf32> to vector<16x32xbf16>
    %c0_19 = arith.constant 0 : index
    %c0_20 = arith.constant 0 : index
    %c0_21 = arith.constant 0 : index
    %48 = vector.load %arg5[%c0_19, %c0_20, %c0_21] : memref<2x32x96xbf16, #tpu.memory_space<vmem>>, vector<1x32x96xbf16>
    %49 = vector.shape_cast %48 : vector<1x32x96xbf16> to vector<32x96xbf16>
    %cst_22 = arith.constant dense<0.000000e+00> : vector<16x96xf32>
    %50 = tpu.matmul %47, %49, %cst_22 {dimension_numbers = #tpu.dot_dimension_numbers<[1], [0], [0], [1], [0, 0, 1, 1], [], []>} : vector<16x32xbf16>, vector<32x96xbf16>, vector<16x96xf32> -> vector<16x96xf32>
    %51 = vector.broadcast %39 : vector<1x96xf32> to vector<16x96xf32>
    %52 = arith.addf %50, %51 : vector<16x96xf32>
    %53 = arith.truncf %52 : vector<16x96xf32> to vector<16x96xbf16>
    %54 = vector.extract_strided_slice %53 {offsets = [0, 0], sizes = [16, 8], strides = [1, 1]} : vector<16x96xbf16> to vector<16x8xbf16>
    %55 = vector.shape_cast %54 : vector<16x8xbf16> to vector<2x8x8xbf16>
    %56 = vector.extract_strided_slice %53 {offsets = [0, 8], sizes = [16, 8], strides = [1, 1]} : vector<16x96xbf16> to vector<16x8xbf16>
    %57 = vector.shape_cast %56 : vector<16x8xbf16> to vector<2x8x8xbf16>
    %58 = vector.extract_strided_slice %53 {offsets = [0, 16], sizes = [16, 8], strides = [1, 1]} : vector<16x96xbf16> to vector<16x8xbf16>
    %59 = vector.shape_cast %58 : vector<16x8xbf16> to vector<2x8x8xbf16>
    %60 = vector.extract_strided_slice %53 {offsets = [0, 24], sizes = [16, 8], strides = [1, 1]} : vector<16x96xbf16> to vector<16x8xbf16>
    %61 = vector.shape_cast %60 : vector<16x8xbf16> to vector<2x8x8xbf16>
    %62 = tpu.concatenate %55, %57, %59, %61 in 0 : vector<2x8x8xbf16>, vector<2x8x8xbf16>, vector<2x8x8xbf16>, vector<2x8x8xbf16> -> vector<8x8x8xbf16>
    %63 = vector.extract_strided_slice %53 {offsets = [0, 32], sizes = [16, 8], strides = [1, 1]} : vector<16x96xbf16> to vector<16x8xbf16>
    %64 = vector.shape_cast %63 : vector<16x8xbf16> to vector<2x8x8xbf16>
    %65 = vector.extract_strided_slice %53 {offsets = [0, 40], sizes = [16, 8], strides = [1, 1]} : vector<16x96xbf16> to vector<16x8xbf16>
    %66 = vector.shape_cast %65 : vector<16x8xbf16> to vector<2x8x8xbf16>
    %67 = vector.extract_strided_slice %53 {offsets = [0, 48], sizes = [16, 8], strides = [1, 1]} : vector<16x96xbf16> to vector<16x8xbf16>
    %68 = vector.shape_cast %67 : vector<16x8xbf16> to vector<2x8x8xbf16>
    %69 = vector.extract_strided_slice %53 {offsets = [0, 56], sizes = [16, 8], strides = [1, 1]} : vector<16x96xbf16> to vector<16x8xbf16>
    %70 = vector.shape_cast %69 : vector<16x8xbf16> to vector<2x8x8xbf16>
    %71 = tpu.concatenate %64, %66, %68, %70 in 0 : vector<2x8x8xbf16>, vector<2x8x8xbf16>, vector<2x8x8xbf16>, vector<2x8x8xbf16> -> vector<8x8x8xbf16>
    %72 = vector.extract_strided_slice %53 {offsets = [0, 64], sizes = [16, 8], strides = [1, 1]} : vector<16x96xbf16> to vector<16x8xbf16>
    %73 = vector.shape_cast %72 : vector<16x8xbf16> to vector<2x8x8xbf16>
    %74 = vector.extract_strided_slice %53 {offsets = [0, 72], sizes = [16, 8], strides = [1, 1]} : vector<16x96xbf16> to vector<16x8xbf16>
    %75 = vector.shape_cast %74 : vector<16x8xbf16> to vector<2x8x8xbf16>
    %76 = vector.extract_strided_slice %53 {offsets = [0, 80], sizes = [16, 8], strides = [1, 1]} : vector<16x96xbf16> to vector<16x8xbf16>
    %77 = vector.shape_cast %76 : vector<16x8xbf16> to vector<2x8x8xbf16>
    %78 = vector.extract_strided_slice %53 {offsets = [0, 88], sizes = [16, 8], strides = [1, 1]} : vector<16x96xbf16> to vector<16x8xbf16>
    %79 = vector.shape_cast %78 : vector<16x8xbf16> to vector<2x8x8xbf16>
    %80 = tpu.concatenate %73, %75, %77, %79 in 0 : vector<2x8x8xbf16>, vector<2x8x8xbf16>, vector<2x8x8xbf16>, vector<2x8x8xbf16> -> vector<8x8x8xbf16>
    "tpu.trace_start"() <{level = 10 : i32, message = "bqd,bkd->bqk"}> : () -> ()
    %cst_23 = arith.constant dense<0.000000e+00> : vector<8x8x8xf32>
    %81 = tpu.matmul %62, %71, %cst_23 {dimension_numbers = #tpu.dot_dimension_numbers<[2], [2], [1], [1], [0, 0, 0, 1, 1, 1], [0], [0]>} : vector<8x8x8xbf16>, vector<8x8x8xbf16>, vector<8x8x8xf32> -> vector<8x8x8xf32>
    "tpu.trace_stop"() : () -> ()
    %82 = arith.addf %81, %36 : vector<8x8x8xf32>
    %cst_24 = arith.constant dense<0xFF800000> : vector<8x8xf32>
    %83 = vector.multi_reduction <maximumf>, %82, %cst_24 [2] : vector<8x8x8xf32> to vector<8x8xf32>
    %84 = vector.shape_cast %83 : vector<8x8xf32> to vector<8x8x1xf32>
    %85 = vector.broadcast %84 : vector<8x8x1xf32> to vector<8x8x8xf32>
    %86 = arith.subf %82, %85 : vector<8x8x8xf32>
    %87 = math.exp %86 : vector<8x8x8xf32>
    %cst_25 = arith.constant dense<0.000000e+00> : vector<8x8xf32>
    %88 = vector.multi_reduction <add>, %87, %cst_25 [2] : vector<8x8x8xf32> to vector<8x8xf32>
    %89 = vector.shape_cast %88 : vector<8x8xf32> to vector<8x8x1xf32>
    %90 = tpu.reciprocal %89 {approx = true} : vector<8x8x1xf32> -> vector<8x8x1xf32>
    %91 = vector.broadcast %90 : vector<8x8x1xf32> to vector<8x8x8xf32>
    %92 = arith.mulf %87, %91 : vector<8x8x8xf32>
    %93 = arith.truncf %92 : vector<8x8x8xf32> to vector<8x8x8xbf16>
    "tpu.trace_start"() <{level = 10 : i32, message = "bqk,bkd->bqd"}> : () -> ()
    %cst_26 = arith.constant dense<0.000000e+00> : vector<8x8x8xf32>
    %94 = tpu.matmul %93, %80, %cst_26 {dimension_numbers = #tpu.dot_dimension_numbers<[2], [1], [1], [2], [0, 0, 0, 1, 1, 2], [0], [0]>} : vector<8x8x8xbf16>, vector<8x8x8xbf16>, vector<8x8x8xf32> -> vector<8x8x8xf32>
    "tpu.trace_stop"() : () -> ()
    %95 = vector.extract_strided_slice %94 {offsets = [0, 0, 0], sizes = [2, 8, 8], strides = [1, 1, 1]} : vector<8x8x8xf32> to vector<2x8x8xf32>
    %96 = vector.shape_cast %95 : vector<2x8x8xf32> to vector<16x8xf32>
    %97 = vector.extract_strided_slice %94 {offsets = [2, 0, 0], sizes = [2, 8, 8], strides = [1, 1, 1]} : vector<8x8x8xf32> to vector<2x8x8xf32>
    %98 = vector.shape_cast %97 : vector<2x8x8xf32> to vector<16x8xf32>
    %99 = vector.extract_strided_slice %94 {offsets = [4, 0, 0], sizes = [2, 8, 8], strides = [1, 1, 1]} : vector<8x8x8xf32> to vector<2x8x8xf32>
    %100 = vector.shape_cast %99 : vector<2x8x8xf32> to vector<16x8xf32>
    %101 = vector.extract_strided_slice %94 {offsets = [6, 0, 0], sizes = [2, 8, 8], strides = [1, 1, 1]} : vector<8x8x8xf32> to vector<2x8x8xf32>
    %102 = vector.shape_cast %101 : vector<2x8x8xf32> to vector<16x8xf32>
    %103 = tpu.concatenate %96, %98, %100, %102 in 1 : vector<16x8xf32>, vector<16x8xf32>, vector<16x8xf32>, vector<16x8xf32> -> vector<16x32xf32>
    %104 = arith.truncf %103 : vector<16x32xf32> to vector<16x32xbf16>
    %c0_27 = arith.constant 0 : index
    %c0_28 = arith.constant 0 : index
    %c0_29 = arith.constant 0 : index
    %105 = vector.load %arg6[%c0_27, %c0_28, %c0_29] : memref<2x32x32xbf16, #tpu.memory_space<vmem>>, vector<1x32x32xbf16>
    %106 = vector.shape_cast %105 : vector<1x32x32xbf16> to vector<32x32xbf16>
    %cst_30 = arith.constant dense<0.000000e+00> : vector<16x32xf32>
    %107 = tpu.matmul %104, %106, %cst_30 {dimension_numbers = #tpu.dot_dimension_numbers<[1], [0], [0], [1], [0, 0, 1, 1], [], []>} : vector<16x32xbf16>, vector<32x32xbf16>, vector<16x32xf32> -> vector<16x32xf32>
    %108 = vector.broadcast %41 : vector<1x32xf32> to vector<16x32xf32>
    %109 = arith.addf %107, %108 : vector<16x32xf32>
    %110 = arith.addf %35, %109 : vector<16x32xf32>
    %cst_31 = arith.constant dense<0.000000e+00> : vector<16xf32>
    %111 = vector.multi_reduction <add>, %110, %cst_31 [1] : vector<16x32xf32> to vector<16xf32>
    %112 = vector.shape_cast %111 : vector<16xf32> to vector<16x1xf32>
    %cst_32 = arith.constant 3.200000e+01 : f32
    %113 = vector.broadcast %cst_32 : f32 to vector<16x1xf32>
    %114 = arith.divf %112, %113 : vector<16x1xf32>
    %115 = vector.broadcast %114 : vector<16x1xf32> to vector<16x32xf32>
    %116 = arith.subf %110, %115 : vector<16x32xf32>
    %117 = vector.broadcast %114 : vector<16x1xf32> to vector<16x32xf32>
    %118 = arith.subf %110, %117 : vector<16x32xf32>
    %119 = arith.mulf %116, %118 : vector<16x32xf32>
    %cst_33 = arith.constant dense<0.000000e+00> : vector<16xf32>
    %120 = vector.multi_reduction <add>, %119, %cst_33 [1] : vector<16x32xf32> to vector<16xf32>
    %121 = vector.shape_cast %120 : vector<16xf32> to vector<16x1xf32>
    %cst_34 = arith.constant 3.200000e+01 : f32
    %122 = vector.broadcast %cst_34 : f32 to vector<16x1xf32>
    %123 = arith.divf %121, %122 : vector<16x1xf32>
    %124 = vector.broadcast %114 : vector<16x1xf32> to vector<16x32xf32>
    %125 = arith.subf %110, %124 : vector<16x32xf32>
    %cst_35 = arith.constant 9.99999996E-13 : f32
    %126 = vector.broadcast %cst_35 : f32 to vector<16x1xf32>
    %127 = arith.addf %123, %126 : vector<16x1xf32>
    %128 = math.rsqrt %127 : vector<16x1xf32>
    %129 = vector.broadcast %128 : vector<16x1xf32> to vector<16x32xf32>
    %130 = arith.mulf %125, %129 : vector<16x32xf32>
    %131 = vector.broadcast %42 : vector<1x32xf32> to vector<16x32xf32>
    %132 = arith.mulf %130, %131 : vector<16x32xf32>
    %133 = vector.broadcast %43 : vector<1x32xf32> to vector<16x32xf32>
    %134 = arith.addf %132, %133 : vector<16x32xf32>
    %135 = arith.truncf %134 : vector<16x32xf32> to vector<16x32xbf16>
    %c0_36 = arith.constant 0 : index
    %c0_37 = arith.constant 0 : index
    %c0_38 = arith.constant 0 : index
    %136 = vector.load %arg7[%c0_36, %c0_37, %c0_38] : memref<2x32x128xbf16, #tpu.memory_space<vmem>>, vector<1x32x128xbf16>
    %137 = vector.shape_cast %136 : vector<1x32x128xbf16> to vector<32x128xbf16>
    %cst_39 = arith.constant dense<0.000000e+00> : vector<16x128xf32>
    %138 = tpu.matmul %135, %137, %cst_39 {dimension_numbers = #tpu.dot_dimension_numbers<[1], [0], [0], [1], [0, 0, 1, 1], [], []>} : vector<16x32xbf16>, vector<32x128xbf16>, vector<16x128xf32> -> vector<16x128xf32>
    %139 = vector.broadcast %40 : vector<1x128xf32> to vector<16x128xf32>
    %140 = arith.addf %138, %139 : vector<16x128xf32>
    %cst_40 = arith.constant 5.000000e-01 : f32
    %141 = vector.broadcast %cst_40 : f32 to vector<16x128xf32>
    %142 = arith.mulf %141, %140 : vector<16x128xf32>
    %cst_41 = arith.constant 4.471500e-02 : f32
    %143 = vector.broadcast %cst_41 : f32 to vector<16x128xf32>
    %144 = arith.mulf %143, %140 : vector<16x128xf32>
    %145 = arith.mulf %144, %140 : vector<16x128xf32>
    %146 = arith.mulf %145, %140 : vector<16x128xf32>
    %147 = arith.addf %140, %146 : vector<16x128xf32>
    %cst_42 = arith.constant 0.797884583 : f32
    %148 = vector.broadcast %cst_42 : f32 to vector<16x128xf32>
    %149 = arith.mulf %148, %147 : vector<16x128xf32>
    %150 = math.tanh %149 : vector<16x128xf32>
    %cst_43 = arith.constant 1.000000e+00 : f32
    %151 = vector.broadcast %cst_43 : f32 to vector<16x128xf32>
    %152 = arith.addf %151, %150 : vector<16x128xf32>
    %153 = arith.mulf %142, %152 : vector<16x128xf32>
    %154 = arith.truncf %153 : vector<16x128xf32> to vector<16x128xbf16>
    %c0_44 = arith.constant 0 : index
    %c0_45 = arith.constant 0 : index
    %c0_46 = arith.constant 0 : index
    %155 = vector.load %arg8[%c0_44, %c0_45, %c0_46] : memref<2x128x32xbf16, #tpu.memory_space<vmem>>, vector<1x128x32xbf16>
    %156 = vector.shape_cast %155 : vector<1x128x32xbf16> to vector<128x32xbf16>
    %cst_47 = arith.constant dense<0.000000e+00> : vector<16x32xf32>
    %157 = tpu.matmul %154, %156, %cst_47 {dimension_numbers = #tpu.dot_dimension_numbers<[1], [0], [0], [1], [0, 0, 1, 1], [], []>} : vector<16x128xbf16>, vector<128x32xbf16>, vector<16x32xf32> -> vector<16x32xf32>
    %158 = vector.broadcast %44 : vector<1x32xf32> to vector<16x32xf32>
    %159 = arith.addf %157, %158 : vector<16x32xf32>
    %160 = arith.addf %134, %159 : vector<16x32xf32>
    %cst_48 = arith.constant dense<0.000000e+00> : vector<16xf32>
    %161 = vector.multi_reduction <add>, %160, %cst_48 [1] : vector<16x32xf32> to vector<16xf32>
    %162 = vector.shape_cast %161 : vector<16xf32> to vector<16x1xf32>
    %cst_49 = arith.constant 3.200000e+01 : f32
    %163 = vector.broadcast %cst_49 : f32 to vector<16x1xf32>
    %164 = arith.divf %162, %163 : vector<16x1xf32>
    %165 = vector.broadcast %164 : vector<16x1xf32> to vector<16x32xf32>
    %166 = arith.subf %160, %165 : vector<16x32xf32>
    %167 = vector.broadcast %164 : vector<16x1xf32> to vector<16x32xf32>
    %168 = arith.subf %160, %167 : vector<16x32xf32>
    %169 = arith.mulf %166, %168 : vector<16x32xf32>
    %cst_50 = arith.constant dense<0.000000e+00> : vector<16xf32>
    %170 = vector.multi_reduction <add>, %169, %cst_50 [1] : vector<16x32xf32> to vector<16xf32>
    %171 = vector.shape_cast %170 : vector<16xf32> to vector<16x1xf32>
    %cst_51 = arith.constant 3.200000e+01 : f32
    %172 = vector.broadcast %cst_51 : f32 to vector<16x1xf32>
    %173 = arith.divf %171, %172 : vector<16x1xf32>
    %174 = vector.broadcast %164 : vector<16x1xf32> to vector<16x32xf32>
    %175 = arith.subf %160, %174 : vector<16x32xf32>
    %cst_52 = arith.constant 9.99999996E-13 : f32
    %176 = vector.broadcast %cst_52 : f32 to vector<16x1xf32>
    %177 = arith.addf %173, %176 : vector<16x1xf32>
    %178 = math.rsqrt %177 : vector<16x1xf32>
    %179 = vector.broadcast %178 : vector<16x1xf32> to vector<16x32xf32>
    %180 = arith.mulf %175, %179 : vector<16x32xf32>
    %181 = vector.broadcast %45 : vector<1x32xf32> to vector<16x32xf32>
    %182 = arith.mulf %180, %181 : vector<16x32xf32>
    %183 = vector.broadcast %46 : vector<1x32xf32> to vector<16x32xf32>
    %184 = arith.addf %182, %183 : vector<16x32xf32>
    %c1_53 = arith.constant 1 : index
    %c0_54 = arith.constant 0 : index
    %c0_55 = arith.constant 0 : index
    %185 = vector.load %arg9[%c1_53, %c0_54, %c0_55] : memref<2x8x128xf32, #tpu.memory_space<vmem>>, vector<1x8x128xf32>
    %186 = vector.shape_cast %185 : vector<1x8x128xf32> to vector<8x128xf32>
    %187 = vector.extract_strided_slice %186 {offsets = [0, 0], sizes = [1, 96], strides = [1, 1]} : vector<8x128xf32> to vector<1x96xf32>
    %188 = vector.extract_strided_slice %186 {offsets = [1, 0], sizes = [1, 128], strides = [1, 1]} : vector<8x128xf32> to vector<1x128xf32>
    %189 = vector.extract_strided_slice %186 {offsets = [2, 0], sizes = [1, 32], strides = [1, 1]} : vector<8x128xf32> to vector<1x32xf32>
    %190 = vector.extract_strided_slice %186 {offsets = [3, 0], sizes = [1, 32], strides = [1, 1]} : vector<8x128xf32> to vector<1x32xf32>
    %191 = vector.extract_strided_slice %186 {offsets = [4, 0], sizes = [1, 32], strides = [1, 1]} : vector<8x128xf32> to vector<1x32xf32>
    %192 = vector.extract_strided_slice %186 {offsets = [5, 0], sizes = [1, 32], strides = [1, 1]} : vector<8x128xf32> to vector<1x32xf32>
    %193 = vector.extract_strided_slice %186 {offsets = [6, 0], sizes = [1, 32], strides = [1, 1]} : vector<8x128xf32> to vector<1x32xf32>
    %194 = vector.extract_strided_slice %186 {offsets = [7, 0], sizes = [1, 32], strides = [1, 1]} : vector<8x128xf32> to vector<1x32xf32>
    %195 = arith.truncf %184 : vector<16x32xf32> to vector<16x32xbf16>
    %c1_56 = arith.constant 1 : index
    %c0_57 = arith.constant 0 : index
    %c0_58 = arith.constant 0 : index
    %196 = vector.load %arg5[%c1_56, %c0_57, %c0_58] : memref<2x32x96xbf16, #tpu.memory_space<vmem>>, vector<1x32x96xbf16>
    %197 = vector.shape_cast %196 : vector<1x32x96xbf16> to vector<32x96xbf16>
    %cst_59 = arith.constant dense<0.000000e+00> : vector<16x96xf32>
    %198 = tpu.matmul %195, %197, %cst_59 {dimension_numbers = #tpu.dot_dimension_numbers<[1], [0], [0], [1], [0, 0, 1, 1], [], []>} : vector<16x32xbf16>, vector<32x96xbf16>, vector<16x96xf32> -> vector<16x96xf32>
    %199 = vector.broadcast %187 : vector<1x96xf32> to vector<16x96xf32>
    %200 = arith.addf %198, %199 : vector<16x96xf32>
    %201 = arith.truncf %200 : vector<16x96xf32> to vector<16x96xbf16>
    %202 = vector.extract_strided_slice %201 {offsets = [0, 0], sizes = [16, 8], strides = [1, 1]} : vector<16x96xbf16> to vector<16x8xbf16>
    %203 = vector.shape_cast %202 : vector<16x8xbf16> to vector<2x8x8xbf16>
    %204 = vector.extract_strided_slice %201 {offsets = [0, 8], sizes = [16, 8], strides = [1, 1]} : vector<16x96xbf16> to vector<16x8xbf16>
    %205 = vector.shape_cast %204 : vector<16x8xbf16> to vector<2x8x8xbf16>
    %206 = vector.extract_strided_slice %201 {offsets = [0, 16], sizes = [16, 8], strides = [1, 1]} : vector<16x96xbf16> to vector<16x8xbf16>
    %207 = vector.shape_cast %206 : vector<16x8xbf16> to vector<2x8x8xbf16>
    %208 = vector.extract_strided_slice %201 {offsets = [0, 24], sizes = [16, 8], strides = [1, 1]} : vector<16x96xbf16> to vector<16x8xbf16>
    %209 = vector.shape_cast %208 : vector<16x8xbf16> to vector<2x8x8xbf16>
    %210 = tpu.concatenate %203, %205, %207, %209 in 0 : vector<2x8x8xbf16>, vector<2x8x8xbf16>, vector<2x8x8xbf16>, vector<2x8x8xbf16> -> vector<8x8x8xbf16>
    %211 = vector.extract_strided_slice %201 {offsets = [0, 32], sizes = [16, 8], strides = [1, 1]} : vector<16x96xbf16> to vector<16x8xbf16>
    %212 = vector.shape_cast %211 : vector<16x8xbf16> to vector<2x8x8xbf16>
    %213 = vector.extract_strided_slice %201 {offsets = [0, 40], sizes = [16, 8], strides = [1, 1]} : vector<16x96xbf16> to vector<16x8xbf16>
    %214 = vector.shape_cast %213 : vector<16x8xbf16> to vector<2x8x8xbf16>
    %215 = vector.extract_strided_slice %201 {offsets = [0, 48], sizes = [16, 8], strides = [1, 1]} : vector<16x96xbf16> to vector<16x8xbf16>
    %216 = vector.shape_cast %215 : vector<16x8xbf16> to vector<2x8x8xbf16>
    %217 = vector.extract_strided_slice %201 {offsets = [0, 56], sizes = [16, 8], strides = [1, 1]} : vector<16x96xbf16> to vector<16x8xbf16>
    %218 = vector.shape_cast %217 : vector<16x8xbf16> to vector<2x8x8xbf16>
    %219 = tpu.concatenate %212, %214, %216, %218 in 0 : vector<2x8x8xbf16>, vector<2x8x8xbf16>, vector<2x8x8xbf16>, vector<2x8x8xbf16> -> vector<8x8x8xbf16>
    %220 = vector.extract_strided_slice %201 {offsets = [0, 64], sizes = [16, 8], strides = [1, 1]} : vector<16x96xbf16> to vector<16x8xbf16>
    %221 = vector.shape_cast %220 : vector<16x8xbf16> to vector<2x8x8xbf16>
    %222 = vector.extract_strided_slice %201 {offsets = [0, 72], sizes = [16, 8], strides = [1, 1]} : vector<16x96xbf16> to vector<16x8xbf16>
    %223 = vector.shape_cast %222 : vector<16x8xbf16> to vector<2x8x8xbf16>
    %224 = vector.extract_strided_slice %201 {offsets = [0, 80], sizes = [16, 8], strides = [1, 1]} : vector<16x96xbf16> to vector<16x8xbf16>
    %225 = vector.shape_cast %224 : vector<16x8xbf16> to vector<2x8x8xbf16>
    %226 = vector.extract_strided_slice %201 {offsets = [0, 88], sizes = [16, 8], strides = [1, 1]} : vector<16x96xbf16> to vector<16x8xbf16>
    %227 = vector.shape_cast %226 : vector<16x8xbf16> to vector<2x8x8xbf16>
    %228 = tpu.concatenate %221, %223, %225, %227 in 0 : vector<2x8x8xbf16>, vector<2x8x8xbf16>, vector<2x8x8xbf16>, vector<2x8x8xbf16> -> vector<8x8x8xbf16>
    "tpu.trace_start"() <{level = 10 : i32, message = "bqd,bkd->bqk"}> : () -> ()
    %cst_60 = arith.constant dense<0.000000e+00> : vector<8x8x8xf32>
    %229 = tpu.matmul %210, %219, %cst_60 {dimension_numbers = #tpu.dot_dimension_numbers<[2], [2], [1], [1], [0, 0, 0, 1, 1, 1], [0], [0]>} : vector<8x8x8xbf16>, vector<8x8x8xbf16>, vector<8x8x8xf32> -> vector<8x8x8xf32>
    "tpu.trace_stop"() : () -> ()
    %230 = arith.addf %229, %36 : vector<8x8x8xf32>
    %cst_61 = arith.constant dense<0xFF800000> : vector<8x8xf32>
    %231 = vector.multi_reduction <maximumf>, %230, %cst_61 [2] : vector<8x8x8xf32> to vector<8x8xf32>
    %232 = vector.shape_cast %231 : vector<8x8xf32> to vector<8x8x1xf32>
    %233 = vector.broadcast %232 : vector<8x8x1xf32> to vector<8x8x8xf32>
    %234 = arith.subf %230, %233 : vector<8x8x8xf32>
    %235 = math.exp %234 : vector<8x8x8xf32>
    %cst_62 = arith.constant dense<0.000000e+00> : vector<8x8xf32>
    %236 = vector.multi_reduction <add>, %235, %cst_62 [2] : vector<8x8x8xf32> to vector<8x8xf32>
    %237 = vector.shape_cast %236 : vector<8x8xf32> to vector<8x8x1xf32>
    %238 = tpu.reciprocal %237 {approx = true} : vector<8x8x1xf32> -> vector<8x8x1xf32>
    %239 = vector.broadcast %238 : vector<8x8x1xf32> to vector<8x8x8xf32>
    %240 = arith.mulf %235, %239 : vector<8x8x8xf32>
    %241 = arith.truncf %240 : vector<8x8x8xf32> to vector<8x8x8xbf16>
    "tpu.trace_start"() <{level = 10 : i32, message = "bqk,bkd->bqd"}> : () -> ()
    %cst_63 = arith.constant dense<0.000000e+00> : vector<8x8x8xf32>
    %242 = tpu.matmul %241, %228, %cst_63 {dimension_numbers = #tpu.dot_dimension_numbers<[2], [1], [1], [2], [0, 0, 0, 1, 1, 2], [0], [0]>} : vector<8x8x8xbf16>, vector<8x8x8xbf16>, vector<8x8x8xf32> -> vector<8x8x8xf32>
    "tpu.trace_stop"() : () -> ()
    %243 = vector.extract_strided_slice %242 {offsets = [0, 0, 0], sizes = [2, 8, 8], strides = [1, 1, 1]} : vector<8x8x8xf32> to vector<2x8x8xf32>
    %244 = vector.shape_cast %243 : vector<2x8x8xf32> to vector<16x8xf32>
    %245 = vector.extract_strided_slice %242 {offsets = [2, 0, 0], sizes = [2, 8, 8], strides = [1, 1, 1]} : vector<8x8x8xf32> to vector<2x8x8xf32>
    %246 = vector.shape_cast %245 : vector<2x8x8xf32> to vector<16x8xf32>
    %247 = vector.extract_strided_slice %242 {offsets = [4, 0, 0], sizes = [2, 8, 8], strides = [1, 1, 1]} : vector<8x8x8xf32> to vector<2x8x8xf32>
    %248 = vector.shape_cast %247 : vector<2x8x8xf32> to vector<16x8xf32>
    %249 = vector.extract_strided_slice %242 {offsets = [6, 0, 0], sizes = [2, 8, 8], strides = [1, 1, 1]} : vector<8x8x8xf32> to vector<2x8x8xf32>
    %250 = vector.shape_cast %249 : vector<2x8x8xf32> to vector<16x8xf32>
    %251 = tpu.concatenate %244, %246, %248, %250 in 1 : vector<16x8xf32>, vector<16x8xf32>, vector<16x8xf32>, vector<16x8xf32> -> vector<16x32xf32>
    %252 = arith.truncf %251 : vector<16x32xf32> to vector<16x32xbf16>
    %c1_64 = arith.constant 1 : index
    %c0_65 = arith.constant 0 : index
    %c0_66 = arith.constant 0 : index
    %253 = vector.load %arg6[%c1_64, %c0_65, %c0_66] : memref<2x32x32xbf16, #tpu.memory_space<vmem>>, vector<1x32x32xbf16>
    %254 = vector.shape_cast %253 : vector<1x32x32xbf16> to vector<32x32xbf16>
    %cst_67 = arith.constant dense<0.000000e+00> : vector<16x32xf32>
    %255 = tpu.matmul %252, %254, %cst_67 {dimension_numbers = #tpu.dot_dimension_numbers<[1], [0], [0], [1], [0, 0, 1, 1], [], []>} : vector<16x32xbf16>, vector<32x32xbf16>, vector<16x32xf32> -> vector<16x32xf32>
    %256 = vector.broadcast %189 : vector<1x32xf32> to vector<16x32xf32>
    %257 = arith.addf %255, %256 : vector<16x32xf32>
    %258 = arith.addf %184, %257 : vector<16x32xf32>
    %cst_68 = arith.constant dense<0.000000e+00> : vector<16xf32>
    %259 = vector.multi_reduction <add>, %258, %cst_68 [1] : vector<16x32xf32> to vector<16xf32>
    %260 = vector.shape_cast %259 : vector<16xf32> to vector<16x1xf32>
    %cst_69 = arith.constant 3.200000e+01 : f32
    %261 = vector.broadcast %cst_69 : f32 to vector<16x1xf32>
    %262 = arith.divf %260, %261 : vector<16x1xf32>
    %263 = vector.broadcast %262 : vector<16x1xf32> to vector<16x32xf32>
    %264 = arith.subf %258, %263 : vector<16x32xf32>
    %265 = vector.broadcast %262 : vector<16x1xf32> to vector<16x32xf32>
    %266 = arith.subf %258, %265 : vector<16x32xf32>
    %267 = arith.mulf %264, %266 : vector<16x32xf32>
    %cst_70 = arith.constant dense<0.000000e+00> : vector<16xf32>
    %268 = vector.multi_reduction <add>, %267, %cst_70 [1] : vector<16x32xf32> to vector<16xf32>
    %269 = vector.shape_cast %268 : vector<16xf32> to vector<16x1xf32>
    %cst_71 = arith.constant 3.200000e+01 : f32
    %270 = vector.broadcast %cst_71 : f32 to vector<16x1xf32>
    %271 = arith.divf %269, %270 : vector<16x1xf32>
    %272 = vector.broadcast %262 : vector<16x1xf32> to vector<16x32xf32>
    %273 = arith.subf %258, %272 : vector<16x32xf32>
    %cst_72 = arith.constant 9.99999996E-13 : f32
    %274 = vector.broadcast %cst_72 : f32 to vector<16x1xf32>
    %275 = arith.addf %271, %274 : vector<16x1xf32>
    %276 = math.rsqrt %275 : vector<16x1xf32>
    %277 = vector.broadcast %276 : vector<16x1xf32> to vector<16x32xf32>
    %278 = arith.mulf %273, %277 : vector<16x32xf32>
    %279 = vector.broadcast %190 : vector<1x32xf32> to vector<16x32xf32>
    %280 = arith.mulf %278, %279 : vector<16x32xf32>
    %281 = vector.broadcast %191 : vector<1x32xf32> to vector<16x32xf32>
    %282 = arith.addf %280, %281 : vector<16x32xf32>
    %283 = arith.truncf %282 : vector<16x32xf32> to vector<16x32xbf16>
    %c1_73 = arith.constant 1 : index
    %c0_74 = arith.constant 0 : index
    %c0_75 = arith.constant 0 : index
    %284 = vector.load %arg7[%c1_73, %c0_74, %c0_75] : memref<2x32x128xbf16, #tpu.memory_space<vmem>>, vector<1x32x128xbf16>
    %285 = vector.shape_cast %284 : vector<1x32x128xbf16> to vector<32x128xbf16>
    %cst_76 = arith.constant dense<0.000000e+00> : vector<16x128xf32>
    %286 = tpu.matmul %283, %285, %cst_76 {dimension_numbers = #tpu.dot_dimension_numbers<[1], [0], [0], [1], [0, 0, 1, 1], [], []>} : vector<16x32xbf16>, vector<32x128xbf16>, vector<16x128xf32> -> vector<16x128xf32>
    %287 = vector.broadcast %188 : vector<1x128xf32> to vector<16x128xf32>
    %288 = arith.addf %286, %287 : vector<16x128xf32>
    %cst_77 = arith.constant 5.000000e-01 : f32
    %289 = vector.broadcast %cst_77 : f32 to vector<16x128xf32>
    %290 = arith.mulf %289, %288 : vector<16x128xf32>
    %cst_78 = arith.constant 4.471500e-02 : f32
    %291 = vector.broadcast %cst_78 : f32 to vector<16x128xf32>
    %292 = arith.mulf %291, %288 : vector<16x128xf32>
    %293 = arith.mulf %292, %288 : vector<16x128xf32>
    %294 = arith.mulf %293, %288 : vector<16x128xf32>
    %295 = arith.addf %288, %294 : vector<16x128xf32>
    %cst_79 = arith.constant 0.797884583 : f32
    %296 = vector.broadcast %cst_79 : f32 to vector<16x128xf32>
    %297 = arith.mulf %296, %295 : vector<16x128xf32>
    %298 = math.tanh %297 : vector<16x128xf32>
    %cst_80 = arith.constant 1.000000e+00 : f32
    %299 = vector.broadcast %cst_80 : f32 to vector<16x128xf32>
    %300 = arith.addf %299, %298 : vector<16x128xf32>
    %301 = arith.mulf %290, %300 : vector<16x128xf32>
    %302 = arith.truncf %301 : vector<16x128xf32> to vector<16x128xbf16>
    %c1_81 = arith.constant 1 : index
    %c0_82 = arith.constant 0 : index
    %c0_83 = arith.constant 0 : index
    %303 = vector.load %arg8[%c1_81, %c0_82, %c0_83] : memref<2x128x32xbf16, #tpu.memory_space<vmem>>, vector<1x128x32xbf16>
    %304 = vector.shape_cast %303 : vector<1x128x32xbf16> to vector<128x32xbf16>
    %cst_84 = arith.constant dense<0.000000e+00> : vector<16x32xf32>
    %305 = tpu.matmul %302, %304, %cst_84 {dimension_numbers = #tpu.dot_dimension_numbers<[1], [0], [0], [1], [0, 0, 1, 1], [], []>} : vector<16x128xbf16>, vector<128x32xbf16>, vector<16x32xf32> -> vector<16x32xf32>
    %306 = vector.broadcast %192 : vector<1x32xf32> to vector<16x32xf32>
    %307 = arith.addf %305, %306 : vector<16x32xf32>
    %308 = arith.addf %282, %307 : vector<16x32xf32>
    %cst_85 = arith.constant dense<0.000000e+00> : vector<16xf32>
    %309 = vector.multi_reduction <add>, %308, %cst_85 [1] : vector<16x32xf32> to vector<16xf32>
    %310 = vector.shape_cast %309 : vector<16xf32> to vector<16x1xf32>
    %cst_86 = arith.constant 3.200000e+01 : f32
    %311 = vector.broadcast %cst_86 : f32 to vector<16x1xf32>
    %312 = arith.divf %310, %311 : vector<16x1xf32>
    %313 = vector.broadcast %312 : vector<16x1xf32> to vector<16x32xf32>
    %314 = arith.subf %308, %313 : vector<16x32xf32>
    %315 = vector.broadcast %312 : vector<16x1xf32> to vector<16x32xf32>
    %316 = arith.subf %308, %315 : vector<16x32xf32>
    %317 = arith.mulf %314, %316 : vector<16x32xf32>
    %cst_87 = arith.constant dense<0.000000e+00> : vector<16xf32>
    %318 = vector.multi_reduction <add>, %317, %cst_87 [1] : vector<16x32xf32> to vector<16xf32>
    %319 = vector.shape_cast %318 : vector<16xf32> to vector<16x1xf32>
    %cst_88 = arith.constant 3.200000e+01 : f32
    %320 = vector.broadcast %cst_88 : f32 to vector<16x1xf32>
    %321 = arith.divf %319, %320 : vector<16x1xf32>
    %322 = vector.broadcast %312 : vector<16x1xf32> to vector<16x32xf32>
    %323 = arith.subf %308, %322 : vector<16x32xf32>
    %cst_89 = arith.constant 9.99999996E-13 : f32
    %324 = vector.broadcast %cst_89 : f32 to vector<16x1xf32>
    %325 = arith.addf %321, %324 : vector<16x1xf32>
    %326 = math.rsqrt %325 : vector<16x1xf32>
    %327 = vector.broadcast %326 : vector<16x1xf32> to vector<16x32xf32>
    %328 = arith.mulf %323, %327 : vector<16x32xf32>
    %329 = vector.broadcast %193 : vector<1x32xf32> to vector<16x32xf32>
    %330 = arith.mulf %328, %329 : vector<16x32xf32>
    %331 = vector.broadcast %194 : vector<1x32xf32> to vector<16x32xf32>
    %332 = arith.addf %330, %331 : vector<16x32xf32>
    %c0_90 = arith.constant 0 : index
    %c0_91 = arith.constant 0 : index
    %333 = vector.load %arg10[%c0_90, %c0_91] : memref<16x32xf32, #tpu.memory_space<vmem>>, vector<16x32xf32>
    tpu.vector_store %arg10[%c0_90, %c0_91], %332 {strides = array<i32>} : memref<16x32xf32, #tpu.memory_space<vmem>>, vector<16x32xf32>,
    return
  }
}

</mosaic_0001>

<llo_original>
// kernel: bert_layer_forward.1
$region0: #{bert_layer_forward.1}
  #allocation0 [shape = 'u32[]', space=smem, size = 0x4, offset = 0x4, fixed_abs, tag = 'smem constant byte address 0x4 - core index']
  #allocation1 [shape = 'u32[144,128]{1,0:T(1,128)}', space=vmem, size = 0x12000, scoped, tag = 'internal scratch']
  %s0 = inlined_call_operand.vmem [shape: s32[16,1], index: 0, kind: input, shape index: {}]
  %s1 = inlined_call_operand.vmem [shape: f32[16,32], index: 1, kind: input, shape index: {}]
  %s2 = inlined_call_operand.vmem [shape: f32[8,8,8], index: 2, kind: input, shape index: {}]
  %s3 = inlined_call_operand.vmem [shape: f32[50,32], index: 3, kind: input, shape index: {}]
  %s4 = inlined_call_operand.vmem [shape: f32[2,32], index: 4, kind: input, shape index: {}]
  %s5 = inlined_call_operand.vmem [shape: bf16[2,32,96], index: 5, kind: input, shape index: {}]
  %s6 = inlined_call_operand.vmem [shape: bf16[2,32,32], index: 6, kind: input, shape index: {}]
  %s7 = inlined_call_operand.vmem [shape: bf16[2,32,128], index: 7, kind: input, shape index: {}]
  %s8 = inlined_call_operand.vmem [shape: bf16[2,128,32], index: 8, kind: input, shape index: {}]
  %s9 = inlined_call_operand.vmem [shape: f32[2,8,128], index: 9, kind: input, shape index: {}]
  %s10 = inlined_call_operand.hbm [shape: f32[16,32], index: 10, kind: output, shape index: {}]
  %s11 = sld [smem:[#allocation0]]
  $region50: #{bert_layer_forward.1} parent=0
    _
  %s13 = ssub.s32 1, %s11
  %s14 = scalar_select 0, %s13, %s11
  $region1: #{bert_layer_forward.1} parent=0
    #allocation2 [shape = 'u8[8192]{0}', space=vmem, size = 0x2000, scoped, tag = 'output window, operand 0, single buffered']
    #allocation3 [shape = 's32[1]{0}', space=sflag, size = 0x4, scoped, tag = 'scoped memory for bert_layer_forward.1']
    %15 = vsyncpa [#allocation3], 0
    // Predicated region
    $region2: #{bert_layer_forward.1} parent=1 // pred_check
      _
    $region3: #{bert_layer_forward.1} parent=1 // pred_check_branch
      %17 = sbr.rel (0) target = $region5
    $region4: #{bert_layer_forward.1} parent=1 // pred_region
      _
    $region5: #{bert_layer_forward.1} parent=1 // pred_fallthru
      _
    // Predicated region
    $region6: #{bert_layer_forward.1} parent=1 // pred_check
      _
    $region7: #{bert_layer_forward.1} parent=1 // pred_check_branch
      %19 = sbr.rel (0) target = $region9
    $region8: #{bert_layer_forward.1} parent=1 // pred_region
      _
    $region9: #{bert_layer_forward.1} parent=1 // pred_fallthru
      _
    // Predicated region
    $region10: #{bert_layer_forward.1} parent=1 // pred_check
      _
    $region11: #{bert_layer_forward.1} parent=1 // pred_check_branch
      %21 = sbr.rel (0) target = $region13
    $region12: #{bert_layer_forward.1} parent=1 // pred_region
      _
    $region13: #{bert_layer_forward.1} parent=1 // pred_fallthru
      _
    // Predicated region
    $region14: #{bert_layer_forward.1} parent=1 // pred_check
      _
    $region15: #{bert_layer_forward.1} parent=1 // pred_check_branch
      %23 = sbr.rel (0) target = $region17
    $region16: #{bert_layer_forward.1} parent=1 // pred_region
      _
    $region17: #{bert_layer_forward.1} parent=1 // pred_fallthru
      _
    // Predicated region
    $region18: #{bert_layer_forward.1} parent=1 // pred_check
      _
    $region19: #{bert_layer_forward.1} parent=1 // pred_check_branch
      %25 = sbr.rel (0) target = $region21
    $region20: #{bert_layer_forward.1} parent=1 // pred_region
      _
    $region21: #{bert_layer_forward.1} parent=1 // pred_fallthru
      _
    // Predicated region
    $region22: #{bert_layer_forward.1} parent=1 // pred_check
      _
    $region23: #{bert_layer_forward.1} parent=1 // pred_check_branch
      %27 = sbr.rel (0) target = $region25
    $region24: #{bert_layer_forward.1} parent=1 // pred_region
      _
    $region25: #{bert_layer_forward.1} parent=1 // pred_fallthru
      _
    // Predicated region
    $region26: #{bert_layer_forward.1} parent=1 // pred_check
      _
    $region27: #{bert_layer_forward.1} parent=1 // pred_check_branch
      %29 = sbr.rel (0) target = $region29
    $region28: #{bert_layer_forward.1} parent=1 // pred_region
      _
    $region29: #{bert_layer_forward.1} parent=1 // pred_fallthru
      _
    // Predicated region
    $region30: #{bert_layer_forward.1} parent=1 // pred_check
      _
    $region31: #{bert_layer_forward.1} parent=1 // pred_check_branch
      %31 = sbr.rel (0) target = $region33
    $region32: #{bert_layer_forward.1} parent=1 // pred_region
      _
    $region33: #{bert_layer_forward.1} parent=1 // pred_fallthru
      _
    // Predicated region
    $region34: #{bert_layer_forward.1} parent=1 // pred_check
      _
    $region35: #{bert_layer_forward.1} parent=1 // pred_check_branch
      %33 = sbr.rel (0) target = $region37
    $region36: #{bert_layer_forward.1} parent=1 // pred_region
      _
    $region37: #{bert_layer_forward.1} parent=1 // pred_fallthru
      _
    // Predicated region
    $region38: #{bert_layer_forward.1} parent=1 // pred_check
      _
    $region39: #{bert_layer_forward.1} parent=1 // pred_check_branch
      %35 = sbr.rel (0) target = $region41
    $region40: #{bert_layer_forward.1} parent=1 // pred_region
      _
    $region41: #{bert_layer_forward.1} parent=1 // pred_fallthru
      _
    %v37 = vld [vmem:[%s0] sm:$0xff]
    %v38 = vld [vmem:[%s0 + $0x8] sm:$0xff]
    %v39 = vlaneseq
    %v40 = vand.u32 %v39, 127
    %41 = vset.pattern.permute.xlu0 0
    %42 = vperm.xlu0 %41, %v37
    %v43 = vpop.permute.xlu0 %42
    %44 = vset.pattern.permute.xlu0 0
    %45 = vperm.xlu0 %44, %v38
    %v46 = vpop.permute.xlu0 %45
    %vm47 = vcmp.eq.s32.totalorder %v40, %v43
    %vm48 = vcmp.eq.s32.totalorder %v40, %v46
    %v49 = vsel %vm47, 1, 0
    %v50 = vsel %vm48, 1, 0
    %v51 = vcvt.s32.f32 %v49
    %v52 = vcvt.s32.f32 %v50
    %v53 = vld [vmem:[%s3] sm:$0xff]
    %v54 = vld [vmem:[%s3 + $0x8] sm:$0xff]
    %v55 = vld [vmem:[%s3 + $0x10] sm:$0xff]
    %v56 = vld [vmem:[%s3 + $0x18] sm:$0xff]
    %v57 = vld [vmem:[%s3 + $0x20] sm:$0xff]
    %v58 = vld [vmem:[%s3 + $0x28] sm:$0xff]
    %v59 = vld [vmem:[%s3 + $0x30] sm:$0x3]
    %v60 = vld [vmem:[%s1] sm:$0xff]
    %v61 = vld [vmem:[%s1 + $0x8] sm:$0xff]
    %vm62 = vcmask 408576
    %v64 = vsel %vm62, %v51, 0
    %v67 = vsel %vm62, %v52, 0
    %vm69 = vcmask 1041408
    %v71 = vsel %vm69, %v59, 0
    %73 = vmatprep.subr.mxu0 0.0
    %74 = vmatpush1.msra.mxu0 %v53
    %75 = vmatprep.subr.mxu0 0.0
    %76 = vmatpush1.msra.mxu0 %v54
    %77 = vmatprep.subr.mxu0 0.0
    %78 = vmatpush1.msra.mxu0 %v55
    %79 = vmatprep.subr.mxu0 0.0
    %80 = vmatpush1.msra.mxu0 %v56
    %81 = vmatprep.subr.mxu0 0.0
    %82 = vmatpush1.msra.mxu0 %v57
    %83 = vmatprep.subr.mxu0 0.0
    %84 = vmatpush1.msra.mxu0 %v58
    %85 = vmatprep.subr.mxu0 0.0
    %86 = vmatpush1.msra.mxu0 %v71
    %87 = vmatprep.subr.mxu0 0.0
    %88 = vmatpush1.msra.mxu0 0.0
    %89 = vmatprep.subr.mxu0 0.0
    %90 = vmatpush1.msra.mxu0 0.0
    %91 = vmatprep.subr.mxu0 0.0
    %92 = vmatpush1.msra.mxu0 0.0
    %93 = vmatprep.subr.mxu0 0.0
    %94 = vmatpush1.msra.mxu0 0.0
    %95 = vmatprep.subr.mxu0 0.0
    %96 = vmatpush1.msra.mxu0 0.0
    %97 = vmatprep.subr.mxu0 0.0
    %98 = vmatpush1.msra.mxu0 0.0
    %99 = vmatprep.subr.mxu0 0.0
    %100 = vmatpush1.msra.mxu0 0.0
    %101 = vmatprep.subr.mxu0 0.0
    %102 = vmatpush1.msra.mxu0 0.0
    %103 = vmatprep.subr.mxu0 0.0
    %104 = vmatpush1.msra.mxu0 0.0
    %105 = vmatprep.subr.mxu0 0.0
    %106 = vmatpush1.msra.mxu0 0.0
    %107 = vmatprep.subr.mxu0 0.0
    %108 = vmatpush1.msra.mxu0 0.0
    %109 = vmatprep.subr.mxu0 0.0
    %110 = vmatpush1.msra.mxu0 0.0
    %111 = vmatprep.subr.mxu0 0.0
    %112 = vmatpush1.msra.mxu0 0.0
    %113 = vmatprep.subr.mxu0 0.0
    %114 = vmatpush1.msra.mxu0 0.0
    %115 = vmatprep.subr.mxu0 0.0
    %116 = vmatpush1.msra.mxu0 0.0
    %117 = vmatprep.subr.mxu0 0.0
    %118 = vmatpush1.msra.mxu0 0.0
    %119 = vmatprep.subr.mxu0 0.0
    %120 = vmatpush1.msra.mxu0 0.0
    %121 = vmatprep.subr.mxu0 0.0
    %122 = vmatpush1.msra.mxu0 0.0
    %123 = vmatprep.subr.mxu0 0.0
    %124 = vmatpush1.msra.mxu0 0.0
    %125 = vmatprep.subr.mxu0 0.0
    %126 = vmatpush1.msra.mxu0 0.0
    %127 = vmatprep.subr.mxu0 0.0
    %128 = vmatpush1.msra.mxu0 0.0
    %129 = vmatprep.subr.mxu0 0.0
    %130 = vmatpush1.msra.mxu0 0.0
    %131 = vmatprep.subr.mxu0 0.0
    %132 = vmatpush1.msra.mxu0 0.0
    %133 = vmatprep.subr.mxu0 0.0
    %134 = vmatpush1.msra.mxu0 0.0
    %135 = vmatprep.subr.mxu0 0.0
    %136 = vmatpush1.msra.mxu0 0.0
    %137 = vmatprep.mubr.f32.mxu0 0.0
    %138 = vmatmul.mubr.f32.gmra.mrb[0].mxu0 %v64
    %v139 = vpop.f32.mrb[0].mxu0
    %v140 = vadd.f32 %v60, %v139
    %v141 = vpop.f32.mrb[0].mxu0
    %142 = vmatprep.mubr.f32.mxu0 0.0
    %143 = vmatmul.mubr.f32.gmra.mrb[0].mxu0 %v67
    %v144 = vpop.f32.mrb[0].mxu0
    %v145 = vadd.f32 %v61, %v144
    %v146 = vpop.f32.mrb[0].mxu0
    %147 = vdwg.mxu0
    %v148 = vld [vmem:[%s4] sm:$0x1]
    %v149 = vld [vmem:[%s4 + $0x1] sm:$0x1]
    %vm150 = vcmask 261120
    %v151 = vsel %vm150, %v140, 0.0
    %152 = vadd.xlane.f32.xlu0 %v151
    %v153 = vpop.xlane.xlu0 %152
    %v154 = vsel %vm150, %v145, 0.0
    %155 = vadd.xlane.f32.xlu0 %v154
    %v156 = vpop.xlane.xlu0 %155
    %v157 = vrcp.pop 32.0
    %v158 = vmul.f32 %v153, %v157
    %v159 = vmul.f32 %v156, %v157
    %v160 = vsub.f32 %v140, %v158
    %v161 = vsub.f32 %v145, %v159
    %v162 = vmul.f32 %v160, %v160
    %v163 = vmul.f32 %v161, %v161
    %v164 = vsel %vm150, %v162, 0.0
    %165 = vadd.xlane.f32.xlu0 %v164
    %v166 = vpop.xlane.xlu0 %165
    %v167 = vsel %vm150, %v163, 0.0
    %168 = vadd.xlane.f32.xlu0 %v167
    %v169 = vpop.xlane.xlu0 %168
    %v170 = vmul.f32 %v166, %v157
    %v171 = vmul.f32 %v169, %v157
    %v172 = vadd.f32 %v170, 1e-12
    %v173 = vadd.f32 %v171, 1e-12
    %v174 = vrsqrt.pop %v172
    %v175 = vrsqrt.pop %v173
    %v176 = vmul.f32 %v160, %v174
    %v177 = vmul.f32 %v161, %v175
    %v178 = vlaneseq
    %v179 = vshrl.u32 %v178, 7
    %v180 = vsub.s32 0, %v179
    %v181 = vrot.slane %v148, %v180
    %v182 = vmul.f32 %v176, %v181
    %v183 = vmul.f32 %v177, %v181
    %v184 = vlaneseq
    %v185 = vshrl.u32 %v184, 7
    %v186 = vsub.s32 0, %v185
    %v187 = vrot.slane %v149, %v186
    %v188 = vadd.f32 %v182, %v187
    %v189 = vadd.f32 %v183, %v187
    %v190 = vld [vmem:[%s2] sm:$0xff]
    %v191 = vld [vmem:[%s2 + $0x8] sm:$0xff]
    %v192 = vld [vmem:[%s2 + $0x10] sm:$0xff]
    %v193 = vld [vmem:[%s2 + $0x18] sm:$0xff]
    %v194 = vld [vmem:[%s2 + $0x20] sm:$0xff]
    %v195 = vld [vmem:[%s2 + $0x28] sm:$0xff]
    %v196 = vld [vmem:[%s2 + $0x30] sm:$0xff]
    %v197 = vld [vmem:[%s2 + $0x38] sm:$0xff]
    %v198 = vld [vmem:[%s9] sm:$0xff]
    %v199 = vpack.c.bf16 %v189, %v188
    %v200 = vld [vmem:[%s5] sm:$0xf]
    %v201 = vld [vmem:[%s5 + $0x4] sm:$0xf]
    %v202 = vld [vmem:[%s5 + $0x8] sm:$0xf]
    %v203 = vld [vmem:[%s5 + $0xc] sm:$0xf]
    %v204 = vlaneseq
    %v205 = vshrl.u32 %v204, 7
    %v206 = vsub.s32 0, %v205
    %v207 = vrot.slane %v198, %v206
    %v212 = vunpack.c.l.b16 %v200
    %v213 = vunpack.c.l.b16 %v201
    %v214 = vunpack.c.l.b16 %v202
    %v215 = vunpack.c.l.b16 %v203
    %v216 = vpack.c.b16 %v213, %v212
    %v217 = vpack.c.b16 %v215, %v214
    %v221 = vsel %vm150, %v199, 0
    %223 = vmatprep.subr.bf16.mxu0 0
    %224 = vmatpush1.bf16.msra.mxu0 %v216
    %225 = vmatprep.subr.bf16.mxu0 0
    %226 = vmatpush1.bf16.msra.mxu0 %v217
    %227 = vmatprep.subr.bf16.mxu0 0
    %228 = vmatpush1.bf16.msra.mxu0 0
    %229 = vmatprep.subr.bf16.mxu0 0
    %230 = vmatpush1.bf16.msra.mxu0 0
    %231 = vmatprep.subr.bf16.mxu0 0
    %232 = vmatpush1.bf16.msra.mxu0 0
    %233 = vmatprep.subr.bf16.mxu0 0
    %234 = vmatpush1.bf16.msra.mxu0 0
    %235 = vmatprep.subr.bf16.mxu0 0
    %236 = vmatpush1.bf16.msra.mxu0 0
    %237 = vmatprep.subr.bf16.mxu0 0
    %238 = vmatpush1.bf16.msra.mxu0 0
    %239 = vmatprep.subr.bf16.mxu0 0
    %240 = vmatpush1.bf16.msra.mxu0 0
    %241 = vmatprep.subr.bf16.mxu0 0
    %242 = vmatpush1.bf16.msra.mxu0 0
    %243 = vmatprep.subr.bf16.mxu0 0
    %244 = vmatpush1.bf16.msra.mxu0 0
    %245 = vmatprep.subr.bf16.mxu0 0
    %246 = vmatpush1.bf16.msra.mxu0 0
    %247 = vmatprep.subr.bf16.mxu0 0
    %248 = vmatpush1.bf16.msra.mxu0 0
    %249 = vmatprep.subr.bf16.mxu0 0
    %250 = vmatpush1.bf16.msra.mxu0 0
    %251 = vmatprep.subr.bf16.mxu0 0
    %252 = vmatpush1.bf16.msra.mxu0 0
    %253 = vmatprep.subr.bf16.mxu0 0
    %254 = vmatpush1.bf16.msra.mxu0 0
    %255 = vmatprep.mubr.bf16.mxu0 0
    %256 = vmatmul.mubr.bf16.gmra.mrb[0].mxu0 %v221
    %v257 = vpop.f32.mrb[0].mxu0
    %v258 = vadd.f32 %v207, %v257
    %v259 = vpop.f32.mrb[0].mxu0
    %v260 = vpop.f32.mrb[0].mxu0
    %v261 = vadd.f32 %v207, %v260
    %v262 = vpop.f32.mrb[0].mxu0
    %263 = vdwg.mxu0
    %v264 = vpack.c.bf16 %v261, %v258
    %v266 = vunpack.c.l.b16 %v264
    %v267 = vunpack.c.h.b16 %v264
    %v268 = vpack.c.b16 %v266, %v266
    %v269 = vpack.c.b16 %v267, %v267
    %270 = vrot.lane.b32.xlu0 %v268, 120
    %v271 = vpop.permute.xlu0 %270
    %272 = vrot.lane.b32.xlu0 %v269, 120
    %v273 = vpop.permute.xlu0 %272
    %274 = vrot.lane.b32.xlu0 %v268, 112
    %v275 = vpop.permute.xlu0 %274
    %276 = vrot.lane.b32.xlu0 %v269, 112
    %v277 = vpop.permute.xlu0 %276
    %278 = vrot.lane.b32.xlu0 %v268, 104
    %v279 = vpop.permute.xlu0 %278
    %280 = vrot.lane.b32.xlu0 %v269, 104
    %v281 = vpop.permute.xlu0 %280
    %282 = vrot.lane.b32.xlu0 %v268, 96
    %v283 = vpop.permute.xlu0 %282
    %vm284 = vcmask 64512
    %v286 = vsel %vm284, %v268, 0
    %v289 = vsel %vm284, %v283, 0
    %291 = vmatprep.subr.bf16.mxu0 0
    %292 = vmatpush1.bf16.xpose.msra.mxu0 %v289
    %293 = vmatprep.subr.bf16.mxu0 0
    %294 = vmatpush1.bf16.xpose.msra.mxu0 0
    %295 = vmatprep.subr.bf16.mxu0 0
    %296 = vmatpush1.bf16.xpose.msra.mxu0 0
    %297 = vmatprep.subr.bf16.mxu0 0
    %298 = vmatpush1.bf16.xpose.msra.mxu0 0
    %299 = vmatprep.subr.bf16.mxu0 0
    %300 = vmatpush1.bf16.xpose.msra.mxu0 0
    %301 = vmatprep.subr.bf16.mxu0 0
    %302 = vmatpush1.bf16.xpose.msra.mxu0 0
    %303 = vmatprep.subr.bf16.mxu0 0
    %304 = vmatpush1.bf16.xpose.msra.mxu0 0
    %305 = vmatprep.subr.bf16.mxu0 0
    %306 = vmatpush1.bf16.xpose.msra.mxu0 0
    %307 = vmatprep.subr.bf16.mxu0 0
    %308 = vmatpush1.bf16.xpose.msra.mxu0 0
    %309 = vmatprep.subr.bf16.mxu0 0
    %310 = vmatpush1.bf16.xpose.msra.mxu0 0
    %311 = vmatprep.subr.bf16.mxu0 0
    %312 = vmatpush1.bf16.xpose.msra.mxu0 0
    %313 = vmatprep.subr.bf16.mxu0 0
    %314 = vmatpush1.bf16.xpose.msra.mxu0 0
    %315 = vmatprep.subr.bf16.mxu0 0
    %316 = vmatpush1.bf16.xpose.msra.mxu0 0
    %317 = vmatprep.subr.bf16.mxu0 0
    %318 = vmatpush1.bf16.xpose.msra.mxu0 0
    %319 = vmatprep.subr.bf16.mxu0 0
    %320 = vmatpush1.bf16.xpose.msra.mxu0 0
    %321 = vmatprep.subr.bf16.mxu0 0
    %322 = vmatpush1.bf16.xpose.msra.mxu0 0
    %323 = vmatprep.mubr.bf16.mxu0 0
    %324 = vmatmul.mubr.bf16.gmra.mrb[0].mxu0 %v286
    %v325 = vpop.f32.mrb[0].mxu0
    %v326 = vadd.f32 %v190, %v325
    %v327 = vpop.f32.mrb[0].mxu0
    %v328 = vpop.f32.mrb[0].mxu0
    %v329 = vpop.f32.mrb[0].mxu0
    %330 = vdwg.mxu0
    %331 = vrot.lane.b32.xlu0 %v269, 96
    %v332 = vpop.permute.xlu0 %331
    %v334 = vsel %vm284, %v269, 0
    %v337 = vsel %vm284, %v332, 0
    %339 = vmatprep.subr.bf16.mxu0 0
    %340 = vmatpush1.bf16.xpose.msra.mxu0 %v337
    %341 = vmatprep.subr.bf16.mxu0 0
    %342 = vmatpush1.bf16.xpose.msra.mxu0 0
    %343 = vmatprep.subr.bf16.mxu0 0
    %344 = vmatpush1.bf16.xpose.msra.mxu0 0
    %345 = vmatprep.subr.bf16.mxu0 0
    %346 = vmatpush1.bf16.xpose.msra.mxu0 0
    %347 = vmatprep.subr.bf16.mxu0 0
    %348 = vmatpush1.bf16.xpose.msra.mxu0 0
    %349 = vmatprep.subr.bf16.mxu0 0
    %350 = vmatpush1.bf16.xpose.msra.mxu0 0
    %351 = vmatprep.subr.bf16.mxu0 0
    %352 = vmatpush1.bf16.xpose.msra.mxu0 0
    %353 = vmatprep.subr.bf16.mxu0 0
    %354 = vmatpush1.bf16.xpose.msra.mxu0 0
    %355 = vmatprep.subr.bf16.mxu0 0
    %356 = vmatpush1.bf16.xpose.msra.mxu0 0
    %357 = vmatprep.subr.bf16.mxu0 0
    %358 = vmatpush1.bf16.xpose.msra.mxu0 0
    %359 = vmatprep.subr.bf16.mxu0 0
    %360 = vmatpush1.bf16.xpose.msra.mxu0 0
    %361 = vmatprep.subr.bf16.mxu0 0
    %362 = vmatpush1.bf16.xpose.msra.mxu0 0
    %363 = vmatprep.subr.bf16.mxu0 0
    %364 = vmatpush1.bf16.xpose.msra.mxu0 0
    %365 = vmatprep.subr.bf16.mxu0 0
    %366 = vmatpush1.bf16.xpose.msra.mxu0 0
    %367 = vmatprep.subr.bf16.mxu0 0
    %368 = vmatpush1.bf16.xpose.msra.mxu0 0
    %369 = vmatprep.subr.bf16.mxu0 0
    %370 = vmatpush1.bf16.xpose.msra.mxu0 0
    %371 = vmatprep.mubr.bf16.mxu0 0
    %372 = vmatmul.mubr.bf16.gmra.mrb[0].mxu0 %v334
    %v373 = vpop.f32.mrb[0].mxu0
    %v374 = vadd.f32 %v191, %v373
    %v375 = vpop.f32.mrb[0].mxu0
    %v376 = vpop.f32.mrb[0].mxu0
    %v377 = vpop.f32.mrb[0].mxu0
    %378 = vdwg.mxu0
    %v379 = vunpack.c.l.b16 %v271
    %v380 = vpack.c.b16 %v379, %v379
    %381 = vrot.lane.b32.xlu0 %v380, 96
    %v382 = vpop.permute.xlu0 %381
    %v384 = vsel %vm284, %v271, 0
    %v387 = vsel %vm284, %v382, 0
    %389 = vmatprep.subr.bf16.mxu0 0
    %390 = vmatpush1.bf16.xpose.msra.mxu0 %v387
    %391 = vmatprep.subr.bf16.mxu0 0
    %392 = vmatpush1.bf16.xpose.msra.mxu0 0
    %393 = vmatprep.subr.bf16.mxu0 0
    %394 = vmatpush1.bf16.xpose.msra.mxu0 0
    %395 = vmatprep.subr.bf16.mxu0 0
    %396 = vmatpush1.bf16.xpose.msra.mxu0 0
    %397 = vmatprep.subr.bf16.mxu0 0
    %398 = vmatpush1.bf16.xpose.msra.mxu0 0
    %399 = vmatprep.subr.bf16.mxu0 0
    %400 = vmatpush1.bf16.xpose.msra.mxu0 0
    %401 = vmatprep.subr.bf16.mxu0 0
    %402 = vmatpush1.bf16.xpose.msra.mxu0 0
    %403 = vmatprep.subr.bf16.mxu0 0
    %404 = vmatpush1.bf16.xpose.msra.mxu0 0
    %405 = vmatprep.subr.bf16.mxu0 0
    %406 = vmatpush1.bf16.xpose.msra.mxu0 0
    %407 = vmatprep.subr.bf16.mxu0 0
    %408 = vmatpush1.bf16.xpose.msra.mxu0 0
    %409 = vmatprep.subr.bf16.mxu0 0
    %410 = vmatpush1.bf16.xpose.msra.mxu0 0
    %411 = vmatprep.subr.bf16.mxu0 0
    %412 = vmatpush1.bf16.xpose.msra.mxu0 0
    %413 = vmatprep.subr.bf16.mxu0 0
    %414 = vmatpush1.bf16.xpose.msra.mxu0 0
    %415 = vmatprep.subr.bf16.mxu0 0
    %416 = vmatpush1.bf16.xpose.msra.mxu0 0
    %417 = vmatprep.subr.bf16.mxu0 0
    %418 = vmatpush1.bf16.xpose.msra.mxu0 0
    %419 = vmatprep.subr.bf16.mxu0 0
    %420 = vmatpush1.bf16.xpose.msra.mxu0 0
    %421 = vmatprep.mubr.bf16.mxu0 0
    %422 = vmatmul.mubr.bf16.gmra.mrb[0].mxu0 %v384
    %v423 = vpop.f32.mrb[0].mxu0
    %v424 = vadd.f32 %v192, %v423
    %v425 = vpop.f32.mrb[0].mxu0
    %v426 = vpop.f32.mrb[0].mxu0
    %v427 = vpop.f32.mrb[0].mxu0
    %428 = vdwg.mxu0
    %v429 = vunpack.c.l.b16 %v273
    %v430 = vpack.c.b16 %v429, %v429
    %431 = vrot.lane.b32.xlu0 %v430, 96
    %v432 = vpop.permute.xlu0 %431
    %v434 = vsel %vm284, %v273, 0
    %v437 = vsel %vm284, %v432, 0
    %439 = vmatprep.subr.bf16.mxu0 0
    %440 = vmatpush1.bf16.xpose.msra.mxu0 %v437
    %441 = vmatprep.subr.bf16.mxu0 0
    %442 = vmatpush1.bf16.xpose.msra.mxu0 0
    %443 = vmatprep.subr.bf16.mxu0 0
    %444 = vmatpush1.bf16.xpose.msra.mxu0 0
    %445 = vmatprep.subr.bf16.mxu0 0
    %446 = vmatpush1.bf16.xpose.msra.mxu0 0
    %447 = vmatprep.subr.bf16.mxu0 0
    %448 = vmatpush1.bf16.xpose.msra.mxu0 0
    %449 = vmatprep.subr.bf16.mxu0 0
    %450 = vmatpush1.bf16.xpose.msra.mxu0 0
    %451 = vmatprep.subr.bf16.mxu0 0
    %452 = vmatpush1.bf16.xpose.msra.mxu0 0
    %453 = vmatprep.subr.bf16.mxu0 0
    %454 = vmatpush1.bf16.xpose.msra.mxu0 0
    %455 = vmatprep.subr.bf16.mxu0 0
    %456 = vmatpush1.bf16.xpose.msra.mxu0 0
    %457 = vmatprep.subr.bf16.mxu0 0
    %458 = vmatpush1.bf16.xpose.msra.mxu0 0
    %459 = vmatprep.subr.bf16.mxu0 0
    %460 = vmatpush1.bf16.xpose.msra.mxu0 0
    %461 = vmatprep.subr.bf16.mxu0 0
    %462 = vmatpush1.bf16.xpose.msra.mxu0 0
    %463 = vmatprep.subr.bf16.mxu0 0
    %464 = vmatpush1.bf16.xpose.msra.mxu0 0
    %465 = vmatprep.subr.bf16.mxu0 0
    %466 = vmatpush1.bf16.xpose.msra.mxu0 0
    %467 = vmatprep.subr.bf16.mxu0 0
    %468 = vmatpush1.bf16.xpose.msra.mxu0 0
    %469 = vmatprep.subr.bf16.mxu0 0
    %470 = vmatpush1.bf16.xpose.msra.mxu0 0
    %471 = vmatprep.mubr.bf16.mxu0 0
    %472 = vmatmul.mubr.bf16.gmra.mrb[0].mxu0 %v434
    %v473 = vpop.f32.mrb[0].mxu0
    %v474 = vadd.f32 %v193, %v473
    %v475 = vpop.f32.mrb[0].mxu0
    %v476 = vpop.f32.mrb[0].mxu0
    %v477 = vpop.f32.mrb[0].mxu0
    %478 = vdwg.mxu0
    %v479 = vunpack.c.l.b16 %v275
    %v480 = vpack.c.b16 %v479, %v479
    %481 = vrot.lane.b32.xlu0 %v480, 96
    %v482 = vpop.permute.xlu0 %481
    %v484 = vsel %vm284, %v275, 0
    %v487 = vsel %vm284, %v482, 0
    %489 = vmatprep.subr.bf16.mxu0 0
    %490 = vmatpush1.bf16.xpose.msra.mxu0 %v487
    %491 = vmatprep.subr.bf16.mxu0 0
    %492 = vmatpush1.bf16.xpose.msra.mxu0 0
    %493 = vmatprep.subr.bf16.mxu0 0
    %494 = vmatpush1.bf16.xpose.msra.mxu0 0
    %495 = vmatprep.subr.bf16.mxu0 0
    %496 = vmatpush1.bf16.xpose.msra.mxu0 0
    %497 = vmatprep.subr.bf16.mxu0 0
    %498 = vmatpush1.bf16.xpose.msra.mxu0 0
    %499 = vmatprep.subr.bf16.mxu0 0
    %500 = vmatpush1.bf16.xpose.msra.mxu0 0
    %501 = vmatprep.subr.bf16.mxu0 0
    %502 = vmatpush1.bf16.xpose.msra.mxu0 0
    %503 = vmatprep.subr.bf16.mxu0 0
    %504 = vmatpush1.bf16.xpose.msra.mxu0 0
    %505 = vmatprep.subr.bf16.mxu0 0
    %506 = vmatpush1.bf16.xpose.msra.mxu0 0
    %507 = vmatprep.subr.bf16.mxu0 0
    %508 = vmatpush1.bf16.xpose.msra.mxu0 0
    %509 = vmatprep.subr.bf16.mxu0 0
    %510 = vmatpush1.bf16.xpose.msra.mxu0 0
    %511 = vmatprep.subr.bf16.mxu0 0
    %512 = vmatpush1.bf16.xpose.msra.mxu0 0
    %513 = vmatprep.subr.bf16.mxu0 0
    %514 = vmatpush1.bf16.xpose.msra.mxu0 0
    %515 = vmatprep.subr.bf16.mxu0 0
    %516 = vmatpush1.bf16.xpose.msra.mxu0 0
    %517 = vmatprep.subr.bf16.mxu0 0
    %518 = vmatpush1.bf16.xpose.msra.mxu0 0
    %519 = vmatprep.subr.bf16.mxu0 0
    %520 = vmatpush1.bf16.xpose.msra.mxu0 0
    %521 = vmatprep.mubr.bf16.mxu0 0
    %522 = vmatmul.mubr.bf16.gmra.mrb[0].mxu0 %v484
    %v523 = vpop.f32.mrb[0].mxu0
    %v524 = vadd.f32 %v194, %v523
    %v525 = vpop.f32.mrb[0].mxu0
    %v526 = vpop.f32.mrb[0].mxu0
    %v527 = vpop.f32.mrb[0].mxu0
    %528 = vdwg.mxu0
    %v529 = vunpack.c.l.b16 %v277
    %v530 = vpack.c.b16 %v529, %v529
    %531 = vrot.lane.b32.xlu0 %v530, 96
    %v532 = vpop.permute.xlu0 %531
    %v534 = vsel %vm284, %v277, 0
    %v537 = vsel %vm284, %v532, 0
    %539 = vmatprep.subr.bf16.mxu0 0
    %540 = vmatpush1.bf16.xpose.msra.mxu0 %v537
    %541 = vmatprep.subr.bf16.mxu0 0
    %542 = vmatpush1.bf16.xpose.msra.mxu0 0
    %543 = vmatprep.subr.bf16.mxu0 0
    %544 = vmatpush1.bf16.xpose.msra.mxu0 0
    %545 = vmatprep.subr.bf16.mxu0 0
    %546 = vmatpush1.bf16.xpose.msra.mxu0 0
    %547 = vmatprep.subr.bf16.mxu0 0
    %548 = vmatpush1.bf16.xpose.msra.mxu0 0
    %549 = vmatprep.subr.bf16.mxu0 0
    %550 = vmatpush1.bf16.xpose.msra.mxu0 0
    %551 = vmatprep.subr.bf16.mxu0 0
    %552 = vmatpush1.bf16.xpose.msra.mxu0 0
    %553 = vmatprep.subr.bf16.mxu0 0
    %554 = vmatpush1.bf16.xpose.msra.mxu0 0
    %555 = vmatprep.subr.bf16.mxu0 0
    %556 = vmatpush1.bf16.xpose.msra.mxu0 0
    %557 = vmatprep.subr.bf16.mxu0 0
    %558 = vmatpush1.bf16.xpose.msra.mxu0 0
    %559 = vmatprep.subr.bf16.mxu0 0
    %560 = vmatpush1.bf16.xpose.msra.mxu0 0
    %561 = vmatprep.subr.bf16.mxu0 0
    %562 = vmatpush1.bf16.xpose.msra.mxu0 0
    %563 = vmatprep.subr.bf16.mxu0 0
    %564 = vmatpush1.bf16.xpose.msra.mxu0 0
    %565 = vmatprep.subr.bf16.mxu0 0
    %566 = vmatpush1.bf16.xpose.msra.mxu0 0
    %567 = vmatprep.subr.bf16.mxu0 0
    %568 = vmatpush1.bf16.xpose.msra.mxu0 0
    %569 = vmatprep.subr.bf16.mxu0 0
    %570 = vmatpush1.bf16.xpose.msra.mxu0 0
    %571 = vmatprep.mubr.bf16.mxu0 0
    %572 = vmatmul.mubr.bf16.gmra.mrb[0].mxu0 %v534
    %v573 = vpop.f32.mrb[0].mxu0
    %v574 = vadd.f32 %v195, %v573
    %v575 = vpop.f32.mrb[0].mxu0
    %v576 = vpop.f32.mrb[0].mxu0
    %v577 = vpop.f32.mrb[0].mxu0
    %578 = vdwg.mxu0
    %v579 = vunpack.c.l.b16 %v279
    %v580 = vpack.c.b16 %v579, %v579
    %581 = vrot.lane.b32.xlu0 %v580, 96
    %v582 = vpop.permute.xlu0 %581
    %v584 = vsel %vm284, %v279, 0
    %v587 = vsel %vm284, %v582, 0
    %589 = vmatprep.subr.bf16.mxu0 0
    %590 = vmatpush1.bf16.xpose.msra.mxu0 %v587
    %591 = vmatprep.subr.bf16.mxu0 0
    %592 = vmatpush1.bf16.xpose.msra.mxu0 0
    %593 = vmatprep.subr.bf16.mxu0 0
    %594 = vmatpush1.bf16.xpose.msra.mxu0 0
    %595 = vmatprep.subr.bf16.mxu0 0
    %596 = vmatpush1.bf16.xpose.msra.mxu0 0
    %597 = vmatprep.subr.bf16.mxu0 0
    %598 = vmatpush1.bf16.xpose.msra.mxu0 0
    %599 = vmatprep.subr.bf16.mxu0 0
    %600 = vmatpush1.bf16.xpose.msra.mxu0 0
    %601 = vmatprep.subr.bf16.mxu0 0
    %602 = vmatpush1.bf16.xpose.msra.mxu0 0
    %603 = vmatprep.subr.bf16.mxu0 0
    %604 = vmatpush1.bf16.xpose.msra.mxu0 0
    %605 = vmatprep.subr.bf16.mxu0 0
    %606 = vmatpush1.bf16.xpose.msra.mxu0 0
    %607 = vmatprep.subr.bf16.mxu0 0
    %608 = vmatpush1.bf16.xpose.msra.mxu0 0
    %609 = vmatprep.subr.bf16.mxu0 0
    %610 = vmatpush1.bf16.xpose.msra.mxu0 0
    %611 = vmatprep.subr.bf16.mxu0 0
    %612 = vmatpush1.bf16.xpose.msra.mxu0 0
    %613 = vmatprep.subr.bf16.mxu0 0
    %614 = vmatpush1.bf16.xpose.msra.mxu0 0
    %615 = vmatprep.subr.bf16.mxu0 0
    %616 = vmatpush1.bf16.xpose.msra.mxu0 0
    %617 = vmatprep.subr.bf16.mxu0 0
    %618 = vmatpush1.bf16.xpose.msra.mxu0 0
    %619 = vmatprep.subr.bf16.mxu0 0
    %620 = vmatpush1.bf16.xpose.msra.mxu0 0
    %621 = vmatprep.mubr.bf16.mxu0 0
    %622 = vmatmul.mubr.bf16.gmra.mrb[0].mxu0 %v584
    %v623 = vpop.f32.mrb[0].mxu0
    %v624 = vadd.f32 %v196, %v623
    %v625 = vpop.f32.mrb[0].mxu0
    %v626 = vpop.f32.mrb[0].mxu0
    %v627 = vpop.f32.mrb[0].mxu0
    %628 = vdwg.mxu0
    %v629 = vunpack.c.l.b16 %v281
    %v630 = vpack.c.b16 %v629, %v629
    %631 = vrot.lane.b32.xlu0 %v630, 96
    %v632 = vpop.permute.xlu0 %631
    %v634 = vsel %vm284, %v281, 0
    %v637 = vsel %vm284, %v632, 0
    %639 = vmatprep.subr.bf16.mxu0 0
    %640 = vmatpush1.bf16.xpose.msra.mxu0 %v637
    %641 = vmatprep.subr.bf16.mxu0 0
    %642 = vmatpush1.bf16.xpose.msra.mxu0 0
    %643 = vmatprep.subr.bf16.mxu0 0
    %644 = vmatpush1.bf16.xpose.msra.mxu0 0
    %645 = vmatprep.subr.bf16.mxu0 0
    %646 = vmatpush1.bf16.xpose.msra.mxu0 0
    %647 = vmatprep.subr.bf16.mxu0 0
    %648 = vmatpush1.bf16.xpose.msra.mxu0 0
    %649 = vmatprep.subr.bf16.mxu0 0
    %650 = vmatpush1.bf16.xpose.msra.mxu0 0
    %651 = vmatprep.subr.bf16.mxu0 0
    %652 = vmatpush1.bf16.xpose.msra.mxu0 0
    %653 = vmatprep.subr.bf16.mxu0 0
    %654 = vmatpush1.bf16.xpose.msra.mxu0 0
    %655 = vmatprep.subr.bf16.mxu0 0
    %656 = vmatpush1.bf16.xpose.msra.mxu0 0
    %657 = vmatprep.subr.bf16.mxu0 0
    %658 = vmatpush1.bf16.xpose.msra.mxu0 0
    %659 = vmatprep.subr.bf16.mxu0 0
    %660 = vmatpush1.bf16.xpose.msra.mxu0 0
    %661 = vmatprep.subr.bf16.mxu0 0
    %662 = vmatpush1.bf16.xpose.msra.mxu0 0
    %663 = vmatprep.subr.bf16.mxu0 0
    %664 = vmatpush1.bf16.xpose.msra.mxu0 0
    %665 = vmatprep.subr.bf16.mxu0 0
    %666 = vmatpush1.bf16.xpose.msra.mxu0 0
    %667 = vmatprep.subr.bf16.mxu0 0
    %668 = vmatpush1.bf16.xpose.msra.mxu0 0
    %669 = vmatprep.subr.bf16.mxu0 0
    %670 = vmatpush1.bf16.xpose.msra.mxu0 0
    %671 = vmatprep.mubr.bf16.mxu0 0
    %672 = vmatmul.mubr.bf16.gmra.mrb[0].mxu0 %v634
    %v673 = vpop.f32.mrb[0].mxu0
    %v674 = vadd.f32 %v197, %v673
    %v675 = vpop.f32.mrb[0].mxu0
    %v676 = vpop.f32.mrb[0].mxu0
    %v677 = vpop.f32.mrb[0].mxu0
    %678 = vdwg.mxu0
    %v679 = vsel %vm284, %v326, -inf
    %680 = vmax.xlane.f32.xlu0 %v679
    %v681 = vpop.xlane.xlu0 %680
    %v682 = vsel %vm284, %v374, -inf
    %683 = vmax.xlane.f32.xlu0 %v682
    %v684 = vpop.xlane.xlu0 %683
    %v685 = vsel %vm284, %v424, -inf
    %686 = vmax.xlane.f32.xlu0 %v685
    %v687 = vpop.xlane.xlu0 %686
    %v688 = vsel %vm284, %v474, -inf
    %689 = vmax.xlane.f32.xlu0 %v688
    %v690 = vpop.xlane.xlu0 %689
    %v691 = vsel %vm284, %v524, -inf
    %692 = vmax.xlane.f32.xlu0 %v691
    %v693 = vpop.xlane.xlu0 %692
    %v694 = vsel %vm284, %v574, -inf
    %695 = vmax.xlane.f32.xlu0 %v694
    %v696 = vpop.xlane.xlu0 %695
    %v697 = vsel %vm284, %v624, -inf
    %698 = vmax.xlane.f32.xlu0 %v697
    %v699 = vpop.xlane.xlu0 %698
    %v700 = vsel %vm284, %v674, -inf
    %701 = vmax.xlane.f32.xlu0 %v700
    %v702 = vpop.xlane.xlu0 %701
    %v703 = vsub.f32 %v326, %v681
    %v704 = vsub.f32 %v374, %v684
    %v705 = vsub.f32 %v424, %v687
    %v706 = vsub.f32 %v474, %v690
    %v707 = vsub.f32 %v524, %v693
    %v708 = vsub.f32 %v574, %v696
    %v709 = vsub.f32 %v624, %v699
    %v710 = vsub.f32 %v674, %v702
    %v711 = vmul.f32 %v703, 1.442695
    %v712 = vpow.pop %v711
    %v713 = vmul.f32 %v704, 1.442695
    %v714 = vpow.pop %v713
    %v715 = vmul.f32 %v705, 1.442695
    %v716 = vpow.pop %v715
    %v717 = vmul.f32 %v706, 1.442695
    %v718 = vpow.pop %v717
    %v719 = vmul.f32 %v707, 1.442695
    %v720 = vpow.pop %v719
    %v721 = vmul.f32 %v708, 1.442695
    %v722 = vpow.pop %v721
    %v723 = vmul.f32 %v709, 1.442695
    %v724 = vpow.pop %v723
    %v725 = vmul.f32 %v710, 1.442695
    %v726 = vpow.pop %v725
    %v727 = vsel %vm284, %v712, 0.0
    %728 = vadd.xlane.f32.xlu0 %v727
    %v729 = vpop.xlane.xlu0 %728
    %v730 = vsel %vm284, %v714, 0.0
    %731 = vadd.xlane.f32.xlu0 %v730
    %v732 = vpop.xlane.xlu0 %731
    %v733 = vsel %vm284, %v716, 0.0
    %734 = vadd.xlane.f32.xlu0 %v733
    %v735 = vpop.xlane.xlu0 %734
    %v736 = vsel %vm284, %v718, 0.0
    %737 = vadd.xlane.f32.xlu0 %v736
    %v738 = vpop.xlane.xlu0 %737
    %v739 = vsel %vm284, %v720, 0.0
    %740 = vadd.xlane.f32.xlu0 %v739
    %v741 = vpop.xlane.xlu0 %740
    %v742 = vsel %vm284, %v722, 0.0
    %743 = vadd.xlane.f32.xlu0 %v742
    %v744 = vpop.xlane.xlu0 %743
    %v745 = vsel %vm284, %v724, 0.0
    %746 = vadd.xlane.f32.xlu0 %v745
    %v747 = vpop.xlane.xlu0 %746
    %v748 = vsel %vm284, %v726, 0.0
    %749 = vadd.xlane.f32.xlu0 %v748
    %v750 = vpop.xlane.xlu0 %749
    %v751 = vrcp.pop %v729
    %v752 = vrcp.pop %v732
    %v753 = vrcp.pop %v735
    %v754 = vrcp.pop %v738
    %v755 = vrcp.pop %v741
    %v756 = vrcp.pop %v744
    %v757 = vrcp.pop %v747
    %v758 = vrcp.pop %v750
    %v759 = vmul.f32 %v712, %v751
    %v760 = vmul.f32 %v714, %v752
    %v761 = vmul.f32 %v716, %v753
    %v762 = vmul.f32 %v718, %v754
    %v763 = vmul.f32 %v720, %v755
    %v764 = vmul.f32 %v722, %v756
    %v765 = vmul.f32 %v724, %v757
    %v766 = vmul.f32 %v726, %v758
    %v767 = vpack.c.bf16 %v759, %v759
    %v768 = vpack.c.bf16 %v760, %v760
    %v769 = vpack.c.bf16 %v761, %v761
    %v770 = vpack.c.bf16 %v762, %v762
    %v771 = vpack.c.bf16 %v763, %v763
    %v772 = vpack.c.bf16 %v764, %v764
    %v773 = vpack.c.bf16 %v765, %v765
    %v774 = vpack.c.bf16 %v766, %v766
    %775 = vrot.lane.b32.xlu0 %v268, 64
    %v776 = vpop.permute.xlu0 %775
    %v778 = vsel %vm284, %v767, 0
    %vm780 = vcmask 1043456
    %v782 = vsel %vm780, %v776, 0
    %784 = vmatprep.subr.bf16.mxu0 0
    %785 = vmatpush1.bf16.msra.mxu0 %v782
    %786 = vmatprep.subr.bf16.mxu0 0
    %787 = vmatpush1.bf16.msra.mxu0 0
    %788 = vmatprep.subr.bf16.mxu0 0
    %789 = vmatpush1.bf16.msra.mxu0 0
    %790 = vmatprep.subr.bf16.mxu0 0
    %791 = vmatpush1.bf16.msra.mxu0 0
    %792 = vmatprep.subr.bf16.mxu0 0
    %793 = vmatpush1.bf16.msra.mxu0 0
    %794 = vmatprep.subr.bf16.mxu0 0
    %795 = vmatpush1.bf16.msra.mxu0 0
    %796 = vmatprep.subr.bf16.mxu0 0
    %797 = vmatpush1.bf16.msra.mxu0 0
    %798 = vmatprep.subr.bf16.mxu0 0
    %799 = vmatpush1.bf16.msra.mxu0 0
    %800 = vmatprep.subr.bf16.mxu0 0
    %801 = vmatpush1.bf16.msra.mxu0 0
    %802 = vmatprep.subr.bf16.mxu0 0
    %803 = vmatpush1.bf16.msra.mxu0 0
    %804 = vmatprep.subr.bf16.mxu0 0
    %805 = vmatpush1.bf16.msra.mxu0 0
    %806 = vmatprep.subr.bf16.mxu0 0
    %807 = vmatpush1.bf16.msra.mxu0 0
    %808 = vmatprep.subr.bf16.mxu0 0
    %809 = vmatpush1.bf16.msra.mxu0 0
    %810 = vmatprep.subr.bf16.mxu0 0
    %811 = vmatpush1.bf16.msra.mxu0 0
    %812 = vmatprep.subr.bf16.mxu0 0
    %813 = vmatpush1.bf16.msra.mxu0 0
    %814 = vmatprep.subr.bf16.mxu0 0
    %815 = vmatpush1.bf16.msra.mxu0 0
    %816 = vmatprep.mubr.bf16.mxu0 0
    %817 = vmatmul.mubr.bf16.gmra.mrb[0].mxu0 %v778
    %v818 = vpop.f32.mrb[0].mxu0
    %v819 = vadd.f32 0.0, %v818
    %v820 = vpop.f32.mrb[0].mxu0
    %v821 = vpop.f32.mrb[0].mxu0
    %v822 = vpop.f32.mrb[0].mxu0
    %823 = vdwg.mxu0
    %824 = vrot.lane.b32.xlu0 %v269, 64
    %v825 = vpop.permute.xlu0 %824
    %v827 = vsel %vm284, %v768, 0
    %v830 = vsel %vm780, %v825, 0
    %832 = vmatprep.subr.bf16.mxu0 0
    %833 = vmatpush1.bf16.msra.mxu0 %v830
    %834 = vmatprep.subr.bf16.mxu0 0
    %835 = vmatpush1.bf16.msra.mxu0 0
    %836 = vmatprep.subr.bf16.mxu0 0
    %837 = vmatpush1.bf16.msra.mxu0 0
    %838 = vmatprep.subr.bf16.mxu0 0
    %839 = vmatpush1.bf16.msra.mxu0 0
    %840 = vmatprep.subr.bf16.mxu0 0
    %841 = vmatpush1.bf16.msra.mxu0 0
    %842 = vmatprep.subr.bf16.mxu0 0
    %843 = vmatpush1.bf16.msra.mxu0 0
    %844 = vmatprep.subr.bf16.mxu0 0
    %845 = vmatpush1.bf16.msra.mxu0 0
    %846 = vmatprep.subr.bf16.mxu0 0
    %847 = vmatpush1.bf16.msra.mxu0 0
    %848 = vmatprep.subr.bf16.mxu0 0
    %849 = vmatpush1.bf16.msra.mxu0 0
    %850 = vmatprep.subr.bf16.mxu0 0
    %851 = vmatpush1.bf16.msra.mxu0 0
    %852 = vmatprep.subr.bf16.mxu0 0
    %853 = vmatpush1.bf16.msra.mxu0 0
    %854 = vmatprep.subr.bf16.mxu0 0
    %855 = vmatpush1.bf16.msra.mxu0 0
    %856 = vmatprep.subr.bf16.mxu0 0
    %857 = vmatpush1.bf16.msra.mxu0 0
    %858 = vmatprep.subr.bf16.mxu0 0
    %859 = vmatpush1.bf16.msra.mxu0 0
    %860 = vmatprep.subr.bf16.mxu0 0
    %861 = vmatpush1.bf16.msra.mxu0 0
    %862 = vmatprep.subr.bf16.mxu0 0
    %863 = vmatpush1.bf16.msra.mxu0 0
    %864 = vmatprep.mubr.bf16.mxu0 0
    %865 = vmatmul.mubr.bf16.gmra.mrb[0].mxu0 %v827
    %v866 = vpop.f32.mrb[0].mxu0
    %v867 = vadd.f32 0.0, %v866
    %v868 = vpop.f32.mrb[0].mxu0
    %v869 = vpop.f32.mrb[0].mxu0
    %v870 = vpop.f32.mrb[0].mxu0
    %871 = vdwg.mxu0
    %872 = vrot.lane.b32.xlu0 %v380, 64
    %v873 = vpop.permute.xlu0 %872
    %v875 = vsel %vm284, %v769, 0
    %v878 = vsel %vm780, %v873, 0
    %880 = vmatprep.subr.bf16.mxu0 0
    %881 = vmatpush1.bf16.msra.mxu0 %v878
    %882 = vmatprep.subr.bf16.mxu0 0
    %883 = vmatpush1.bf16.msra.mxu0 0
    %884 = vmatprep.subr.bf16.mxu0 0
    %885 = vmatpush1.bf16.msra.mxu0 0
    %886 = vmatprep.subr.bf16.mxu0 0
    %887 = vmatpush1.bf16.msra.mxu0 0
    %888 = vmatprep.subr.bf16.mxu0 0
    %889 = vmatpush1.bf16.msra.mxu0 0
    %890 = vmatprep.subr.bf16.mxu0 0
    %891 = vmatpush1.bf16.msra.mxu0 0
    %892 = vmatprep.subr.bf16.mxu0 0
    %893 = vmatpush1.bf16.msra.mxu0 0
    %894 = vmatprep.subr.bf16.mxu0 0
    %895 = vmatpush1.bf16.msra.mxu0 0
    %896 = vmatprep.subr.bf16.mxu0 0
    %897 = vmatpush1.bf16.msra.mxu0 0
    %898 = vmatprep.subr.bf16.mxu0 0
    %899 = vmatpush1.bf16.msra.mxu0 0
    %900 = vmatprep.subr.bf16.mxu0 0
    %901 = vmatpush1.bf16.msra.mxu0 0
    %902 = vmatprep.subr.bf16.mxu0 0
    %903 = vmatpush1.bf16.msra.mxu0 0
    %904 = vmatprep.subr.bf16.mxu0 0
    %905 = vmatpush1.bf16.msra.mxu0 0
    %906 = vmatprep.subr.bf16.mxu0 0
    %907 = vmatpush1.bf16.msra.mxu0 0
    %908 = vmatprep.subr.bf16.mxu0 0
    %909 = vmatpush1.bf16.msra.mxu0 0
    %910 = vmatprep.subr.bf16.mxu0 0
    %911 = vmatpush1.bf16.msra.mxu0 0
    %912 = vmatprep.mubr.bf16.mxu0 0
    %913 = vmatmul.mubr.bf16.gmra.mrb[0].mxu0 %v875
    %v914 = vpop.f32.mrb[0].mxu0
    %v915 = vadd.f32 0.0, %v914
    %v916 = vpop.f32.mrb[0].mxu0
    %v917 = vpop.f32.mrb[0].mxu0
    %v918 = vpop.f32.mrb[0].mxu0
    %919 = vdwg.mxu0
    %920 = vrot.lane.b32.xlu0 %v430, 64
    %v921 = vpop.permute.xlu0 %920
    %v923 = vsel %vm284, %v770, 0
    %v926 = vsel %vm780, %v921, 0
    %928 = vmatprep.subr.bf16.mxu0 0
    %929 = vmatpush1.bf16.msra.mxu0 %v926
    %930 = vmatprep.subr.bf16.mxu0 0
    %931 = vmatpush1.bf16.msra.mxu0 0
    %932 = vmatprep.subr.bf16.mxu0 0
    %933 = vmatpush1.bf16.msra.mxu0 0
    %934 = vmatprep.subr.bf16.mxu0 0
    %935 = vmatpush1.bf16.msra.mxu0 0
    %936 = vmatprep.subr.bf16.mxu0 0
    %937 = vmatpush1.bf16.msra.mxu0 0
    %938 = vmatprep.subr.bf16.mxu0 0
    %939 = vmatpush1.bf16.msra.mxu0 0
    %940 = vmatprep.subr.bf16.mxu0 0
    %941 = vmatpush1.bf16.msra.mxu0 0
    %942 = vmatprep.subr.bf16.mxu0 0
    %943 = vmatpush1.bf16.msra.mxu0 0
    %944 = vmatprep.subr.bf16.mxu0 0
    %945 = vmatpush1.bf16.msra.mxu0 0
    %946 = vmatprep.subr.bf16.mxu0 0
    %947 = vmatpush1.bf16.msra.mxu0 0
    %948 = vmatprep.subr.bf16.mxu0 0
    %949 = vmatpush1.bf16.msra.mxu0 0
    %950 = vmatprep.subr.bf16.mxu0 0
    %951 = vmatpush1.bf16.msra.mxu0 0
    %952 = vmatprep.subr.bf16.mxu0 0
    %953 = vmatpush1.bf16.msra.mxu0 0
    %954 = vmatprep.subr.bf16.mxu0 0
    %955 = vmatpush1.bf16.msra.mxu0 0
    %956 = vmatprep.subr.bf16.mxu0 0
    %957 = vmatpush1.bf16.msra.mxu0 0
    %958 = vmatprep.subr.bf16.mxu0 0
    %959 = vmatpush1.bf16.msra.mxu0 0
    %960 = vmatprep.mubr.bf16.mxu0 0
    %961 = vmatmul.mubr.bf16.gmra.mrb[0].mxu0 %v923
    %v962 = vpop.f32.mrb[0].mxu0
    %v963 = vadd.f32 0.0, %v962
    %v964 = vpop.f32.mrb[0].mxu0
    %v965 = vpop.f32.mrb[0].mxu0
    %v966 = vpop.f32.mrb[0].mxu0
    %967 = vdwg.mxu0
    %968 = vrot.lane.b32.xlu0 %v480, 64
    %v969 = vpop.permute.xlu0 %968
    %v971 = vsel %vm284, %v771, 0
    %v974 = vsel %vm780, %v969, 0
    %976 = vmatprep.subr.bf16.mxu0 0
    %977 = vmatpush1.bf16.msra.mxu0 %v974
    %978 = vmatprep.subr.bf16.mxu0 0
    %979 = vmatpush1.bf16.msra.mxu0 0
    %980 = vmatprep.subr.bf16.mxu0 0
    %981 = vmatpush1.bf16.msra.mxu0 0
    %982 = vmatprep.subr.bf16.mxu0 0
    %983 = vmatpush1.bf16.msra.mxu0 0
    %984 = vmatprep.subr.bf16.mxu0 0
    %985 = vmatpush1.bf16.msra.mxu0 0
    %986 = vmatprep.subr.bf16.mxu0 0
    %987 = vmatpush1.bf16.msra.mxu0 0
    %988 = vmatprep.subr.bf16.mxu0 0
    %989 = vmatpush1.bf16.msra.mxu0 0
    %990 = vmatprep.subr.bf16.mxu0 0
    %991 = vmatpush1.bf16.msra.mxu0 0
    %992 = vmatprep.subr.bf16.mxu0 0
    %993 = vmatpush1.bf16.msra.mxu0 0
    %994 = vmatprep.subr.bf16.mxu0 0
    %995 = vmatpush1.bf16.msra.mxu0 0
    %996 = vmatprep.subr.bf16.mxu0 0
    %997 = vmatpush1.bf16.msra.mxu0 0
    %998 = vmatprep.subr.bf16.mxu0 0
    %999 = vmatpush1.bf16.msra.mxu0 0
    %1000 = vmatprep.subr.bf16.mxu0 0
    %1001 = vmatpush1.bf16.msra.mxu0 0
    %1002 = vmatprep.subr.bf16.mxu0 0
    %1003 = vmatpush1.bf16.msra.mxu0 0
    %1004 = vmatprep.subr.bf16.mxu0 0
    %1005 = vmatpush1.bf16.msra.mxu0 0
    %1006 = vmatprep.subr.bf16.mxu0 0
    %1007 = vmatpush1.bf16.msra.mxu0 0
    %1008 = vmatprep.mubr.bf16.mxu0 0
    %1009 = vmatmul.mubr.bf16.gmra.mrb[0].mxu0 %v971
    %v1010 = vpop.f32.mrb[0].mxu0
    %v1011 = vadd.f32 0.0, %v1010
    %v1012 = vpop.f32.mrb[0].mxu0
    %v1013 = vpop.f32.mrb[0].mxu0
    %v1014 = vpop.f32.mrb[0].mxu0
    %1015 = vdwg.mxu0
    %1016 = vrot.lane.b32.xlu0 %v530, 64
    %v1017 = vpop.permute.xlu0 %1016
    %v1019 = vsel %vm284, %v772, 0
    %v1022 = vsel %vm780, %v1017, 0
    %1024 = vmatprep.subr.bf16.mxu0 0
    %1025 = vmatpush1.bf16.msra.mxu0 %v1022
    %1026 = vmatprep.subr.bf16.mxu0 0
    %1027 = vmatpush1.bf16.msra.mxu0 0
    %1028 = vmatprep.subr.bf16.mxu0 0
    %1029 = vmatpush1.bf16.msra.mxu0 0
    %1030 = vmatprep.subr.bf16.mxu0 0
    %1031 = vmatpush1.bf16.msra.mxu0 0
    %1032 = vmatprep.subr.bf16.mxu0 0
    %1033 = vmatpush1.bf16.msra.mxu0 0
    %1034 = vmatprep.subr.bf16.mxu0 0
    %1035 = vmatpush1.bf16.msra.mxu0 0
    %1036 = vmatprep.subr.bf16.mxu0 0
    %1037 = vmatpush1.bf16.msra.mxu0 0
    %1038 = vmatprep.subr.bf16.mxu0 0
    %1039 = vmatpush1.bf16.msra.mxu0 0
    %1040 = vmatprep.subr.bf16.mxu0 0
    %1041 = vmatpush1.bf16.msra.mxu0 0
    %1042 = vmatprep.subr.bf16.mxu0 0
    %1043 = vmatpush1.bf16.msra.mxu0 0
    %1044 = vmatprep.subr.bf16.mxu0 0
    %1045 = vmatpush1.bf16.msra.mxu0 0
    %1046 = vmatprep.subr.bf16.mxu0 0
    %1047 = vmatpush1.bf16.msra.mxu0 0
    %1048 = vmatprep.subr.bf16.mxu0 0
    %1049 = vmatpush1.bf16.msra.mxu0 0
    %1050 = vmatprep.subr.bf16.mxu0 0
    %1051 = vmatpush1.bf16.msra.mxu0 0
    %1052 = vmatprep.subr.bf16.mxu0 0
    %1053 = vmatpush1.bf16.msra.mxu0 0
    %1054 = vmatprep.subr.bf16.mxu0 0
    %1055 = vmatpush1.bf16.msra.mxu0 0
    %1056 = vmatprep.mubr.bf16.mxu0 0
    %1057 = vmatmul.mubr.bf16.gmra.mrb[0].mxu0 %v1019
    %v1058 = vpop.f32.mrb[0].mxu0
    %v1059 = vadd.f32 0.0, %v1058
    %v1060 = vpop.f32.mrb[0].mxu0
    %v1061 = vpop.f32.mrb[0].mxu0
    %v1062 = vpop.f32.mrb[0].mxu0
    %1063 = vdwg.mxu0
    %1064 = vrot.lane.b32.xlu0 %v580, 64
    %v1065 = vpop.permute.xlu0 %1064
    %v1067 = vsel %vm284, %v773, 0
    %v1070 = vsel %vm780, %v1065, 0
    %1072 = vmatprep.subr.bf16.mxu0 0
    %1073 = vmatpush1.bf16.msra.mxu0 %v1070
    %1074 = vmatprep.subr.bf16.mxu0 0
    %1075 = vmatpush1.bf16.msra.mxu0 0
    %1076 = vmatprep.subr.bf16.mxu0 0
    %1077 = vmatpush1.bf16.msra.mxu0 0
    %1078 = vmatprep.subr.bf16.mxu0 0
    %1079 = vmatpush1.bf16.msra.mxu0 0
    %1080 = vmatprep.subr.bf16.mxu0 0
    %1081 = vmatpush1.bf16.msra.mxu0 0
    %1082 = vmatprep.subr.bf16.mxu0 0
    %1083 = vmatpush1.bf16.msra.mxu0 0
    %1084 = vmatprep.subr.bf16.mxu0 0
    %1085 = vmatpush1.bf16.msra.mxu0 0
    %1086 = vmatprep.subr.bf16.mxu0 0
    %1087 = vmatpush1.bf16.msra.mxu0 0
    %1088 = vmatprep.subr.bf16.mxu0 0
    %1089 = vmatpush1.bf16.msra.mxu0 0
    %1090 = vmatprep.subr.bf16.mxu0 0
    %1091 = vmatpush1.bf16.msra.mxu0 0
    %1092 = vmatprep.subr.bf16.mxu0 0
    %1093 = vmatpush1.bf16.msra.mxu0 0
    %1094 = vmatprep.subr.bf16.mxu0 0
    %1095 = vmatpush1.bf16.msra.mxu0 0
    %1096 = vmatprep.subr.bf16.mxu0 0
    %1097 = vmatpush1.bf16.msra.mxu0 0
    %1098 = vmatprep.subr.bf16.mxu0 0
    %1099 = vmatpush1.bf16.msra.mxu0 0
    %1100 = vmatprep.subr.bf16.mxu0 0
    %1101 = vmatpush1.bf16.msra.mxu0 0
    %1102 = vmatprep.subr.bf16.mxu0 0
    %1103 = vmatpush1.bf16.msra.mxu0 0
    %1104 = vmatprep.mubr.bf16.mxu0 0
    %1105 = vmatmul.mubr.bf16.gmra.mrb[0].mxu0 %v1067
    %v1106 = vpop.f32.mrb[0].mxu0
    %v1107 = vadd.f32 0.0, %v1106
    %v1108 = vpop.f32.mrb[0].mxu0
    %v1109 = vpop.f32.mrb[0].mxu0
    %v1110 = vpop.f32.mrb[0].mxu0
    %1111 = vdwg.mxu0
    %1112 = vrot.lane.b32.xlu0 %v630, 64
    %v1113 = vpop.permute.xlu0 %1112
    %v1115 = vsel %vm284, %v774, 0
    %v1118 = vsel %vm780, %v1113, 0
    %1120 = vmatprep.subr.bf16.mxu0 0
    %1121 = vmatpush1.bf16.msra.mxu0 %v1118
    %1122 = vmatprep.subr.bf16.mxu0 0
    %1123 = vmatpush1.bf16.msra.mxu0 0
    %1124 = vmatprep.subr.bf16.mxu0 0
    %1125 = vmatpush1.bf16.msra.mxu0 0
    %1126 = vmatprep.subr.bf16.mxu0 0
    %1127 = vmatpush1.bf16.msra.mxu0 0
    %1128 = vmatprep.subr.bf16.mxu0 0
    %1129 = vmatpush1.bf16.msra.mxu0 0
    %1130 = vmatprep.subr.bf16.mxu0 0
    %1131 = vmatpush1.bf16.msra.mxu0 0
    %1132 = vmatprep.subr.bf16.mxu0 0
    %1133 = vmatpush1.bf16.msra.mxu0 0
    %1134 = vmatprep.subr.bf16.mxu0 0
    %1135 = vmatpush1.bf16.msra.mxu0 0
    %1136 = vmatprep.subr.bf16.mxu0 0
    %1137 = vmatpush1.bf16.msra.mxu0 0
    %1138 = vmatprep.subr.bf16.mxu0 0
    %1139 = vmatpush1.bf16.msra.mxu0 0
    %1140 = vmatprep.subr.bf16.mxu0 0
    %1141 = vmatpush1.bf16.msra.mxu0 0
    %1142 = vmatprep.subr.bf16.mxu0 0
    %1143 = vmatpush1.bf16.msra.mxu0 0
    %1144 = vmatprep.subr.bf16.mxu0 0
    %1145 = vmatpush1.bf16.msra.mxu0 0
    %1146 = vmatprep.subr.bf16.mxu0 0
    %1147 = vmatpush1.bf16.msra.mxu0 0
    %1148 = vmatprep.subr.bf16.mxu0 0
    %1149 = vmatpush1.bf16.msra.mxu0 0
    %1150 = vmatprep.subr.bf16.mxu0 0
    %1151 = vmatpush1.bf16.msra.mxu0 0
    %1152 = vmatprep.mubr.bf16.mxu0 0
    %1153 = vmatmul.mubr.bf16.gmra.mrb[0].mxu0 %v1115
    %v1154 = vpop.f32.mrb[0].mxu0
    %v1155 = vadd.f32 0.0, %v1154
    %v1156 = vpop.f32.mrb[0].mxu0
    %v1157 = vpop.f32.mrb[0].mxu0
    %v1158 = vpop.f32.mrb[0].mxu0
    %1159 = vdwg.mxu0
    %1162 = vrot.lane.b32.xlu0 %v915, 8
    %v1163 = vpop.permute.xlu0 %1162
    %1164 = vrot.lane.b32.xlu0 %v963, 8
    %v1165 = vpop.permute.xlu0 %1164
    %1170 = vrot.lane.b32.xlu0 %v1011, 16
    %v1171 = vpop.permute.xlu0 %1170
    %1172 = vrot.lane.b32.xlu0 %v1059, 16
    %v1173 = vpop.permute.xlu0 %1172
    %1178 = vrot.lane.b32.xlu0 %v1107, 24
    %v1179 = vpop.permute.xlu0 %1178
    %1180 = vrot.lane.b32.xlu0 %v1155, 24
    %v1181 = vpop.permute.xlu0 %1180
    %v1184 = vsel %vm284, %v819, %v1163
    %v1185 = vsel %vm284, %v867, %v1165
    %vm1186 = vcmask 130048
    %v1187 = vsel %vm1186, %v1184, %v1171
    %v1188 = vsel %vm1186, %v1185, %v1173
    %vm1189 = vcmask 195584
    %v1190 = vsel %vm1189, %v1187, %v1179
    %v1191 = vsel %vm1189, %v1188, %v1181
    %v1192 = vpack.c.bf16 %v1191, %v1190
    %v1193 = vld [vmem:[%s6] sm:$0xf]
    %v1194 = vld [vmem:[%s6 + $0x4] sm:$0xf]
    %v1195 = vld [vmem:[%s6 + $0x8] sm:$0xf]
    %v1196 = vld [vmem:[%s6 + $0xc] sm:$0xf]
    %v1197 = vlaneseq
    %v1198 = vshrl.u32 %v1197, 7
    %v1199 = vsub.s32 2, %v1198
    %v1200 = vrot.slane %v198, %v1199
    %v1205 = vunpack.c.l.b16 %v1193
    %v1206 = vunpack.c.l.b16 %v1194
    %v1207 = vunpack.c.l.b16 %v1195
    %v1208 = vunpack.c.l.b16 %v1196
    %v1209 = vpack.c.b16 %v1206, %v1205
    %v1210 = vpack.c.b16 %v1208, %v1207
    %v1214 = vsel %vm150, %v1192, 0
    %1216 = vmatprep.subr.bf16.mxu0 0
    %1217 = vmatpush1.bf16.msra.mxu0 %v1209
    %1218 = vmatprep.subr.bf16.mxu0 0
    %1219 = vmatpush1.bf16.msra.mxu0 %v1210
    %1220 = vmatprep.subr.bf16.mxu0 0
    %1221 = vmatpush1.bf16.msra.mxu0 0
    %1222 = vmatprep.subr.bf16.mxu0 0
    %1223 = vmatpush1.bf16.msra.mxu0 0
    %1224 = vmatprep.subr.bf16.mxu0 0
    %1225 = vmatpush1.bf16.msra.mxu0 0
    %1226 = vmatprep.subr.bf16.mxu0 0
    %1227 = vmatpush1.bf16.msra.mxu0 0
    %1228 = vmatprep.subr.bf16.mxu0 0
    %1229 = vmatpush1.bf16.msra.mxu0 0
    %1230 = vmatprep.subr.bf16.mxu0 0
    %1231 = vmatpush1.bf16.msra.mxu0 0
    %1232 = vmatprep.subr.bf16.mxu0 0
    %1233 = vmatpush1.bf16.msra.mxu0 0
    %1234 = vmatprep.subr.bf16.mxu0 0
    %1235 = vmatpush1.bf16.msra.mxu0 0
    %1236 = vmatprep.subr.bf16.mxu0 0
    %1237 = vmatpush1.bf16.msra.mxu0 0
    %1238 = vmatprep.subr.bf16.mxu0 0
    %1239 = vmatpush1.bf16.msra.mxu0 0
    %1240 = vmatprep.subr.bf16.mxu0 0
    %1241 = vmatpush1.bf16.msra.mxu0 0
    %1242 = vmatprep.subr.bf16.mxu0 0
    %1243 = vmatpush1.bf16.msra.mxu0 0
    %1244 = vmatprep.subr.bf16.mxu0 0
    %1245 = vmatpush1.bf16.msra.mxu0 0
    %1246 = vmatprep.subr.bf16.mxu0 0
    %1247 = vmatpush1.bf16.msra.mxu0 0
    %1248 = vmatprep.mubr.bf16.mxu0 0
    %1249 = vmatmul.mubr.bf16.gmra.mrb[0].mxu0 %v1214
    %v1250 = vpop.f32.mrb[0].mxu0
    %v1251 = vadd.f32 %v1200, %v1250
    %v1252 = vpop.f32.mrb[0].mxu0
    %v1253 = vpop.f32.mrb[0].mxu0
    %v1254 = vadd.f32 %v1200, %v1253
    %v1255 = vpop.f32.mrb[0].mxu0
    %1256 = vdwg.mxu0
    %v1257 = vadd.f32 %v188, %v1251
    %v1258 = vadd.f32 %v189, %v1254
    %v1259 = vsel %vm150, %v1257, 0.0
    %1260 = vadd.xlane.f32.xlu0 %v1259
    %v1261 = vpop.xlane.xlu0 %1260
    %v1262 = vsel %vm150, %v1258, 0.0
    %1263 = vadd.xlane.f32.xlu0 %v1262
    %v1264 = vpop.xlane.xlu0 %1263
    %v1265 = vmul.f32 %v1261, %v157
    %v1266 = vmul.f32 %v1264, %v157
    %v1267 = vsub.f32 %v1257, %v1265
    %v1268 = vsub.f32 %v1258, %v1266
    %v1269 = vmul.f32 %v1267, %v1267
    %v1270 = vmul.f32 %v1268, %v1268
    %v1271 = vsel %vm150, %v1269, 0.0
    %1272 = vadd.xlane.f32.xlu0 %v1271
    %v1273 = vpop.xlane.xlu0 %1272
    %v1274 = vsel %vm150, %v1270, 0.0
    %1275 = vadd.xlane.f32.xlu0 %v1274
    %v1276 = vpop.xlane.xlu0 %1275
    %v1277 = vmul.f32 %v1273, %v157
    %v1278 = vmul.f32 %v1276, %v157
    %v1279 = vadd.f32 %v1277, 1e-12
    %v1280 = vadd.f32 %v1278, 1e-12
    %v1281 = vrsqrt.pop %v1279
    %v1282 = vrsqrt.pop %v1280
    %v1283 = vmul.f32 %v1267, %v1281
    %v1284 = vmul.f32 %v1268, %v1282
    %v1285 = vlaneseq
    %v1286 = vshrl.u32 %v1285, 7
    %v1287 = vsub.s32 3, %v1286
    %v1288 = vrot.slane %v198, %v1287
    %v1289 = vmul.f32 %v1283, %v1288
    %v1290 = vmul.f32 %v1284, %v1288
    %v1291 = vlaneseq
    %v1292 = vshrl.u32 %v1291, 7
    %v1293 = vsub.s32 4, %v1292
    %v1294 = vrot.slane %v198, %v1293
    %v1295 = vadd.f32 %v1289, %v1294
    %v1296 = vadd.f32 %v1290, %v1294
    %v1297 = vpack.c.bf16 %v1296, %v1295
    %v1298 = vld [vmem:[%s7] sm:$0xf]
    %v1299 = vld [vmem:[%s7 + $0x4] sm:$0xf]
    %v1300 = vld [vmem:[%s7 + $0x8] sm:$0xf]
    %v1301 = vld [vmem:[%s7 + $0xc] sm:$0xf]
    %v1302 = vlaneseq
    %v1303 = vshrl.u32 %v1302, 7
    %v1304 = vsub.s32 1, %v1303
    %v1305 = vrot.slane %v198, %v1304
    %v1310 = vunpack.c.l.b16 %v1298
    %v1311 = vunpack.c.l.b16 %v1299
    %v1312 = vunpack.c.l.b16 %v1300
    %v1313 = vunpack.c.l.b16 %v1301
    %v1314 = vpack.c.b16 %v1311, %v1310
    %v1315 = vpack.c.b16 %v1313, %v1312
    %v1319 = vsel %vm150, %v1297, 0
    %1321 = vmatprep.subr.bf16.mxu0 0
    %1322 = vmatpush1.bf16.msra.mxu0 %v1314
    %1323 = vmatprep.subr.bf16.mxu0 0
    %1324 = vmatpush1.bf16.msra.mxu0 %v1315
    %1325 = vmatprep.subr.bf16.mxu0 0
    %1326 = vmatpush1.bf16.msra.mxu0 0
    %1327 = vmatprep.subr.bf16.mxu0 0
    %1328 = vmatpush1.bf16.msra.mxu0 0
    %1329 = vmatprep.subr.bf16.mxu0 0
    %1330 = vmatpush1.bf16.msra.mxu0 0
    %1331 = vmatprep.subr.bf16.mxu0 0
    %1332 = vmatpush1.bf16.msra.mxu0 0
    %1333 = vmatprep.subr.bf16.mxu0 0
    %1334 = vmatpush1.bf16.msra.mxu0 0
    %1335 = vmatprep.subr.bf16.mxu0 0
    %1336 = vmatpush1.bf16.msra.mxu0 0
    %1337 = vmatprep.subr.bf16.mxu0 0
    %1338 = vmatpush1.bf16.msra.mxu0 0
    %1339 = vmatprep.subr.bf16.mxu0 0
    %1340 = vmatpush1.bf16.msra.mxu0 0
    %1341 = vmatprep.subr.bf16.mxu0 0
    %1342 = vmatpush1.bf16.msra.mxu0 0
    %1343 = vmatprep.subr.bf16.mxu0 0
    %1344 = vmatpush1.bf16.msra.mxu0 0
    %1345 = vmatprep.subr.bf16.mxu0 0
    %1346 = vmatpush1.bf16.msra.mxu0 0
    %1347 = vmatprep.subr.bf16.mxu0 0
    %1348 = vmatpush1.bf16.msra.mxu0 0
    %1349 = vmatprep.subr.bf16.mxu0 0
    %1350 = vmatpush1.bf16.msra.mxu0 0
    %1351 = vmatprep.subr.bf16.mxu0 0
    %1352 = vmatpush1.bf16.msra.mxu0 0
    %1353 = vmatprep.mubr.bf16.mxu0 0
    %1354 = vmatmul.mubr.bf16.gmra.mrb[0].mxu0 %v1319
    %v1355 = vpop.f32.mrb[0].mxu0
    %v1356 = vadd.f32 %v1305, %v1355
    %v1357 = vpop.f32.mrb[0].mxu0
    %v1358 = vpop.f32.mrb[0].mxu0
    %v1359 = vadd.f32 %v1305, %v1358
    %v1360 = vpop.f32.mrb[0].mxu0
    %1361 = vdwg.mxu0
    %v1362 = vmul.f32 %v1356, 0.5
    %v1363 = vmul.f32 %v1359, 0.5
    %v1364 = vmul.f32 %v1356, 0.044715
    %v1365 = vmul.f32 %v1359, 0.044715
    %v1366 = vmul.f32 %v1364, %v1356
    %v1367 = vmul.f32 %v1365, %v1359
    %v1368 = vmul.f32 %v1366, %v1356
    %v1369 = vmul.f32 %v1367, %v1359
    %v1370 = vadd.f32 %v1356, %v1368
    %v1371 = vadd.f32 %v1359, %v1369
    %v1372 = vmul.f32 %v1370, 0.7978846
    %v1373 = vmul.f32 %v1371, 0.7978846
    %v1374 = vtanh.pop %v1372
    %v1375 = vtanh.pop %v1373
    %v1376 = vadd.f32 %v1374, 1.0
    %v1377 = vadd.f32 %v1375, 1.0
    %v1378 = vmul.f32 %v1362, %v1376
    %v1379 = vmul.f32 %v1363, %v1377
    %v1380 = vpack.c.bf16 %v1379, %v1378
    %v1381 = vld [vmem:[%s8] sm:$0xf]
    %v1382 = vld [vmem:[%s8 + $0x4] sm:$0xf]
    %v1383 = vld [vmem:[%s8 + $0x8] sm:$0xf]
    %v1384 = vld [vmem:[%s8 + $0xc] sm:$0xf]
    %v1385 = vld [vmem:[%s8 + $0x10] sm:$0xf]
    %v1386 = vld [vmem:[%s8 + $0x14] sm:$0xf]
    %v1387 = vld [vmem:[%s8 + $0x18] sm:$0xf]
    %v1388 = vld [vmem:[%s8 + $0x1c] sm:$0xf]
    %v1389 = vld [vmem:[%s8 + $0x20] sm:$0xf]
    %v1390 = vld [vmem:[%s8 + $0x24] sm:$0xf]
    %v1391 = vld [vmem:[%s8 + $0x28] sm:$0xf]
    %v1392 = vld [vmem:[%s8 + $0x2c] sm:$0xf]
    %v1393 = vld [vmem:[%s8 + $0x30] sm:$0xf]
    %v1394 = vld [vmem:[%s8 + $0x34] sm:$0xf]
    %v1395 = vld [vmem:[%s8 + $0x38] sm:$0xf]
    %v1396 = vld [vmem:[%s8 + $0x3c] sm:$0xf]
    %v1397 = vlaneseq
    %v1398 = vshrl.u32 %v1397, 7
    %v1399 = vsub.s32 5, %v1398
    %v1400 = vrot.slane %v198, %v1399
    %v1417 = vunpack.c.l.b16 %v1381
    %v1418 = vunpack.c.l.b16 %v1382
    %v1419 = vunpack.c.l.b16 %v1383
    %v1420 = vunpack.c.l.b16 %v1384
    %v1421 = vunpack.c.l.b16 %v1385
    %v1422 = vunpack.c.l.b16 %v1386
    %v1423 = vunpack.c.l.b16 %v1387
    %v1424 = vunpack.c.l.b16 %v1388
    %v1425 = vunpack.c.l.b16 %v1389
    %v1426 = vunpack.c.l.b16 %v1390
    %v1427 = vunpack.c.l.b16 %v1391
    %v1428 = vunpack.c.l.b16 %v1392
    %v1429 = vunpack.c.l.b16 %v1393
    %v1430 = vunpack.c.l.b16 %v1394
    %v1431 = vunpack.c.l.b16 %v1395
    %v1432 = vunpack.c.l.b16 %v1396
    %v1433 = vpack.c.b16 %v1418, %v1417
    %v1434 = vpack.c.b16 %v1420, %v1419
    %v1435 = vpack.c.b16 %v1422, %v1421
    %v1436 = vpack.c.b16 %v1424, %v1423
    %v1437 = vpack.c.b16 %v1426, %v1425
    %v1438 = vpack.c.b16 %v1428, %v1427
    %v1439 = vpack.c.b16 %v1430, %v1429
    %v1440 = vpack.c.b16 %v1432, %v1431
    %1449 = vmatprep.subr.bf16.mxu0 0
    %1450 = vmatpush1.bf16.msra.mxu0 %v1433
    %1451 = vmatprep.subr.bf16.mxu0 0
    %1452 = vmatpush1.bf16.msra.mxu0 %v1434
    %1453 = vmatprep.subr.bf16.mxu0 0
    %1454 = vmatpush1.bf16.msra.mxu0 %v1435
    %1455 = vmatprep.subr.bf16.mxu0 0
    %1456 = vmatpush1.bf16.msra.mxu0 %v1436
    %1457 = vmatprep.subr.bf16.mxu0 0
    %1458 = vmatpush1.bf16.msra.mxu0 %v1437
    %1459 = vmatprep.subr.bf16.mxu0 0
    %1460 = vmatpush1.bf16.msra.mxu0 %v1438
    %1461 = vmatprep.subr.bf16.mxu0 0
    %1462 = vmatpush1.bf16.msra.mxu0 %v1439
    %1463 = vmatprep.subr.bf16.mxu0 0
    %1464 = vmatpush1.bf16.msra.mxu0 %v1440
    %1465 = vmatprep.subr.bf16.mxu0 0
    %1466 = vmatpush1.bf16.msra.mxu0 0
    %1467 = vmatprep.subr.bf16.mxu0 0
    %1468 = vmatpush1.bf16.msra.mxu0 0
    %1469 = vmatprep.subr.bf16.mxu0 0
    %1470 = vmatpush1.bf16.msra.mxu0 0
    %1471 = vmatprep.subr.bf16.mxu0 0
    %1472 = vmatpush1.bf16.msra.mxu0 0
    %1473 = vmatprep.subr.bf16.mxu0 0
    %1474 = vmatpush1.bf16.msra.mxu0 0
    %1475 = vmatprep.subr.bf16.mxu0 0
    %1476 = vmatpush1.bf16.msra.mxu0 0
    %1477 = vmatprep.subr.bf16.mxu0 0
    %1478 = vmatpush1.bf16.msra.mxu0 0
    %1479 = vmatprep.subr.bf16.mxu0 0
    %1480 = vmatpush1.bf16.msra.mxu0 0
    %1481 = vmatprep.mubr.bf16.mxu0 0
    %1482 = vmatmul.mubr.bf16.gmra.mrb[0].mxu0 %v1380
    %v1483 = vpop.f32.mrb[0].mxu0
    %v1484 = vadd.f32 %v1400, %v1483
    %v1485 = vpop.f32.mrb[0].mxu0
    %v1486 = vpop.f32.mrb[0].mxu0
    %v1487 = vadd.f32 %v1400, %v1486
    %v1488 = vpop.f32.mrb[0].mxu0
    %1489 = vdwg.mxu0
    %v1490 = vadd.f32 %v1295, %v1484
    %v1491 = vadd.f32 %v1296, %v1487
    %v1492 = vsel %vm150, %v1490, 0.0
    %1493 = vadd.xlane.f32.xlu0 %v1492
    %v1494 = vpop.xlane.xlu0 %1493
    %v1495 = vsel %vm150, %v1491, 0.0
    %1496 = vadd.xlane.f32.xlu0 %v1495
    %v1497 = vpop.xlane.xlu0 %1496
    %v1498 = vmul.f32 %v1494, %v157
    %v1499 = vmul.f32 %v1497, %v157
    %v1500 = vsub.f32 %v1490, %v1498
    %v1501 = vsub.f32 %v1491, %v1499
    %v1502 = vmul.f32 %v1500, %v1500
    %v1503 = vmul.f32 %v1501, %v1501
    %v1504 = vsel %vm150, %v1502, 0.0
    %1505 = vadd.xlane.f32.xlu0 %v1504
    %v1506 = vpop.xlane.xlu0 %1505
    %v1507 = vsel %vm150, %v1503, 0.0
    %1508 = vadd.xlane.f32.xlu0 %v1507
    %v1509 = vpop.xlane.xlu0 %1508
    %v1510 = vmul.f32 %v1506, %v157
    %v1511 = vmul.f32 %v1509, %v157
    %v1512 = vadd.f32 %v1510, 1e-12
    %v1513 = vadd.f32 %v1511, 1e-12
    %v1514 = vrsqrt.pop %v1512
    %v1515 = vrsqrt.pop %v1513
    %v1516 = vmul.f32 %v1500, %v1514
    %v1517 = vmul.f32 %v1501, %v1515
    %v1518 = vlaneseq
    %v1519 = vshrl.u32 %v1518, 7
    %v1520 = vsub.s32 6, %v1519
    %v1521 = vrot.slane %v198, %v1520
    %v1522 = vmul.f32 %v1516, %v1521
    %v1523 = vmul.f32 %v1517, %v1521
    %v1524 = vlaneseq
    %v1525 = vshrl.u32 %v1524, 7
    %v1526 = vsub.s32 7, %v1525
    %v1527 = vrot.slane %v198, %v1526
    %v1528 = vadd.f32 %v1522, %v1527
    %v1529 = vadd.f32 %v1523, %v1527
    %s1530 = scalar_lea.vmem %s9, 8
    %v1531 = vld [vmem:[%s1530] sm:$0xff]
    %v1532 = vpack.c.bf16 %v1529, %v1528
    %s1533 = scalar_lea.vmem %s5, 16
    %v1534 = vld [vmem:[%s1533] sm:$0xf]
    %v1535 = vld [vmem:[%s1533 + $0x4] sm:$0xf]
    %v1536 = vld [vmem:[%s1533 + $0x8] sm:$0xf]
    %v1537 = vld [vmem:[%s1533 + $0xc] sm:$0xf]
    %v1538 = vlaneseq
    %v1539 = vshrl.u32 %v1538, 7
    %v1540 = vsub.s32 0, %v1539
    %v1541 = vrot.slane %v1531, %v1540
    %v1546 = vunpack.c.l.b16 %v1534
    %v1547 = vunpack.c.l.b16 %v1535
    %v1548 = vunpack.c.l.b16 %v1536
    %v1549 = vunpack.c.l.b16 %v1537
    %v1550 = vpack.c.b16 %v1547, %v1546
    %v1551 = vpack.c.b16 %v1549, %v1548
    %v1555 = vsel %vm150, %v1532, 0
    %1557 = vmatprep.subr.bf16.mxu0 0
    %1558 = vmatpush1.bf16.msra.mxu0 %v1550
    %1559 = vmatprep.subr.bf16.mxu0 0
    %1560 = vmatpush1.bf16.msra.mxu0 %v1551
    %1561 = vmatprep.subr.bf16.mxu0 0
    %1562 = vmatpush1.bf16.msra.mxu0 0
    %1563 = vmatprep.subr.bf16.mxu0 0
    %1564 = vmatpush1.bf16.msra.mxu0 0
    %1565 = vmatprep.subr.bf16.mxu0 0
    %1566 = vmatpush1.bf16.msra.mxu0 0
    %1567 = vmatprep.subr.bf16.mxu0 0
    %1568 = vmatpush1.bf16.msra.mxu0 0
    %1569 = vmatprep.subr.bf16.mxu0 0
    %1570 = vmatpush1.bf16.msra.mxu0 0
    %1571 = vmatprep.subr.bf16.mxu0 0
    %1572 = vmatpush1.bf16.msra.mxu0 0
    %1573 = vmatprep.subr.bf16.mxu0 0
    %1574 = vmatpush1.bf16.msra.mxu0 0
    %1575 = vmatprep.subr.bf16.mxu0 0
    %1576 = vmatpush1.bf16.msra.mxu0 0
    %1577 = vmatprep.subr.bf16.mxu0 0
    %1578 = vmatpush1.bf16.msra.mxu0 0
    %1579 = vmatprep.subr.bf16.mxu0 0
    %1580 = vmatpush1.bf16.msra.mxu0 0
    %1581 = vmatprep.subr.bf16.mxu0 0
    %1582 = vmatpush1.bf16.msra.mxu0 0
    %1583 = vmatprep.subr.bf16.mxu0 0
    %1584 = vmatpush1.bf16.msra.mxu0 0
    %1585 = vmatprep.subr.bf16.mxu0 0
    %1586 = vmatpush1.bf16.msra.mxu0 0
    %1587 = vmatprep.subr.bf16.mxu0 0
    %1588 = vmatpush1.bf16.msra.mxu0 0
    %1589 = vmatprep.mubr.bf16.mxu0 0
    %1590 = vmatmul.mubr.bf16.gmra.mrb[0].mxu0 %v1555
    %v1591 = vpop.f32.mrb[0].mxu0
    %v1592 = vadd.f32 %v1541, %v1591
    %v1593 = vpop.f32.mrb[0].mxu0
    %v1594 = vpop.f32.mrb[0].mxu0
    %v1595 = vadd.f32 %v1541, %v1594
    %v1596 = vpop.f32.mrb[0].mxu0
    %1597 = vdwg.mxu0
    %v1598 = vpack.c.bf16 %v1595, %v1592
    %v1600 = vunpack.c.l.b16 %v1598
    %v1601 = vunpack.c.h.b16 %v1598
    %v1602 = vpack.c.b16 %v1600, %v1600
    %v1603 = vpack.c.b16 %v1601, %v1601
    %1604 = vrot.lane.b32.xlu0 %v1602, 120
    %v1605 = vpop.permute.xlu0 %1604
    %1606 = vrot.lane.b32.xlu0 %v1603, 120
    %v1607 = vpop.permute.xlu0 %1606
    %1608 = vrot.lane.b32.xlu0 %v1602, 112
    %v1609 = vpop.permute.xlu0 %1608
    %1610 = vrot.lane.b32.xlu0 %v1603, 112
    %v1611 = vpop.permute.xlu0 %1610
    %1612 = vrot.lane.b32.xlu0 %v1602, 104
    %v1613 = vpop.permute.xlu0 %1612
    %1614 = vrot.lane.b32.xlu0 %v1603, 104
    %v1615 = vpop.permute.xlu0 %1614
    %1616 = vrot.lane.b32.xlu0 %v1602, 96
    %v1617 = vpop.permute.xlu0 %1616
    %v1619 = vsel %vm284, %v1602, 0
    %v1622 = vsel %vm284, %v1617, 0
    %1624 = vmatprep.subr.bf16.mxu0 0
    %1625 = vmatpush1.bf16.xpose.msra.mxu0 %v1622
    %1626 = vmatprep.subr.bf16.mxu0 0
    %1627 = vmatpush1.bf16.xpose.msra.mxu0 0
    %1628 = vmatprep.subr.bf16.mxu0 0
    %1629 = vmatpush1.bf16.xpose.msra.mxu0 0
    %1630 = vmatprep.subr.bf16.mxu0 0
    %1631 = vmatpush1.bf16.xpose.msra.mxu0 0
    %1632 = vmatprep.subr.bf16.mxu0 0
    %1633 = vmatpush1.bf16.xpose.msra.mxu0 0
    %1634 = vmatprep.subr.bf16.mxu0 0
    %1635 = vmatpush1.bf16.xpose.msra.mxu0 0
    %1636 = vmatprep.subr.bf16.mxu0 0
    %1637 = vmatpush1.bf16.xpose.msra.mxu0 0
    %1638 = vmatprep.subr.bf16.mxu0 0
    %1639 = vmatpush1.bf16.xpose.msra.mxu0 0
    %1640 = vmatprep.subr.bf16.mxu0 0
    %1641 = vmatpush1.bf16.xpose.msra.mxu0 0
    %1642 = vmatprep.subr.bf16.mxu0 0
    %1643 = vmatpush1.bf16.xpose.msra.mxu0 0
    %1644 = vmatprep.subr.bf16.mxu0 0
    %1645 = vmatpush1.bf16.xpose.msra.mxu0 0
    %1646 = vmatprep.subr.bf16.mxu0 0
    %1647 = vmatpush1.bf16.xpose.msra.mxu0 0
    %1648 = vmatprep.subr.bf16.mxu0 0
    %1649 = vmatpush1.bf16.xpose.msra.mxu0 0
    %1650 = vmatprep.subr.bf16.mxu0 0
    %1651 = vmatpush1.bf16.xpose.msra.mxu0 0
    %1652 = vmatprep.subr.bf16.mxu0 0
    %1653 = vmatpush1.bf16.xpose.msra.mxu0 0
    %1654 = vmatprep.subr.bf16.mxu0 0
    %1655 = vmatpush1.bf16.xpose.msra.mxu0 0
    %1656 = vmatprep.mubr.bf16.mxu0 0
    %1657 = vmatmul.mubr.bf16.gmra.mrb[0].mxu0 %v1619
    %v1658 = vpop.f32.mrb[0].mxu0
    %v1659 = vadd.f32 %v190, %v1658
    %v1660 = vpop.f32.mrb[0].mxu0
    %v1661 = vpop.f32.mrb[0].mxu0
    %v1662 = vpop.f32.mrb[0].mxu0
    %1663 = vdwg.mxu0
    %1664 = vrot.lane.b32.xlu0 %v1603, 96
    %v1665 = vpop.permute.xlu0 %1664
    %v1667 = vsel %vm284, %v1603, 0
    %v1670 = vsel %vm284, %v1665, 0
    %1672 = vmatprep.subr.bf16.mxu0 0
    %1673 = vmatpush1.bf16.xpose.msra.mxu0 %v1670
    %1674 = vmatprep.subr.bf16.mxu0 0
    %1675 = vmatpush1.bf16.xpose.msra.mxu0 0
    %1676 = vmatprep.subr.bf16.mxu0 0
    %1677 = vmatpush1.bf16.xpose.msra.mxu0 0
    %1678 = vmatprep.subr.bf16.mxu0 0
    %1679 = vmatpush1.bf16.xpose.msra.mxu0 0
    %1680 = vmatprep.subr.bf16.mxu0 0
    %1681 = vmatpush1.bf16.xpose.msra.mxu0 0
    %1682 = vmatprep.subr.bf16.mxu0 0
    %1683 = vmatpush1.bf16.xpose.msra.mxu0 0
    %1684 = vmatprep.subr.bf16.mxu0 0
    %1685 = vmatpush1.bf16.xpose.msra.mxu0 0
    %1686 = vmatprep.subr.bf16.mxu0 0
    %1687 = vmatpush1.bf16.xpose.msra.mxu0 0
    %1688 = vmatprep.subr.bf16.mxu0 0
    %1689 = vmatpush1.bf16.xpose.msra.mxu0 0
    %1690 = vmatprep.subr.bf16.mxu0 0
    %1691 = vmatpush1.bf16.xpose.msra.mxu0 0
    %1692 = vmatprep.subr.bf16.mxu0 0
    %1693 = vmatpush1.bf16.xpose.msra.mxu0 0
    %1694 = vmatprep.subr.bf16.mxu0 0
    %1695 = vmatpush1.bf16.xpose.msra.mxu0 0
    %1696 = vmatprep.subr.bf16.mxu0 0
    %1697 = vmatpush1.bf16.xpose.msra.mxu0 0
    %1698 = vmatprep.subr.bf16.mxu0 0
    %1699 = vmatpush1.bf16.xpose.msra.mxu0 0
    %1700 = vmatprep.subr.bf16.mxu0 0
    %1701 = vmatpush1.bf16.xpose.msra.mxu0 0
    %1702 = vmatprep.subr.bf16.mxu0 0
    %1703 = vmatpush1.bf16.xpose.msra.mxu0 0
    %1704 = vmatprep.mubr.bf16.mxu0 0
    %1705 = vmatmul.mubr.bf16.gmra.mrb[0].mxu0 %v1667
    %v1706 = vpop.f32.mrb[0].mxu0
    %v1707 = vadd.f32 %v191, %v1706
    %v1708 = vpop.f32.mrb[0].mxu0
    %v1709 = vpop.f32.mrb[0].mxu0
    %v1710 = vpop.f32.mrb[0].mxu0
    %1711 = vdwg.mxu0
    %v1712 = vunpack.c.l.b16 %v1605
    %v1713 = vpack.c.b16 %v1712, %v1712
    %1714 = vrot.lane.b32.xlu0 %v1713, 96
    %v1715 = vpop.permute.xlu0 %1714
    %v1717 = vsel %vm284, %v1605, 0
    %v1720 = vsel %vm284, %v1715, 0
    %1722 = vmatprep.subr.bf16.mxu0 0
    %1723 = vmatpush1.bf16.xpose.msra.mxu0 %v1720
    %1724 = vmatprep.subr.bf16.mxu0 0
    %1725 = vmatpush1.bf16.xpose.msra.mxu0 0
    %1726 = vmatprep.subr.bf16.mxu0 0
    %1727 = vmatpush1.bf16.xpose.msra.mxu0 0
    %1728 = vmatprep.subr.bf16.mxu0 0
    %1729 = vmatpush1.bf16.xpose.msra.mxu0 0
    %1730 = vmatprep.subr.bf16.mxu0 0
    %1731 = vmatpush1.bf16.xpose.msra.mxu0 0
    %1732 = vmatprep.subr.bf16.mxu0 0
    %1733 = vmatpush1.bf16.xpose.msra.mxu0 0
    %1734 = vmatprep.subr.bf16.mxu0 0
    %1735 = vmatpush1.bf16.xpose.msra.mxu0 0
    %1736 = vmatprep.subr.bf16.mxu0 0
    %1737 = vmatpush1.bf16.xpose.msra.mxu0 0
    %1738 = vmatprep.subr.bf16.mxu0 0
    %1739 = vmatpush1.bf16.xpose.msra.mxu0 0
    %1740 = vmatprep.subr.bf16.mxu0 0
    %1741 = vmatpush1.bf16.xpose.msra.mxu0 0
    %1742 = vmatprep.subr.bf16.mxu0 0
    %1743 = vmatpush1.bf16.xpose.msra.mxu0 0
    %1744 = vmatprep.subr.bf16.mxu0 0
    %1745 = vmatpush1.bf16.xpose.msra.mxu0 0
    %1746 = vmatprep.subr.bf16.mxu0 0
    %1747 = vmatpush1.bf16.xpose.msra.mxu0 0
    %1748 = vmatprep.subr.bf16.mxu0 0
    %1749 = vmatpush1.bf16.xpose.msra.mxu0 0
    %1750 = vmatprep.subr.bf16.mxu0 0
    %1751 = vmatpush1.bf16.xpose.msra.mxu0 0
    %1752 = vmatprep.subr.bf16.mxu0 0
    %1753 = vmatpush1.bf16.xpose.msra.mxu0 0
    %1754 = vmatprep.mubr.bf16.mxu0 0
    %1755 = vmatmul.mubr.bf16.gmra.mrb[0].mxu0 %v1717
    %v1756 = vpop.f32.mrb[0].mxu0
    %v1757 = vadd.f32 %v192, %v1756
    %v1758 = vpop.f32.mrb[0].mxu0
    %v1759 = vpop.f32.mrb[0].mxu0
    %v1760 = vpop.f32.mrb[0].mxu0
    %1761 = vdwg.mxu0
    %v1762 = vunpack.c.l.b16 %v1607
    %v1763 = vpack.c.b16 %v1762, %v1762
    %1764 = vrot.lane.b32.xlu0 %v1763, 96
    %v1765 = vpop.permute.xlu0 %1764
    %v1767 = vsel %vm284, %v1607, 0
    %v1770 = vsel %vm284, %v1765, 0
    %1772 = vmatprep.subr.bf16.mxu0 0
    %1773 = vmatpush1.bf16.xpose.msra.mxu0 %v1770
    %1774 = vmatprep.subr.bf16.mxu0 0
    %1775 = vmatpush1.bf16.xpose.msra.mxu0 0
    %1776 = vmatprep.subr.bf16.mxu0 0
    %1777 = vmatpush1.bf16.xpose.msra.mxu0 0
    %1778 = vmatprep.subr.bf16.mxu0 0
    %1779 = vmatpush1.bf16.xpose.msra.mxu0 0
    %1780 = vmatprep.subr.bf16.mxu0 0
    %1781 = vmatpush1.bf16.xpose.msra.mxu0 0
    %1782 = vmatprep.subr.bf16.mxu0 0
    %1783 = vmatpush1.bf16.xpose.msra.mxu0 0
    %1784 = vmatprep.subr.bf16.mxu0 0
    %1785 = vmatpush1.bf16.xpose.msra.mxu0 0
    %1786 = vmatprep.subr.bf16.mxu0 0
    %1787 = vmatpush1.bf16.xpose.msra.mxu0 0
    %1788 = vmatprep.subr.bf16.mxu0 0
    %1789 = vmatpush1.bf16.xpose.msra.mxu0 0
    %1790 = vmatprep.subr.bf16.mxu0 0
    %1791 = vmatpush1.bf16.xpose.msra.mxu0 0
    %1792 = vmatprep.subr.bf16.mxu0 0
    %1793 = vmatpush1.bf16.xpose.msra.mxu0 0
    %1794 = vmatprep.subr.bf16.mxu0 0
    %1795 = vmatpush1.bf16.xpose.msra.mxu0 0
    %1796 = vmatprep.subr.bf16.mxu0 0
    %1797 = vmatpush1.bf16.xpose.msra.mxu0 0
    %1798 = vmatprep.subr.bf16.mxu0 0
    %1799 = vmatpush1.bf16.xpose.msra.mxu0 0
    %1800 = vmatprep.subr.bf16.mxu0 0
    %1801 = vmatpush1.bf16.xpose.msra.mxu0 0
    %1802 = vmatprep.subr.bf16.mxu0 0
    %1803 = vmatpush1.bf16.xpose.msra.mxu0 0
    %1804 = vmatprep.mubr.bf16.mxu0 0
    %1805 = vmatmul.mubr.bf16.gmra.mrb[0].mxu0 %v1767
    %v1806 = vpop.f32.mrb[0].mxu0
    %v1807 = vadd.f32 %v193, %v1806
    %v1808 = vpop.f32.mrb[0].mxu0
    %v1809 = vpop.f32.mrb[0].mxu0
    %v1810 = vpop.f32.mrb[0].mxu0
    %1811 = vdwg.mxu0
    %v1812 = vunpack.c.l.b16 %v1609
    %v1813 = vpack.c.b16 %v1812, %v1812
    %1814 = vrot.lane.b32.xlu0 %v1813, 96
    %v1815 = vpop.permute.xlu0 %1814
    %v1817 = vsel %vm284, %v1609, 0
    %v1820 = vsel %vm284, %v1815, 0
    %1822 = vmatprep.subr.bf16.mxu0 0
    %1823 = vmatpush1.bf16.xpose.msra.mxu0 %v1820
    %1824 = vmatprep.subr.bf16.mxu0 0
    %1825 = vmatpush1.bf16.xpose.msra.mxu0 0
    %1826 = vmatprep.subr.bf16.mxu0 0
    %1827 = vmatpush1.bf16.xpose.msra.mxu0 0
    %1828 = vmatprep.subr.bf16.mxu0 0
    %1829 = vmatpush1.bf16.xpose.msra.mxu0 0
    %1830 = vmatprep.subr.bf16.mxu0 0
    %1831 = vmatpush1.bf16.xpose.msra.mxu0 0
    %1832 = vmatprep.subr.bf16.mxu0 0
    %1833 = vmatpush1.bf16.xpose.msra.mxu0 0
    %1834 = vmatprep.subr.bf16.mxu0 0
    %1835 = vmatpush1.bf16.xpose.msra.mxu0 0
    %1836 = vmatprep.subr.bf16.mxu0 0
    %1837 = vmatpush1.bf16.xpose.msra.mxu0 0
    %1838 = vmatprep.subr.bf16.mxu0 0
    %1839 = vmatpush1.bf16.xpose.msra.mxu0 0
    %1840 = vmatprep.subr.bf16.mxu0 0
    %1841 = vmatpush1.bf16.xpose.msra.mxu0 0
    %1842 = vmatprep.subr.bf16.mxu0 0
    %1843 = vmatpush1.bf16.xpose.msra.mxu0 0
    %1844 = vmatprep.subr.bf16.mxu0 0
    %1845 = vmatpush1.bf16.xpose.msra.mxu0 0
    %1846 = vmatprep.subr.bf16.mxu0 0
    %1847 = vmatpush1.bf16.xpose.msra.mxu0 0
    %1848 = vmatprep.subr.bf16.mxu0 0
    %1849 = vmatpush1.bf16.xpose.msra.mxu0 0
    %1850 = vmatprep.subr.bf16.mxu0 0
    %1851 = vmatpush1.bf16.xpose.msra.mxu0 0
    %1852 = vmatprep.subr.bf16.mxu0 0
    %1853 = vmatpush1.bf16.xpose.msra.mxu0 0
    %1854 = vmatprep.mubr.bf16.mxu0 0
    %1855 = vmatmul.mubr.bf16.gmra.mrb[0].mxu0 %v1817
    %v1856 = vpop.f32.mrb[0].mxu0
    %v1857 = vadd.f32 %v194, %v1856
    %v1858 = vpop.f32.mrb[0].mxu0
    %v1859 = vpop.f32.mrb[0].mxu0
    %v1860 = vpop.f32.mrb[0].mxu0
    %1861 = vdwg.mxu0
    %v1862 = vunpack.c.l.b16 %v1611
    %v1863 = vpack.c.b16 %v1862, %v1862
    %1864 = vrot.lane.b32.xlu0 %v1863, 96
    %v1865 = vpop.permute.xlu0 %1864
    %v1867 = vsel %vm284, %v1611, 0
    %v1870 = vsel %vm284, %v1865, 0
    %1872 = vmatprep.subr.bf16.mxu0 0
    %1873 = vmatpush1.bf16.xpose.msra.mxu0 %v1870
    %1874 = vmatprep.subr.bf16.mxu0 0
    %1875 = vmatpush1.bf16.xpose.msra.mxu0 0
    %1876 = vmatprep.subr.bf16.mxu0 0
    %1877 = vmatpush1.bf16.xpose.msra.mxu0 0
    %1878 = vmatprep.subr.bf16.mxu0 0
    %1879 = vmatpush1.bf16.xpose.msra.mxu0 0
    %1880 = vmatprep.subr.bf16.mxu0 0
    %1881 = vmatpush1.bf16.xpose.msra.mxu0 0
    %1882 = vmatprep.subr.bf16.mxu0 0
    %1883 = vmatpush1.bf16.xpose.msra.mxu0 0
    %1884 = vmatprep.subr.bf16.mxu0 0
    %1885 = vmatpush1.bf16.xpose.msra.mxu0 0
    %1886 = vmatprep.subr.bf16.mxu0 0
    %1887 = vmatpush1.bf16.xpose.msra.mxu0 0
    %1888 = vmatprep.subr.bf16.mxu0 0
    %1889 = vmatpush1.bf16.xpose.msra.mxu0 0
    %1890 = vmatprep.subr.bf16.mxu0 0
    %1891 = vmatpush1.bf16.xpose.msra.mxu0 0
    %1892 = vmatprep.subr.bf16.mxu0 0
    %1893 = vmatpush1.bf16.xpose.msra.mxu0 0
    %1894 = vmatprep.subr.bf16.mxu0 0
    %1895 = vmatpush1.bf16.xpose.msra.mxu0 0
    %1896 = vmatprep.subr.bf16.mxu0 0
    %1897 = vmatpush1.bf16.xpose.msra.mxu0 0
    %1898 = vmatprep.subr.bf16.mxu0 0
    %1899 = vmatpush1.bf16.xpose.msra.mxu0 0
    %1900 = vmatprep.subr.bf16.mxu0 0
    %1901 = vmatpush1.bf16.xpose.msra.mxu0 0
    %1902 = vmatprep.subr.bf16.mxu0 0
    %1903 = vmatpush1.bf16.xpose.msra.mxu0 0
    %1904 = vmatprep.mubr.bf16.mxu0 0
    %1905 = vmatmul.mubr.bf16.gmra.mrb[0].mxu0 %v1867
    %v1906 = vpop.f32.mrb[0].mxu0
    %v1907 = vadd.f32 %v195, %v1906
    %v1908 = vpop.f32.mrb[0].mxu0
    %v1909 = vpop.f32.mrb[0].mxu0
    %v1910 = vpop.f32.mrb[0].mxu0
    %1911 = vdwg.mxu0
    %v1912 = vunpack.c.l.b16 %v1613
    %v1913 = vpack.c.b16 %v1912, %v1912
    %1914 = vrot.lane.b32.xlu0 %v1913, 96
    %v1915 = vpop.permute.xlu0 %1914
    %v1917 = vsel %vm284, %v1613, 0
    %v1920 = vsel %vm284, %v1915, 0
    %1922 = vmatprep.subr.bf16.mxu0 0
    %1923 = vmatpush1.bf16.xpose.msra.mxu0 %v1920
    %1924 = vmatprep.subr.bf16.mxu0 0
    %1925 = vmatpush1.bf16.xpose.msra.mxu0 0
    %1926 = vmatprep.subr.bf16.mxu0 0
    %1927 = vmatpush1.bf16.xpose.msra.mxu0 0
    %1928 = vmatprep.subr.bf16.mxu0 0
    %1929 = vmatpush1.bf16.xpose.msra.mxu0 0
    %1930 = vmatprep.subr.bf16.mxu0 0
    %1931 = vmatpush1.bf16.xpose.msra.mxu0 0
    %1932 = vmatprep.subr.bf16.mxu0 0
    %1933 = vmatpush1.bf16.xpose.msra.mxu0 0
    %1934 = vmatprep.subr.bf16.mxu0 0
    %1935 = vmatpush1.bf16.xpose.msra.mxu0 0
    %1936 = vmatprep.subr.bf16.mxu0 0
    %1937 = vmatpush1.bf16.xpose.msra.mxu0 0
    %1938 = vmatprep.subr.bf16.mxu0 0
    %1939 = vmatpush1.bf16.xpose.msra.mxu0 0
    %1940 = vmatprep.subr.bf16.mxu0 0
    %1941 = vmatpush1.bf16.xpose.msra.mxu0 0
    %1942 = vmatprep.subr.bf16.mxu0 0
    %1943 = vmatpush1.bf16.xpose.msra.mxu0 0
    %1944 = vmatprep.subr.bf16.mxu0 0
    %1945 = vmatpush1.bf16.xpose.msra.mxu0 0
    %1946 = vmatprep.subr.bf16.mxu0 0
    %1947 = vmatpush1.bf16.xpose.msra.mxu0 0
    %1948 = vmatprep.subr.bf16.mxu0 0
    %1949 = vmatpush1.bf16.xpose.msra.mxu0 0
    %1950 = vmatprep.subr.bf16.mxu0 0
    %1951 = vmatpush1.bf16.xpose.msra.mxu0 0
    %1952 = vmatprep.subr.bf16.mxu0 0
    %1953 = vmatpush1.bf16.xpose.msra.mxu0 0
    %1954 = vmatprep.mubr.bf16.mxu0 0
    %1955 = vmatmul.mubr.bf16.gmra.mrb[0].mxu0 %v1917
    %v1956 = vpop.f32.mrb[0].mxu0
    %v1957 = vadd.f32 %v196, %v1956
    %v1958 = vpop.f32.mrb[0].mxu0
    %v1959 = vpop.f32.mrb[0].mxu0
    %v1960 = vpop.f32.mrb[0].mxu0
    %1961 = vdwg.mxu0
    %v1962 = vunpack.c.l.b16 %v1615
    %v1963 = vpack.c.b16 %v1962, %v1962
    %1964 = vrot.lane.b32.xlu0 %v1963, 96
    %v1965 = vpop.permute.xlu0 %1964
    %v1967 = vsel %vm284, %v1615, 0
    %v1970 = vsel %vm284, %v1965, 0
    %1972 = vmatprep.subr.bf16.mxu0 0
    %1973 = vmatpush1.bf16.xpose.msra.mxu0 %v1970
    %1974 = vmatprep.subr.bf16.mxu0 0
    %1975 = vmatpush1.bf16.xpose.msra.mxu0 0
    %1976 = vmatprep.subr.bf16.mxu0 0
    %1977 = vmatpush1.bf16.xpose.msra.mxu0 0
    %1978 = vmatprep.subr.bf16.mxu0 0
    %1979 = vmatpush1.bf16.xpose.msra.mxu0 0
    %1980 = vmatprep.subr.bf16.mxu0 0
    %1981 = vmatpush1.bf16.xpose.msra.mxu0 0
    %1982 = vmatprep.subr.bf16.mxu0 0
    %1983 = vmatpush1.bf16.xpose.msra.mxu0 0
    %1984 = vmatprep.subr.bf16.mxu0 0
    %1985 = vmatpush1.bf16.xpose.msra.mxu0 0
    %1986 = vmatprep.subr.bf16.mxu0 0
    %1987 = vmatpush1.bf16.xpose.msra.mxu0 0
    %1988 = vmatprep.subr.bf16.mxu0 0
    %1989 = vmatpush1.bf16.xpose.msra.mxu0 0
    %1990 = vmatprep.subr.bf16.mxu0 0
    %1991 = vmatpush1.bf16.xpose.msra.mxu0 0
    %1992 = vmatprep.subr.bf16.mxu0 0
    %1993 = vmatpush1.bf16.xpose.msra.mxu0 0
    %1994 = vmatprep.subr.bf16.mxu0 0
    %1995 = vmatpush1.bf16.xpose.msra.mxu0 0
    %1996 = vmatprep.subr.bf16.mxu0 0
    %1997 = vmatpush1.bf16.xpose.msra.mxu0 0
    %1998 = vmatprep.subr.bf16.mxu0 0
    %1999 = vmatpush1.bf16.xpose.msra.mxu0 0
    %2000 = vmatprep.subr.bf16.mxu0 0
    %2001 = vmatpush1.bf16.xpose.msra.mxu0 0
    %2002 = vmatprep.subr.bf16.mxu0 0
    %2003 = vmatpush1.bf16.xpose.msra.mxu0 0
    %2004 = vmatprep.mubr.bf16.mxu0 0
    %2005 = vmatmul.mubr.bf16.gmra.mrb[0].mxu0 %v1967
    %v2006 = vpop.f32.mrb[0].mxu0
    %v2007 = vadd.f32 %v197, %v2006
    %v2008 = vpop.f32.mrb[0].mxu0
    %v2009 = vpop.f32.mrb[0].mxu0
    %v2010 = vpop.f32.mrb[0].mxu0
    %2011 = vdwg.mxu0
    %v2012 = vsel %vm284, %v1659, -inf
    %2013 = vmax.xlane.f32.xlu0 %v2012
    %v2014 = vpop.xlane.xlu0 %2013
    %v2015 = vsel %vm284, %v1707, -inf
    %2016 = vmax.xlane.f32.xlu0 %v2015
    %v2017 = vpop.xlane.xlu0 %2016
    %v2018 = vsel %vm284, %v1757, -inf
    %2019 = vmax.xlane.f32.xlu0 %v2018
    %v2020 = vpop.xlane.xlu0 %2019
    %v2021 = vsel %vm284, %v1807, -inf
    %2022 = vmax.xlane.f32.xlu0 %v2021
    %v2023 = vpop.xlane.xlu0 %2022
    %v2024 = vsel %vm284, %v1857, -inf
    %2025 = vmax.xlane.f32.xlu0 %v2024
    %v2026 = vpop.xlane.xlu0 %2025
    %v2027 = vsel %vm284, %v1907, -inf
    %2028 = vmax.xlane.f32.xlu0 %v2027
    %v2029 = vpop.xlane.xlu0 %2028
    %v2030 = vsel %vm284, %v1957, -inf
    %2031 = vmax.xlane.f32.xlu0 %v2030
    %v2032 = vpop.xlane.xlu0 %2031
    %v2033 = vsel %vm284, %v2007, -inf
    %2034 = vmax.xlane.f32.xlu0 %v2033
    %v2035 = vpop.xlane.xlu0 %2034
    %v2036 = vsub.f32 %v1659, %v2014
    %v2037 = vsub.f32 %v1707, %v2017
    %v2038 = vsub.f32 %v1757, %v2020
    %v2039 = vsub.f32 %v1807, %v2023
    %v2040 = vsub.f32 %v1857, %v2026
    %v2041 = vsub.f32 %v1907, %v2029
    %v2042 = vsub.f32 %v1957, %v2032
    %v2043 = vsub.f32 %v2007, %v2035
    %v2044 = vmul.f32 %v2036, 1.442695
    %v2045 = vpow.pop %v2044
    %v2046 = vmul.f32 %v2037, 1.442695
    %v2047 = vpow.pop %v2046
    %v2048 = vmul.f32 %v2038, 1.442695
    %v2049 = vpow.pop %v2048
    %v2050 = vmul.f32 %v2039, 1.442695
    %v2051 = vpow.pop %v2050
    %v2052 = vmul.f32 %v2040, 1.442695
    %v2053 = vpow.pop %v2052
    %v2054 = vmul.f32 %v2041, 1.442695
    %v2055 = vpow.pop %v2054
    %v2056 = vmul.f32 %v2042, 1.442695
    %v2057 = vpow.pop %v2056
    %v2058 = vmul.f32 %v2043, 1.442695
    %v2059 = vpow.pop %v2058
    %v2060 = vsel %vm284, %v2045, 0.0
    %2061 = vadd.xlane.f32.xlu0 %v2060
    %v2062 = vpop.xlane.xlu0 %2061
    %v2063 = vsel %vm284, %v2047, 0.0
    %2064 = vadd.xlane.f32.xlu0 %v2063
    %v2065 = vpop.xlane.xlu0 %2064
    %v2066 = vsel %vm284, %v2049, 0.0
    %2067 = vadd.xlane.f32.xlu0 %v2066
    %v2068 = vpop.xlane.xlu0 %2067
    %v2069 = vsel %vm284, %v2051, 0.0
    %2070 = vadd.xlane.f32.xlu0 %v2069
    %v2071 = vpop.xlane.xlu0 %2070
    %v2072 = vsel %vm284, %v2053, 0.0
    %2073 = vadd.xlane.f32.xlu0 %v2072
    %v2074 = vpop.xlane.xlu0 %2073
    %v2075 = vsel %vm284, %v2055, 0.0
    %2076 = vadd.xlane.f32.xlu0 %v2075
    %v2077 = vpop.xlane.xlu0 %2076
    %v2078 = vsel %vm284, %v2057, 0.0
    %2079 = vadd.xlane.f32.xlu0 %v2078
    %v2080 = vpop.xlane.xlu0 %2079
    %v2081 = vsel %vm284, %v2059, 0.0
    %2082 = vadd.xlane.f32.xlu0 %v2081
    %v2083 = vpop.xlane.xlu0 %2082
    %v2084 = vrcp.pop %v2062
    %v2085 = vrcp.pop %v2065
    %v2086 = vrcp.pop %v2068
    %v2087 = vrcp.pop %v2071
    %v2088 = vrcp.pop %v2074
    %v2089 = vrcp.pop %v2077
    %v2090 = vrcp.pop %v2080
    %v2091 = vrcp.pop %v2083
    %v2092 = vmul.f32 %v2045, %v2084
    %v2093 = vmul.f32 %v2047, %v2085
    %v2094 = vmul.f32 %v2049, %v2086
    %v2095 = vmul.f32 %v2051, %v2087
    %v2096 = vmul.f32 %v2053, %v2088
    %v2097 = vmul.f32 %v2055, %v2089
    %v2098 = vmul.f32 %v2057, %v2090
    %v2099 = vmul.f32 %v2059, %v2091
    %v2100 = vpack.c.bf16 %v2092, %v2092
    %v2101 = vpack.c.bf16 %v2093, %v2093
    %v2102 = vpack.c.bf16 %v2094, %v2094
    %v2103 = vpack.c.bf16 %v2095, %v2095
    %v2104 = vpack.c.bf16 %v2096, %v2096
    %v2105 = vpack.c.bf16 %v2097, %v2097
    %v2106 = vpack.c.bf16 %v2098, %v2098
    %v2107 = vpack.c.bf16 %v2099, %v2099
    %2108 = vrot.lane.b32.xlu0 %v1602, 64
    %v2109 = vpop.permute.xlu0 %2108
    %v2111 = vsel %vm284, %v2100, 0
    %v2114 = vsel %vm780, %v2109, 0
    %2116 = vmatprep.subr.bf16.mxu0 0
    %2117 = vmatpush1.bf16.msra.mxu0 %v2114
    %2118 = vmatprep.subr.bf16.mxu0 0
    %2119 = vmatpush1.bf16.msra.mxu0 0
    %2120 = vmatprep.subr.bf16.mxu0 0
    %2121 = vmatpush1.bf16.msra.mxu0 0
    %2122 = vmatprep.subr.bf16.mxu0 0
    %2123 = vmatpush1.bf16.msra.mxu0 0
    %2124 = vmatprep.subr.bf16.mxu0 0
    %2125 = vmatpush1.bf16.msra.mxu0 0
    %2126 = vmatprep.subr.bf16.mxu0 0
    %2127 = vmatpush1.bf16.msra.mxu0 0
    %2128 = vmatprep.subr.bf16.mxu0 0
    %2129 = vmatpush1.bf16.msra.mxu0 0
    %2130 = vmatprep.subr.bf16.mxu0 0
    %2131 = vmatpush1.bf16.msra.mxu0 0
    %2132 = vmatprep.subr.bf16.mxu0 0
    %2133 = vmatpush1.bf16.msra.mxu0 0
    %2134 = vmatprep.subr.bf16.mxu0 0
    %2135 = vmatpush1.bf16.msra.mxu0 0
    %2136 = vmatprep.subr.bf16.mxu0 0
    %2137 = vmatpush1.bf16.msra.mxu0 0
    %2138 = vmatprep.subr.bf16.mxu0 0
    %2139 = vmatpush1.bf16.msra.mxu0 0
    %2140 = vmatprep.subr.bf16.mxu0 0
    %2141 = vmatpush1.bf16.msra.mxu0 0
    %2142 = vmatprep.subr.bf16.mxu0 0
    %2143 = vmatpush1.bf16.msra.mxu0 0
    %2144 = vmatprep.subr.bf16.mxu0 0
    %2145 = vmatpush1.bf16.msra.mxu0 0
    %2146 = vmatprep.subr.bf16.mxu0 0
    %2147 = vmatpush1.bf16.msra.mxu0 0
    %2148 = vmatprep.mubr.bf16.mxu0 0
    %2149 = vmatmul.mubr.bf16.gmra.mrb[0].mxu0 %v2111
    %v2150 = vpop.f32.mrb[0].mxu0
    %v2151 = vadd.f32 0.0, %v2150
    %v2152 = vpop.f32.mrb[0].mxu0
    %v2153 = vpop.f32.mrb[0].mxu0
    %v2154 = vpop.f32.mrb[0].mxu0
    %2155 = vdwg.mxu0
    %2156 = vrot.lane.b32.xlu0 %v1603, 64
    %v2157 = vpop.permute.xlu0 %2156
    %v2159 = vsel %vm284, %v2101, 0
    %v2162 = vsel %vm780, %v2157, 0
    %2164 = vmatprep.subr.bf16.mxu0 0
    %2165 = vmatpush1.bf16.msra.mxu0 %v2162
    %2166 = vmatprep.subr.bf16.mxu0 0
    %2167 = vmatpush1.bf16.msra.mxu0 0
    %2168 = vmatprep.subr.bf16.mxu0 0
    %2169 = vmatpush1.bf16.msra.mxu0 0
    %2170 = vmatprep.subr.bf16.mxu0 0
    %2171 = vmatpush1.bf16.msra.mxu0 0
    %2172 = vmatprep.subr.bf16.mxu0 0
    %2173 = vmatpush1.bf16.msra.mxu0 0
    %2174 = vmatprep.subr.bf16.mxu0 0
    %2175 = vmatpush1.bf16.msra.mxu0 0
    %2176 = vmatprep.subr.bf16.mxu0 0
    %2177 = vmatpush1.bf16.msra.mxu0 0
    %2178 = vmatprep.subr.bf16.mxu0 0
    %2179 = vmatpush1.bf16.msra.mxu0 0
    %2180 = vmatprep.subr.bf16.mxu0 0
    %2181 = vmatpush1.bf16.msra.mxu0 0
    %2182 = vmatprep.subr.bf16.mxu0 0
    %2183 = vmatpush1.bf16.msra.mxu0 0
    %2184 = vmatprep.subr.bf16.mxu0 0
    %2185 = vmatpush1.bf16.msra.mxu0 0
    %2186 = vmatprep.subr.bf16.mxu0 0
    %2187 = vmatpush1.bf16.msra.mxu0 0
    %2188 = vmatprep.subr.bf16.mxu0 0
    %2189 = vmatpush1.bf16.msra.mxu0 0
    %2190 = vmatprep.subr.bf16.mxu0 0
    %2191 = vmatpush1.bf16.msra.mxu0 0
    %2192 = vmatprep.subr.bf16.mxu0 0
    %2193 = vmatpush1.bf16.msra.mxu0 0
    %2194 = vmatprep.subr.bf16.mxu0 0
    %2195 = vmatpush1.bf16.msra.mxu0 0
    %2196 = vmatprep.mubr.bf16.mxu0 0
    %2197 = vmatmul.mubr.bf16.gmra.mrb[0].mxu0 %v2159
    %v2198 = vpop.f32.mrb[0].mxu0
    %v2199 = vadd.f32 0.0, %v2198
    %v2200 = vpop.f32.mrb[0].mxu0
    %v2201 = vpop.f32.mrb[0].mxu0
    %v2202 = vpop.f32.mrb[0].mxu0
    %2203 = vdwg.mxu0
    %2204 = vrot.lane.b32.xlu0 %v1713, 64
    %v2205 = vpop.permute.xlu0 %2204
    %v2207 = vsel %vm284, %v2102, 0
    %v2210 = vsel %vm780, %v2205, 0
    %2212 = vmatprep.subr.bf16.mxu0 0
    %2213 = vmatpush1.bf16.msra.mxu0 %v2210
    %2214 = vmatprep.subr.bf16.mxu0 0
    %2215 = vmatpush1.bf16.msra.mxu0 0
    %2216 = vmatprep.subr.bf16.mxu0 0
    %2217 = vmatpush1.bf16.msra.mxu0 0
    %2218 = vmatprep.subr.bf16.mxu0 0
    %2219 = vmatpush1.bf16.msra.mxu0 0
    %2220 = vmatprep.subr.bf16.mxu0 0
    %2221 = vmatpush1.bf16.msra.mxu0 0
    %2222 = vmatprep.subr.bf16.mxu0 0
    %2223 = vmatpush1.bf16.msra.mxu0 0
    %2224 = vmatprep.subr.bf16.mxu0 0
    %2225 = vmatpush1.bf16.msra.mxu0 0
    %2226 = vmatprep.subr.bf16.mxu0 0
    %2227 = vmatpush1.bf16.msra.mxu0 0
    %2228 = vmatprep.subr.bf16.mxu0 0
    %2229 = vmatpush1.bf16.msra.mxu0 0
    %2230 = vmatprep.subr.bf16.mxu0 0
    %2231 = vmatpush1.bf16.msra.mxu0 0
    %2232 = vmatprep.subr.bf16.mxu0 0
    %2233 = vmatpush1.bf16.msra.mxu0 0
    %2234 = vmatprep.subr.bf16.mxu0 0
    %2235 = vmatpush1.bf16.msra.mxu0 0
    %2236 = vmatprep.subr.bf16.mxu0 0
    %2237 = vmatpush1.bf16.msra.mxu0 0
    %2238 = vmatprep.subr.bf16.mxu0 0
    %2239 = vmatpush1.bf16.msra.mxu0 0
    %2240 = vmatprep.subr.bf16.mxu0 0
    %2241 = vmatpush1.bf16.msra.mxu0 0
    %2242 = vmatprep.subr.bf16.mxu0 0
    %2243 = vmatpush1.bf16.msra.mxu0 0
    %2244 = vmatprep.mubr.bf16.mxu0 0
    %2245 = vmatmul.mubr.bf16.gmra.mrb[0].mxu0 %v2207
    %v2246 = vpop.f32.mrb[0].mxu0
    %v2247 = vadd.f32 0.0, %v2246
    %v2248 = vpop.f32.mrb[0].mxu0
    %v2249 = vpop.f32.mrb[0].mxu0
    %v2250 = vpop.f32.mrb[0].mxu0
    %2251 = vdwg.mxu0
    %2252 = vrot.lane.b32.xlu0 %v1763, 64
    %v2253 = vpop.permute.xlu0 %2252
    %v2255 = vsel %vm284, %v2103, 0
    %v2258 = vsel %vm780, %v2253, 0
    %2260 = vmatprep.subr.bf16.mxu0 0
    %2261 = vmatpush1.bf16.msra.mxu0 %v2258
    %2262 = vmatprep.subr.bf16.mxu0 0
    %2263 = vmatpush1.bf16.msra.mxu0 0
    %2264 = vmatprep.subr.bf16.mxu0 0
    %2265 = vmatpush1.bf16.msra.mxu0 0
    %2266 = vmatprep.subr.bf16.mxu0 0
    %2267 = vmatpush1.bf16.msra.mxu0 0
    %2268 = vmatprep.subr.bf16.mxu0 0
    %2269 = vmatpush1.bf16.msra.mxu0 0
    %2270 = vmatprep.subr.bf16.mxu0 0
    %2271 = vmatpush1.bf16.msra.mxu0 0
    %2272 = vmatprep.subr.bf16.mxu0 0
    %2273 = vmatpush1.bf16.msra.mxu0 0
    %2274 = vmatprep.subr.bf16.mxu0 0
    %2275 = vmatpush1.bf16.msra.mxu0 0
    %2276 = vmatprep.subr.bf16.mxu0 0
    %2277 = vmatpush1.bf16.msra.mxu0 0
    %2278 = vmatprep.subr.bf16.mxu0 0
    %2279 = vmatpush1.bf16.msra.mxu0 0
    %2280 = vmatprep.subr.bf16.mxu0 0
    %2281 = vmatpush1.bf16.msra.mxu0 0
    %2282 = vmatprep.subr.bf16.mxu0 0
    %2283 = vmatpush1.bf16.msra.mxu0 0
    %2284 = vmatprep.subr.bf16.mxu0 0
    %2285 = vmatpush1.bf16.msra.mxu0 0
    %2286 = vmatprep.subr.bf16.mxu0 0
    %2287 = vmatpush1.bf16.msra.mxu0 0
    %2288 = vmatprep.subr.bf16.mxu0 0
    %2289 = vmatpush1.bf16.msra.mxu0 0
    %2290 = vmatprep.subr.bf16.mxu0 0
    %2291 = vmatpush1.bf16.msra.mxu0 0
    %2292 = vmatprep.mubr.bf16.mxu0 0
    %2293 = vmatmul.mubr.bf16.gmra.mrb[0].mxu0 %v2255
    %v2294 = vpop.f32.mrb[0].mxu0
    %v2295 = vadd.f32 0.0, %v2294
    %v2296 = vpop.f32.mrb[0].mxu0
    %v2297 = vpop.f32.mrb[0].mxu0
    %v2298 = vpop.f32.mrb[0].mxu0
    %2299 = vdwg.mxu0
    %2300 = vrot.lane.b32.xlu0 %v1813, 64
    %v2301 = vpop.permute.xlu0 %2300
    %v2303 = vsel %vm284, %v2104, 0
    %v2306 = vsel %vm780, %v2301, 0
    %2308 = vmatprep.subr.bf16.mxu0 0
    %2309 = vmatpush1.bf16.msra.mxu0 %v2306
    %2310 = vmatprep.subr.bf16.mxu0 0
    %2311 = vmatpush1.bf16.msra.mxu0 0
    %2312 = vmatprep.subr.bf16.mxu0 0
    %2313 = vmatpush1.bf16.msra.mxu0 0
    %2314 = vmatprep.subr.bf16.mxu0 0
    %2315 = vmatpush1.bf16.msra.mxu0 0
    %2316 = vmatprep.subr.bf16.mxu0 0
    %2317 = vmatpush1.bf16.msra.mxu0 0
    %2318 = vmatprep.subr.bf16.mxu0 0
    %2319 = vmatpush1.bf16.msra.mxu0 0
    %2320 = vmatprep.subr.bf16.mxu0 0
    %2321 = vmatpush1.bf16.msra.mxu0 0
    %2322 = vmatprep.subr.bf16.mxu0 0
    %2323 = vmatpush1.bf16.msra.mxu0 0
    %2324 = vmatprep.subr.bf16.mxu0 0
    %2325 = vmatpush1.bf16.msra.mxu0 0
    %2326 = vmatprep.subr.bf16.mxu0 0
    %2327 = vmatpush1.bf16.msra.mxu0 0
    %2328 = vmatprep.subr.bf16.mxu0 0
    %2329 = vmatpush1.bf16.msra.mxu0 0
    %2330 = vmatprep.subr.bf16.mxu0 0
    %2331 = vmatpush1.bf16.msra.mxu0 0
    %2332 = vmatprep.subr.bf16.mxu0 0
    %2333 = vmatpush1.bf16.msra.mxu0 0
    %2334 = vmatprep.subr.bf16.mxu0 0
    %2335 = vmatpush1.bf16.msra.mxu0 0
    %2336 = vmatprep.subr.bf16.mxu0 0
    %2337 = vmatpush1.bf16.msra.mxu0 0
    %2338 = vmatprep.subr.bf16.mxu0 0
    %2339 = vmatpush1.bf16.msra.mxu0 0
    %2340 = vmatprep.mubr.bf16.mxu0 0
    %2341 = vmatmul.mubr.bf16.gmra.mrb[0].mxu0 %v2303
    %v2342 = vpop.f32.mrb[0].mxu0
    %v2343 = vadd.f32 0.0, %v2342
    %v2344 = vpop.f32.mrb[0].mxu0
    %v2345 = vpop.f32.mrb[0].mxu0
    %v2346 = vpop.f32.mrb[0].mxu0
    %2347 = vdwg.mxu0
    %2348 = vrot.lane.b32.xlu0 %v1863, 64
    %v2349 = vpop.permute.xlu0 %2348
    %v2351 = vsel %vm284, %v2105, 0
    %v2354 = vsel %vm780, %v2349, 0
    %2356 = vmatprep.subr.bf16.mxu0 0
    %2357 = vmatpush1.bf16.msra.mxu0 %v2354
    %2358 = vmatprep.subr.bf16.mxu0 0
    %2359 = vmatpush1.bf16.msra.mxu0 0
    %2360 = vmatprep.subr.bf16.mxu0 0
    %2361 = vmatpush1.bf16.msra.mxu0 0
    %2362 = vmatprep.subr.bf16.mxu0 0
    %2363 = vmatpush1.bf16.msra.mxu0 0
    %2364 = vmatprep.subr.bf16.mxu0 0
    %2365 = vmatpush1.bf16.msra.mxu0 0
    %2366 = vmatprep.subr.bf16.mxu0 0
    %2367 = vmatpush1.bf16.msra.mxu0 0
    %2368 = vmatprep.subr.bf16.mxu0 0
    %2369 = vmatpush1.bf16.msra.mxu0 0
    %2370 = vmatprep.subr.bf16.mxu0 0
    %2371 = vmatpush1.bf16.msra.mxu0 0
    %2372 = vmatprep.subr.bf16.mxu0 0
    %2373 = vmatpush1.bf16.msra.mxu0 0
    %2374 = vmatprep.subr.bf16.mxu0 0
    %2375 = vmatpush1.bf16.msra.mxu0 0
    %2376 = vmatprep.subr.bf16.mxu0 0
    %2377 = vmatpush1.bf16.msra.mxu0 0
    %2378 = vmatprep.subr.bf16.mxu0 0
    %2379 = vmatpush1.bf16.msra.mxu0 0
    %2380 = vmatprep.subr.bf16.mxu0 0
    %2381 = vmatpush1.bf16.msra.mxu0 0
    %2382 = vmatprep.subr.bf16.mxu0 0
    %2383 = vmatpush1.bf16.msra.mxu0 0
    %2384 = vmatprep.subr.bf16.mxu0 0
    %2385 = vmatpush1.bf16.msra.mxu0 0
    %2386 = vmatprep.subr.bf16.mxu0 0
    %2387 = vmatpush1.bf16.msra.mxu0 0
    %2388 = vmatprep.mubr.bf16.mxu0 0
    %2389 = vmatmul.mubr.bf16.gmra.mrb[0].mxu0 %v2351
    %v2390 = vpop.f32.mrb[0].mxu0
    %v2391 = vadd.f32 0.0, %v2390
    %v2392 = vpop.f32.mrb[0].mxu0
    %v2393 = vpop.f32.mrb[0].mxu0
    %v2394 = vpop.f32.mrb[0].mxu0
    %2395 = vdwg.mxu0
    %2396 = vrot.lane.b32.xlu0 %v1913, 64
    %v2397 = vpop.permute.xlu0 %2396
    %v2399 = vsel %vm284, %v2106, 0
    %v2402 = vsel %vm780, %v2397, 0
    %2404 = vmatprep.subr.bf16.mxu0 0
    %2405 = vmatpush1.bf16.msra.mxu0 %v2402
    %2406 = vmatprep.subr.bf16.mxu0 0
    %2407 = vmatpush1.bf16.msra.mxu0 0
    %2408 = vmatprep.subr.bf16.mxu0 0
    %2409 = vmatpush1.bf16.msra.mxu0 0
    %2410 = vmatprep.subr.bf16.mxu0 0
    %2411 = vmatpush1.bf16.msra.mxu0 0
    %2412 = vmatprep.subr.bf16.mxu0 0
    %2413 = vmatpush1.bf16.msra.mxu0 0
    %2414 = vmatprep.subr.bf16.mxu0 0
    %2415 = vmatpush1.bf16.msra.mxu0 0
    %2416 = vmatprep.subr.bf16.mxu0 0
    %2417 = vmatpush1.bf16.msra.mxu0 0
    %2418 = vmatprep.subr.bf16.mxu0 0
    %2419 = vmatpush1.bf16.msra.mxu0 0
    %2420 = vmatprep.subr.bf16.mxu0 0
    %2421 = vmatpush1.bf16.msra.mxu0 0
    %2422 = vmatprep.subr.bf16.mxu0 0
    %2423 = vmatpush1.bf16.msra.mxu0 0
    %2424 = vmatprep.subr.bf16.mxu0 0
    %2425 = vmatpush1.bf16.msra.mxu0 0
    %2426 = vmatprep.subr.bf16.mxu0 0
    %2427 = vmatpush1.bf16.msra.mxu0 0
    %2428 = vmatprep.subr.bf16.mxu0 0
    %2429 = vmatpush1.bf16.msra.mxu0 0
    %2430 = vmatprep.subr.bf16.mxu0 0
    %2431 = vmatpush1.bf16.msra.mxu0 0
    %2432 = vmatprep.subr.bf16.mxu0 0
    %2433 = vmatpush1.bf16.msra.mxu0 0
    %2434 = vmatprep.subr.bf16.mxu0 0
    %2435 = vmatpush1.bf16.msra.mxu0 0
    %2436 = vmatprep.mubr.bf16.mxu0 0
    %2437 = vmatmul.mubr.bf16.gmra.mrb[0].mxu0 %v2399
    %v2438 = vpop.f32.mrb[0].mxu0
    %v2439 = vadd.f32 0.0, %v2438
    %v2440 = vpop.f32.mrb[0].mxu0
    %v2441 = vpop.f32.mrb[0].mxu0
    %v2442 = vpop.f32.mrb[0].mxu0
    %2443 = vdwg.mxu0
    %2444 = vrot.lane.b32.xlu0 %v1963, 64
    %v2445 = vpop.permute.xlu0 %2444
    %v2447 = vsel %vm284, %v2107, 0
    %v2450 = vsel %vm780, %v2445, 0
    %2452 = vmatprep.subr.bf16.mxu0 0
    %2453 = vmatpush1.bf16.msra.mxu0 %v2450
    %2454 = vmatprep.subr.bf16.mxu0 0
    %2455 = vmatpush1.bf16.msra.mxu0 0
    %2456 = vmatprep.subr.bf16.mxu0 0
    %2457 = vmatpush1.bf16.msra.mxu0 0
    %2458 = vmatprep.subr.bf16.mxu0 0
    %2459 = vmatpush1.bf16.msra.mxu0 0
    %2460 = vmatprep.subr.bf16.mxu0 0
    %2461 = vmatpush1.bf16.msra.mxu0 0
    %2462 = vmatprep.subr.bf16.mxu0 0
    %2463 = vmatpush1.bf16.msra.mxu0 0
    %2464 = vmatprep.subr.bf16.mxu0 0
    %2465 = vmatpush1.bf16.msra.mxu0 0
    %2466 = vmatprep.subr.bf16.mxu0 0
    %2467 = vmatpush1.bf16.msra.mxu0 0
    %2468 = vmatprep.subr.bf16.mxu0 0
    %2469 = vmatpush1.bf16.msra.mxu0 0
    %2470 = vmatprep.subr.bf16.mxu0 0
    %2471 = vmatpush1.bf16.msra.mxu0 0
    %2472 = vmatprep.subr.bf16.mxu0 0
    %2473 = vmatpush1.bf16.msra.mxu0 0
    %2474 = vmatprep.subr.bf16.mxu0 0
    %2475 = vmatpush1.bf16.msra.mxu0 0
    %2476 = vmatprep.subr.bf16.mxu0 0
    %2477 = vmatpush1.bf16.msra.mxu0 0
    %2478 = vmatprep.subr.bf16.mxu0 0
    %2479 = vmatpush1.bf16.msra.mxu0 0
    %2480 = vmatprep.subr.bf16.mxu0 0
    %2481 = vmatpush1.bf16.msra.mxu0 0
    %2482 = vmatprep.subr.bf16.mxu0 0
    %2483 = vmatpush1.bf16.msra.mxu0 0
    %2484 = vmatprep.mubr.bf16.mxu0 0
    %2485 = vmatmul.mubr.bf16.gmra.mrb[0].mxu0 %v2447
    %v2486 = vpop.f32.mrb[0].mxu0
    %v2487 = vadd.f32 0.0, %v2486
    %v2488 = vpop.f32.mrb[0].mxu0
    %v2489 = vpop.f32.mrb[0].mxu0
    %v2490 = vpop.f32.mrb[0].mxu0
    %2491 = vdwg.mxu0
    %2494 = vrot.lane.b32.xlu0 %v2247, 8
    %v2495 = vpop.permute.xlu0 %2494
    %2496 = vrot.lane.b32.xlu0 %v2295, 8
    %v2497 = vpop.permute.xlu0 %2496
    %2502 = vrot.lane.b32.xlu0 %v2343, 16
    %v2503 = vpop.permute.xlu0 %2502
    %2504 = vrot.lane.b32.xlu0 %v2391, 16
    %v2505 = vpop.permute.xlu0 %2504
    %2510 = vrot.lane.b32.xlu0 %v2439, 24
    %v2511 = vpop.permute.xlu0 %2510
    %2512 = vrot.lane.b32.xlu0 %v2487, 24
    %v2513 = vpop.permute.xlu0 %2512
    %v2516 = vsel %vm284, %v2151, %v2495
    %v2517 = vsel %vm284, %v2199, %v2497
    %v2518 = vsel %vm1186, %v2516, %v2503
    %v2519 = vsel %vm1186, %v2517, %v2505
    %v2520 = vsel %vm1189, %v2518, %v2511
    %v2521 = vsel %vm1189, %v2519, %v2513
    %v2522 = vpack.c.bf16 %v2521, %v2520
    %s2523 = scalar_lea.vmem %s6, 16
    %v2524 = vld [vmem:[%s2523] sm:$0xf]
    %v2525 = vld [vmem:[%s2523 + $0x4] sm:$0xf]
    %v2526 = vld [vmem:[%s2523 + $0x8] sm:$0xf]
    %v2527 = vld [vmem:[%s2523 + $0xc] sm:$0xf]
    %v2528 = vlaneseq
    %v2529 = vshrl.u32 %v2528, 7
    %v2530 = vsub.s32 2, %v2529
    %v2531 = vrot.slane %v1531, %v2530
    %v2536 = vunpack.c.l.b16 %v2524
    %v2537 = vunpack.c.l.b16 %v2525
    %v2538 = vunpack.c.l.b16 %v2526
    %v2539 = vunpack.c.l.b16 %v2527
    %v2540 = vpack.c.b16 %v2537, %v2536
    %v2541 = vpack.c.b16 %v2539, %v2538
    %v2545 = vsel %vm150, %v2522, 0
    %2547 = vmatprep.subr.bf16.mxu0 0
    %2548 = vmatpush1.bf16.msra.mxu0 %v2540
    %2549 = vmatprep.subr.bf16.mxu0 0
    %2550 = vmatpush1.bf16.msra.mxu0 %v2541
    %2551 = vmatprep.subr.bf16.mxu0 0
    %2552 = vmatpush1.bf16.msra.mxu0 0
    %2553 = vmatprep.subr.bf16.mxu0 0
    %2554 = vmatpush1.bf16.msra.mxu0 0
    %2555 = vmatprep.subr.bf16.mxu0 0
    %2556 = vmatpush1.bf16.msra.mxu0 0
    %2557 = vmatprep.subr.bf16.mxu0 0
    %2558 = vmatpush1.bf16.msra.mxu0 0
    %2559 = vmatprep.subr.bf16.mxu0 0
    %2560 = vmatpush1.bf16.msra.mxu0 0
    %2561 = vmatprep.subr.bf16.mxu0 0
    %2562 = vmatpush1.bf16.msra.mxu0 0
    %2563 = vmatprep.subr.bf16.mxu0 0
    %2564 = vmatpush1.bf16.msra.mxu0 0
    %2565 = vmatprep.subr.bf16.mxu0 0
    %2566 = vmatpush1.bf16.msra.mxu0 0
    %2567 = vmatprep.subr.bf16.mxu0 0
    %2568 = vmatpush1.bf16.msra.mxu0 0
    %2569 = vmatprep.subr.bf16.mxu0 0
    %2570 = vmatpush1.bf16.msra.mxu0 0
    %2571 = vmatprep.subr.bf16.mxu0 0
    %2572 = vmatpush1.bf16.msra.mxu0 0
    %2573 = vmatprep.subr.bf16.mxu0 0
    %2574 = vmatpush1.bf16.msra.mxu0 0
    %2575 = vmatprep.subr.bf16.mxu0 0
    %2576 = vmatpush1.bf16.msra.mxu0 0
    %2577 = vmatprep.subr.bf16.mxu0 0
    %2578 = vmatpush1.bf16.msra.mxu0 0
    %2579 = vmatprep.mubr.bf16.mxu0 0
    %2580 = vmatmul.mubr.bf16.gmra.mrb[0].mxu0 %v2545
    %v2581 = vpop.f32.mrb[0].mxu0
    %v2582 = vadd.f32 %v2531, %v2581
    %v2583 = vpop.f32.mrb[0].mxu0
    %v2584 = vpop.f32.mrb[0].mxu0
    %v2585 = vadd.f32 %v2531, %v2584
    %v2586 = vpop.f32.mrb[0].mxu0
    %2587 = vdwg.mxu0
    %v2588 = vadd.f32 %v1528, %v2582
    %v2589 = vadd.f32 %v1529, %v2585
    %v2590 = vsel %vm150, %v2588, 0.0
    %2591 = vadd.xlane.f32.xlu0 %v2590
    %v2592 = vpop.xlane.xlu0 %2591
    %v2593 = vsel %vm150, %v2589, 0.0
    %2594 = vadd.xlane.f32.xlu0 %v2593
    %v2595 = vpop.xlane.xlu0 %2594
    %v2596 = vmul.f32 %v2592, %v157
    %v2597 = vmul.f32 %v2595, %v157
    %v2598 = vsub.f32 %v2588, %v2596
    %v2599 = vsub.f32 %v2589, %v2597
    %v2600 = vmul.f32 %v2598, %v2598
    %v2601 = vmul.f32 %v2599, %v2599
    %v2602 = vsel %vm150, %v2600, 0.0
    %2603 = vadd.xlane.f32.xlu0 %v2602
    %v2604 = vpop.xlane.xlu0 %2603
    %v2605 = vsel %vm150, %v2601, 0.0
    %2606 = vadd.xlane.f32.xlu0 %v2605
    %v2607 = vpop.xlane.xlu0 %2606
    %v2608 = vmul.f32 %v2604, %v157
    %v2609 = vmul.f32 %v2607, %v157
    %v2610 = vadd.f32 %v2608, 1e-12
    %v2611 = vadd.f32 %v2609, 1e-12
    %v2612 = vrsqrt.pop %v2610
    %v2613 = vrsqrt.pop %v2611
    %v2614 = vmul.f32 %v2598, %v2612
    %v2615 = vmul.f32 %v2599, %v2613
    %v2616 = vlaneseq
    %v2617 = vshrl.u32 %v2616, 7
    %v2618 = vsub.s32 3, %v2617
    %v2619 = vrot.slane %v1531, %v2618
    %v2620 = vmul.f32 %v2614, %v2619
    %v2621 = vmul.f32 %v2615, %v2619
    %v2622 = vlaneseq
    %v2623 = vshrl.u32 %v2622, 7
    %v2624 = vsub.s32 4, %v2623
    %v2625 = vrot.slane %v1531, %v2624
    %v2626 = vadd.f32 %v2620, %v2625
    %v2627 = vadd.f32 %v2621, %v2625
    %v2628 = vpack.c.bf16 %v2627, %v2626
    %s2629 = scalar_lea.vmem %s7, 16
    %v2630 = vld [vmem:[%s2629] sm:$0xf]
    %v2631 = vld [vmem:[%s2629 + $0x4] sm:$0xf]
    %v2632 = vld [vmem:[%s2629 + $0x8] sm:$0xf]
    %v2633 = vld [vmem:[%s2629 + $0xc] sm:$0xf]
    %v2634 = vlaneseq
    %v2635 = vshrl.u32 %v2634, 7
    %v2636 = vsub.s32 1, %v2635
    %v2637 = vrot.slane %v1531, %v2636
    %v2642 = vunpack.c.l.b16 %v2630
    %v2643 = vunpack.c.l.b16 %v2631
    %v2644 = vunpack.c.l.b16 %v2632
    %v2645 = vunpack.c.l.b16 %v2633
    %v2646 = vpack.c.b16 %v2643, %v2642
    %v2647 = vpack.c.b16 %v2645, %v2644
    %v2651 = vsel %vm150, %v2628, 0
    %2653 = vmatprep.subr.bf16.mxu0 0
    %2654 = vmatpush1.bf16.msra.mxu0 %v2646
    %2655 = vmatprep.subr.bf16.mxu0 0
    %2656 = vmatpush1.bf16.msra.mxu0 %v2647
    %2657 = vmatprep.subr.bf16.mxu0 0
    %2658 = vmatpush1.bf16.msra.mxu0 0
    %2659 = vmatprep.subr.bf16.mxu0 0
    %2660 = vmatpush1.bf16.msra.mxu0 0
    %2661 = vmatprep.subr.bf16.mxu0 0
    %2662 = vmatpush1.bf16.msra.mxu0 0
    %2663 = vmatprep.subr.bf16.mxu0 0
    %2664 = vmatpush1.bf16.msra.mxu0 0
    %2665 = vmatprep.subr.bf16.mxu0 0
    %2666 = vmatpush1.bf16.msra.mxu0 0
    %2667 = vmatprep.subr.bf16.mxu0 0
    %2668 = vmatpush1.bf16.msra.mxu0 0
    %2669 = vmatprep.subr.bf16.mxu0 0
    %2670 = vmatpush1.bf16.msra.mxu0 0
    %2671 = vmatprep.subr.bf16.mxu0 0
    %2672 = vmatpush1.bf16.msra.mxu0 0
    %2673 = vmatprep.subr.bf16.mxu0 0
    %2674 = vmatpush1.bf16.msra.mxu0 0
    %2675 = vmatprep.subr.bf16.mxu0 0
    %2676 = vmatpush1.bf16.msra.mxu0 0
    %2677 = vmatprep.subr.bf16.mxu0 0
    %2678 = vmatpush1.bf16.msra.mxu0 0
    %2679 = vmatprep.subr.bf16.mxu0 0
    %2680 = vmatpush1.bf16.msra.mxu0 0
    %2681 = vmatprep.subr.bf16.mxu0 0
    %2682 = vmatpush1.bf16.msra.mxu0 0
    %2683 = vmatprep.subr.bf16.mxu0 0
    %2684 = vmatpush1.bf16.msra.mxu0 0
    %2685 = vmatprep.mubr.bf16.mxu0 0
    %2686 = vmatmul.mubr.bf16.gmra.mrb[0].mxu0 %v2651
    %v2687 = vpop.f32.mrb[0].mxu0
    %v2688 = vadd.f32 %v2637, %v2687
    %v2689 = vpop.f32.mrb[0].mxu0
    %v2690 = vpop.f32.mrb[0].mxu0
    %v2691 = vadd.f32 %v2637, %v2690
    %v2692 = vpop.f32.mrb[0].mxu0
    %2693 = vdwg.mxu0
    %v2694 = vmul.f32 %v2688, 0.5
    %v2695 = vmul.f32 %v2691, 0.5
    %v2696 = vmul.f32 %v2688, 0.044715
    %v2697 = vmul.f32 %v2691, 0.044715
    %v2698 = vmul.f32 %v2696, %v2688
    %v2699 = vmul.f32 %v2697, %v2691
    %v2700 = vmul.f32 %v2698, %v2688
    %v2701 = vmul.f32 %v2699, %v2691
    %v2702 = vadd.f32 %v2688, %v2700
    %v2703 = vadd.f32 %v2691, %v2701
    %v2704 = vmul.f32 %v2702, 0.7978846
    %v2705 = vmul.f32 %v2703, 0.7978846
    %v2706 = vtanh.pop %v2704
    %v2707 = vtanh.pop %v2705
    %v2708 = vadd.f32 %v2706, 1.0
    %v2709 = vadd.f32 %v2707, 1.0
    %v2710 = vmul.f32 %v2694, %v2708
    %v2711 = vmul.f32 %v2695, %v2709
    %v2712 = vpack.c.bf16 %v2711, %v2710
    %s2713 = scalar_lea.vmem %s8, 64
    %v2714 = vld [vmem:[%s2713] sm:$0xf]
    %v2715 = vld [vmem:[%s2713 + $0x4] sm:$0xf]
    %v2716 = vld [vmem:[%s2713 + $0x8] sm:$0xf]
    %v2717 = vld [vmem:[%s2713 + $0xc] sm:$0xf]
    %v2718 = vld [vmem:[%s2713 + $0x10] sm:$0xf]
    %v2719 = vld [vmem:[%s2713 + $0x14] sm:$0xf]
    %v2720 = vld [vmem:[%s2713 + $0x18] sm:$0xf]
    %v2721 = vld [vmem:[%s2713 + $0x1c] sm:$0xf]
    %v2722 = vld [vmem:[%s2713 + $0x20] sm:$0xf]
    %v2723 = vld [vmem:[%s2713 + $0x24] sm:$0xf]
    %v2724 = vld [vmem:[%s2713 + $0x28] sm:$0xf]
    %v2725 = vld [vmem:[%s2713 + $0x2c] sm:$0xf]
    %v2726 = vld [vmem:[%s2713 + $0x30] sm:$0xf]
    %v2727 = vld [vmem:[%s2713 + $0x34] sm:$0xf]
    %v2728 = vld [vmem:[%s2713 + $0x38] sm:$0xf]
    %v2729 = vld [vmem:[%s2713 + $0x3c] sm:$0xf]
    %v2730 = vlaneseq
    %v2731 = vshrl.u32 %v2730, 7
    %v2732 = vsub.s32 5, %v2731
    %v2733 = vrot.slane %v1531, %v2732
    %v2750 = vunpack.c.l.b16 %v2714
    %v2751 = vunpack.c.l.b16 %v2715
    %v2752 = vunpack.c.l.b16 %v2716
    %v2753 = vunpack.c.l.b16 %v2717
    %v2754 = vunpack.c.l.b16 %v2718
    %v2755 = vunpack.c.l.b16 %v2719
    %v2756 = vunpack.c.l.b16 %v2720
    %v2757 = vunpack.c.l.b16 %v2721
    %v2758 = vunpack.c.l.b16 %v2722
    %v2759 = vunpack.c.l.b16 %v2723
    %v2760 = vunpack.c.l.b16 %v2724
    %v2761 = vunpack.c.l.b16 %v2725
    %v2762 = vunpack.c.l.b16 %v2726
    %v2763 = vunpack.c.l.b16 %v2727
    %v2764 = vunpack.c.l.b16 %v2728
    %v2765 = vunpack.c.l.b16 %v2729
    %v2766 = vpack.c.b16 %v2751, %v2750
    %v2767 = vpack.c.b16 %v2753, %v2752
    %v2768 = vpack.c.b16 %v2755, %v2754
    %v2769 = vpack.c.b16 %v2757, %v2756
    %v2770 = vpack.c.b16 %v2759, %v2758
    %v2771 = vpack.c.b16 %v2761, %v2760
    %v2772 = vpack.c.b16 %v2763, %v2762
    %v2773 = vpack.c.b16 %v2765, %v2764
    %2782 = vmatprep.subr.bf16.mxu0 0
    %2783 = vmatpush1.bf16.msra.mxu0 %v2766
    %2784 = vmatprep.subr.bf16.mxu0 0
    %2785 = vmatpush1.bf16.msra.mxu0 %v2767
    %2786 = vmatprep.subr.bf16.mxu0 0
    %2787 = vmatpush1.bf16.msra.mxu0 %v2768
    %2788 = vmatprep.subr.bf16.mxu0 0
    %2789 = vmatpush1.bf16.msra.mxu0 %v2769
    %2790 = vmatprep.subr.bf16.mxu0 0
    %2791 = vmatpush1.bf16.msra.mxu0 %v2770
    %2792 = vmatprep.subr.bf16.mxu0 0
    %2793 = vmatpush1.bf16.msra.mxu0 %v2771
    %2794 = vmatprep.subr.bf16.mxu0 0
    %2795 = vmatpush1.bf16.msra.mxu0 %v2772
    %2796 = vmatprep.subr.bf16.mxu0 0
    %2797 = vmatpush1.bf16.msra.mxu0 %v2773
    %2798 = vmatprep.subr.bf16.mxu0 0
    %2799 = vmatpush1.bf16.msra.mxu0 0
    %2800 = vmatprep.subr.bf16.mxu0 0
    %2801 = vmatpush1.bf16.msra.mxu0 0
    %2802 = vmatprep.subr.bf16.mxu0 0
    %2803 = vmatpush1.bf16.msra.mxu0 0
    %2804 = vmatprep.subr.bf16.mxu0 0
    %2805 = vmatpush1.bf16.msra.mxu0 0
    %2806 = vmatprep.subr.bf16.mxu0 0
    %2807 = vmatpush1.bf16.msra.mxu0 0
    %2808 = vmatprep.subr.bf16.mxu0 0
    %2809 = vmatpush1.bf16.msra.mxu0 0
    %2810 = vmatprep.subr.bf16.mxu0 0
    %2811 = vmatpush1.bf16.msra.mxu0 0
    %2812 = vmatprep.subr.bf16.mxu0 0
    %2813 = vmatpush1.bf16.msra.mxu0 0
    %2814 = vmatprep.mubr.bf16.mxu0 0
    %2815 = vmatmul.mubr.bf16.gmra.mrb[0].mxu0 %v2712
    %v2816 = vpop.f32.mrb[0].mxu0
    %v2817 = vadd.f32 %v2733, %v2816
    %v2818 = vpop.f32.mrb[0].mxu0
    %v2819 = vpop.f32.mrb[0].mxu0
    %v2820 = vadd.f32 %v2733, %v2819
    %v2821 = vpop.f32.mrb[0].mxu0
    %2822 = vdwg.mxu0
    %v2823 = vadd.f32 %v2626, %v2817
    %v2824 = vadd.f32 %v2627, %v2820
    %v2825 = vsel %vm150, %v2823, 0.0
    %2826 = vadd.xlane.f32.xlu0 %v2825
    %v2827 = vpop.xlane.xlu0 %2826
    %v2828 = vsel %vm150, %v2824, 0.0
    %2829 = vadd.xlane.f32.xlu0 %v2828
    %v2830 = vpop.xlane.xlu0 %2829
    %v2831 = vmul.f32 %v2827, %v157
    %v2832 = vmul.f32 %v2830, %v157
    %v2833 = vsub.f32 %v2823, %v2831
    %v2834 = vsub.f32 %v2824, %v2832
    %v2835 = vmul.f32 %v2833, %v2833
    %v2836 = vmul.f32 %v2834, %v2834
    %v2837 = vsel %vm150, %v2835, 0.0
    %2838 = vadd.xlane.f32.xlu0 %v2837
    %v2839 = vpop.xlane.xlu0 %2838
    %v2840 = vsel %vm150, %v2836, 0.0
    %2841 = vadd.xlane.f32.xlu0 %v2840
    %v2842 = vpop.xlane.xlu0 %2841
    %v2843 = vmul.f32 %v2839, %v157
    %v2844 = vmul.f32 %v2842, %v157
    %v2845 = vadd.f32 %v2843, 1e-12
    %v2846 = vadd.f32 %v2844, 1e-12
    %v2847 = vrsqrt.pop %v2845
    %v2848 = vrsqrt.pop %v2846
    %v2849 = vmul.f32 %v2833, %v2847
    %v2850 = vmul.f32 %v2834, %v2848
    %v2851 = vlaneseq
    %v2852 = vshrl.u32 %v2851, 7
    %v2853 = vsub.s32 6, %v2852
    %v2854 = vrot.slane %v1531, %v2853
    %v2855 = vmul.f32 %v2849, %v2854
    %v2856 = vmul.f32 %v2850, %v2854
    %v2857 = vlaneseq
    %v2858 = vshrl.u32 %v2857, 7
    %v2859 = vsub.s32 7, %v2858
    %v2860 = vrot.slane %v1531, %v2859
    %v2861 = vadd.f32 %v2855, %v2860
    %v2862 = vadd.f32 %v2856, %v2860
    %2863 = vst.msk [vmem:[#allocation2] sm:$0xff] %vm150, %v2861
    %2864 = vst.msk [vmem:[#allocation2 + $0x8] sm:$0xff] %vm150, %v2862
    // Predicated region
    $region42: #{bert_layer_forward.1} parent=1 // pred_check
      _
    $region43: #{bert_layer_forward.1} parent=1 // pred_check_branch
      %2866 = sbr.rel (0) target = $region45
    $region44: #{bert_layer_forward.1} parent=1 // pred_region
      %s2868 = ssub.s32 256, 256
      %2869 = vsyncadd [#allocation3], %s2868
      %s2870 = sshll.u32 [#allocation2], 4
      %s2871 = int_to_ptr.vmem [resolvable:$true] %s2870
      %2876 = dma.vmem_to_hbm [thread:$0]  %s2871, 256, %s10, [#allocation3], 128, 128, 8
    $region45: #{bert_layer_forward.1} parent=1 // pred_fallthru
      _
    // Predicated region
    $region46: #{bert_layer_forward.1} parent=1 // pred_check
      _
    $region47: #{bert_layer_forward.1} parent=1 // pred_check_branch
      %2878 = sbr.rel (0) target = $region49
    $region48: #{bert_layer_forward.1} parent=1 // pred_region
      %2879 = dma.done [#allocation3], 256
    $region49: #{bert_layer_forward.1} parent=1 // pred_fallthru
      _
    %2880 = vsyncpa [#allocation3], 1

</llo_original>
